<compile_context>
chip_gen: v7x
topology: tpu7x:2x2x1
jax: 0.10.0
libtpu: 0.0.40
codegen_flags: <defaults>
</compile_context>

<pallas_src>
import functools

import jax
import jax.numpy as jnp
from jax import lax
from jax.experimental import pallas as pl
from jax.experimental.pallas import tpu as pltpu


def _round_up(v, m):
    return (v + m - 1) // m * m


# ----------------------------- Pallas kernel --------------------------------

def _fused_bilstm_kernel(x_ref, wihf_ref, wihb_ref, whhf_ref, whhb_ref,
                         bf_ref, bb_ref, wef_ref, web_ref, bemb_ref,
                         out_ref,
                         gxf_scr, gxb_scr, recf_scr, recb_scr,
                         *, T, Bp, Hp, unroll):
    """Single-invocation fused bidirectional LSTM + embedding Linear.

    x_ref    : (T*Bp, nIn)   sequence-first input, batch padded to Bp (mult of 8)
    wihf/b   : (nIn, 4Hp)    per-direction input->gate weights (gate blocks padded)
    whhf/b   : (Hp, 4Hp)     per-direction recurrent weights
    bf/bb    : (1, 4Hp)      per-direction b_ih + b_hh
    wef/web  : (Hp, Np)      embedding weight halves (fwd / bwd hidden)
    bemb     : (1, Np)
    out_ref  : (T*Bp, Np)    lane-dense output slab
    gxf/gxb  : (T*Bp, 4Hp)   VMEM scratch: precomputed x-projection per direction
    recf/recb: (T*Bp, Hp)    VMEM scratch: per-timestep hidden states, time-major
    """
    # ---- prologue: hoisted input projection (two MXU-shaped matmuls) ----
    gxf_scr[...] = (jnp.dot(x_ref[...], wihf_ref[...],
                            preferred_element_type=jnp.float32) + bf_ref[...])
    gxb_scr[...] = (jnp.dot(x_ref[...], wihb_ref[...],
                            preferred_element_type=jnp.float32) + bb_ref[...])

    def cell(gates, c):
        i = jax.nn.sigmoid(gates[:, 0 * Hp:1 * Hp])
        f = jax.nn.sigmoid(gates[:, 1 * Hp:2 * Hp])
        g = jnp.tanh(gates[:, 2 * Hp:3 * Hp])
        o = jax.nn.sigmoid(gates[:, 3 * Hp:4 * Hp])
        c_new = f * c + i * g
        h_new = o * jnp.tanh(c_new)
        return h_new, c_new

    def step(t, carry):
        h_f, h_b, c_f, c_b = carry           # each (Bp, Hp)

        row_f = pl.multiple_of(t * Bp, Bp)             # forward reads x[t]
        row_b = pl.multiple_of((T - 1 - t) * Bp, Bp)   # backward reads x[T-1-t]

        # Two independent recurrent dots (no concat, no zero blocks); RHS is
        # streamed from the VMEM Ref rather than held in vregs.
        gh_f = jnp.dot(h_f, whhf_ref[...], preferred_element_type=jnp.float32)
        gh_b = jnp.dot(h_b, whhb_ref[...], preferred_element_type=jnp.float32)

        # Ref-sliced, sublane-aligned, full-lane gx loads.
        gates_f = gh_f + gxf_scr[pl.ds(row_f, Bp), :]
        gates_b = gh_b + gxb_scr[pl.ds(row_b, Bp), :]

        h_f_new, c_f_new = cell(gates_f, c_f)
        h_b_new, c_b_new = cell(gates_b, c_b)

        # Full (8,128)-tile, unmasked stores of the per-timestep hidden states.
        recf_scr[pl.ds(row_f, Bp), :] = h_f_new
        recb_scr[pl.ds(row_b, Bp), :] = h_b_new

        return h_f_new, h_b_new, c_f_new, c_b_new

    init = (jnp.zeros((Bp, Hp), jnp.float32),
            jnp.zeros((Bp, Hp), jnp.float32),
            jnp.zeros((Bp, Hp), jnp.float32),
            jnp.zeros((Bp, Hp), jnp.float32))
    lax.fori_loop(0, T, step, init, unroll=unroll)

    # ---- epilogue: fused embedding Linear, single lane-dense store ----
    # concat(h_f, h_b) @ W_emb == h_f @ W_emb[:H] + h_b @ W_emb[H:]
    out_ref[...] = (jnp.dot(recf_scr[...], wef_ref[...],
                            preferred_element_type=jnp.float32)
                    + jnp.dot(recb_scr[...], web_ref[...],
                              preferred_element_type=jnp.float32)
                    + bemb_ref[...])


# ------------------------------- Wrapper -------------------------------------

def _pad_gate_cols(w, H, Hp):
    """w: (rows, 4H) with gate blocks [i|f|g|o]; zero-pad each gate block to Hp."""
    if Hp == H:
        return w
    blocks = [jnp.pad(w[:, g * H:(g + 1) * H], ((0, 0), (0, Hp - H)))
              for g in range(4)]
    return jnp.concatenate(blocks, axis=1)


def bidirectional_lstm_forward(x, p):
    """Full module forward: (T, B, nIn) -> (T, B, nOut)."""
    T, B, nIn = x.shape
    H = p["whh_f"].shape[0]
    nOut = p["w_emb"].shape[1]

    Bp = _round_up(B, 8)        # full-sublane rows per timestep
    Hp = _round_up(H, 128)      # whole-vreg gate/hidden blocks
    Np = _round_up(nOut, 128)   # lane-dense output slab

    # ---- one-time weight packing / zero-padding (outside the kernel) ----
    wih_f = _pad_gate_cols(p["wih_f"], H, Hp)                                   # (nIn, 4Hp)
    wih_b = _pad_gate_cols(p["wih_b"], H, Hp)
    whh_f = _pad_gate_cols(jnp.pad(p["whh_f"], ((0, Hp - H), (0, 0))), H, Hp)   # (Hp, 4Hp)
    whh_b = _pad_gate_cols(jnp.pad(p["whh_b"], ((0, Hp - H), (0, 0))), H, Hp)
    b_f = _pad_gate_cols(p["b_f"], H, Hp)                                       # (1, 4Hp)
    b_b = _pad_gate_cols(p["b_b"], H, Hp)
    w_emb_f = jnp.pad(p["w_emb"][:H, :], ((0, Hp - H), (0, Np - nOut)))         # (Hp, Np)
    w_emb_b = jnp.pad(p["w_emb"][H:, :], ((0, Hp - H), (0, Np - nOut)))
    b_emb = jnp.pad(p["b_emb"], ((0, 0), (0, Np - nOut)))                       # (1, Np)

    x2d = jnp.pad(x, ((0, 0), (0, Bp - B), (0, 0))).reshape(T * Bp, nIn)

    # Bounded unroll: full only for small T.
    unroll = T if T <= 8 else 8

    # VMEM budget: inputs + output + scratches, with headroom.
    f32b = 4
    resident_bytes = f32b * (
        T * Bp * nIn                 # x
        + 2 * nIn * 4 * Hp           # wih_f/b
        + 2 * Hp * 4 * Hp            # whh_f/b
        + 2 * 4 * Hp                 # biases
        + 2 * Hp * Np + Np           # embedding weights + bias
        + T * Bp * Np                # out
        + 2 * T * Bp * 4 * Hp        # gx scratches
        + 2 * T * Bp * Hp            # rec scratches
    )
    vmem_limit = int(min(max(2 * resident_bytes, 8 * 2**20), 100 * 2**20))

    kernel = functools.partial(_fused_bilstm_kernel, T=T, Bp=Bp, Hp=Hp,
                               unroll=unroll)

    out2d = pl.pallas_call(
        kernel,
        out_shape=jax.ShapeDtypeStruct((T * Bp, Np), jnp.float32),
        scratch_shapes=[
            pltpu.VMEM((T * Bp, 4 * Hp), jnp.float32),   # gx forward
            pltpu.VMEM((T * Bp, 4 * Hp), jnp.float32),   # gx backward
            pltpu.VMEM((T * Bp, Hp), jnp.float32),       # forward hidden states
            pltpu.VMEM((T * Bp, Hp), jnp.float32),       # backward hidden states
        ],
        compiler_params=pltpu.CompilerParams(vmem_limit_bytes=vmem_limit),
    )(x2d, wih_f, wih_b, whh_f, whh_b, b_f, b_b, w_emb_f, w_emb_b, b_emb)

    return out2d.reshape(T, Bp, Np)[:, :B, :nOut]


# --------------------------- Pure-JAX reference ------------------------------

def _lstm_dir_ref(x, wih, whh, b, reverse):
    B = x.shape[1]
    H = whh.shape[0]

    def step(carry, xt):
        h, c = carry
        gates = xt @ wih + h @ whh + b
        i = jax.nn.sigmoid(gates[:, :H])
        f = jax.nn.sigmoid(gates[:, H:2 * H])
        g = jnp.tanh(gates[:, 2 * H:3 * H])
        o = jax.nn.sigmoid(gates[:, 3 * H:])
        c = f * c + i * g
        h = o * jnp.tanh(c)
        return (h, c), h

    init = (jnp.zeros((B, H), jnp.float32), jnp.zeros((B, H), jnp.float32))
    _, hs = lax.scan(step, init, x, reverse=reverse)
    return hs


def forward_ref(x, p):
    T, B, _ = x.shape
    hf = _lstm_dir_ref(x, p["wih_f"], p["whh_f"], p["b_f"], reverse=False)
    hb = _lstm_dir_ref(x, p["wih_b"], p["whh_b"], p["b_b"], reverse=True)
    rec = jnp.concatenate([hf, hb], axis=-1).reshape(T * B, -1)
    out = rec @ p["w_emb"] + p["b_emb"]
    return out.reshape(T, B, -1)


# ---------------------------------- Main -------------------------------------

if __name__ == "__main__":
    T, B, nIn, H, nOut = 8, 2, 16, 32, 16

    key = jax.random.PRNGKey(0)
    ks = jax.random.split(key, 10)
    k = 1.0 / jnp.sqrt(jnp.float32(H))

    def init(kk, shape):
        return jax.random.uniform(kk, shape, jnp.float32, -k, k)

    params = {
        # forward direction (PyTorch gate order i,f,g,o along the 4H axis)
        "wih_f": init(ks[0], (nIn, 4 * H)),
        "whh_f": init(ks[1], (H, 4 * H)),
        "b_f":   init(ks[2], (1, 4 * H)),   # b_ih + b_hh pre-summed
        # backward direction
        "wih_b": init(ks[3], (nIn, 4 * H)),
        "whh_b": init(ks[4], (H, 4 * H)),
        "b_b":   init(ks[5], (1, 4 * H)),
        # embedding linear
        "w_emb": init(ks[6], (2 * H, nOut)),
        "b_emb": init(ks[7], (1, nOut)),
    }

    x = jax.random.normal(ks[8], (T, B, nIn), jnp.float32)

    fwd = jax.jit(bidirectional_lstm_forward)
    out = jax.block_until_ready(fwd(x, params))

    ref = jax.block_until_ready(forward_ref(x, params))
    assert out.shape == (T, B, nOut)
    assert jnp.allclose(out, ref, rtol=1e-5, atol=1e-5), "mismatch vs reference"

    print("KERNEL_OK")
</pallas_src>

<mosaic_0001>
module attributes {stable_mosaic.version = 11 : i64} {
  func.func @_fused_bilstm_kernel(%arg0: memref<64x16xf32, #tpu.memory_space<vmem>>, %arg1: memref<16x512xf32, #tpu.memory_space<vmem>>, %arg2: memref<16x512xf32, #tpu.memory_space<vmem>>, %arg3: memref<128x512xf32, #tpu.memory_space<vmem>>, %arg4: memref<128x512xf32, #tpu.memory_space<vmem>>, %arg5: memref<1x512xf32, #tpu.memory_space<vmem>>, %arg6: memref<1x512xf32, #tpu.memory_space<vmem>>, %arg7: memref<128x128xf32, #tpu.memory_space<vmem>>, %arg8: memref<128x128xf32, #tpu.memory_space<vmem>>, %arg9: memref<1x128xf32, #tpu.memory_space<vmem>>, %arg10: memref<64x128xf32, #tpu.memory_space<vmem>>, %arg11: memref<64x512xf32, #tpu.memory_space<vmem>>, %arg12: memref<64x512xf32, #tpu.memory_space<vmem>>, %arg13: memref<64x128xf32, #tpu.memory_space<vmem>>, %arg14: memref<64x128xf32, #tpu.memory_space<vmem>>) attributes {dimension_semantics = [], scalar_prefetch = 0 : i64, scratch_operands = 4 : i64, tpu.core_type = #tpu.core_type<tc>} {
    %c0 = arith.constant 0 : index
    %c0_0 = arith.constant 0 : index
    %0 = vector.load %arg0[%c0, %c0_0] : memref<64x16xf32, #tpu.memory_space<vmem>>, vector<64x16xf32>
    %c0_1 = arith.constant 0 : index
    %c0_2 = arith.constant 0 : index
    %1 = vector.load %arg1[%c0_1, %c0_2] : memref<16x512xf32, #tpu.memory_space<vmem>>, vector<16x512xf32>
    %cst = arith.constant dense<0.000000e+00> : vector<64x512xf32>
    %2 = tpu.matmul %0, %1, %cst {dimension_numbers = #tpu.dot_dimension_numbers<[1], [0], [0], [1], [0, 0, 1, 1], [], []>} : vector<64x16xf32>, vector<16x512xf32>, vector<64x512xf32> -> vector<64x512xf32>
    %c0_3 = arith.constant 0 : index
    %c0_4 = arith.constant 0 : index
    %3 = vector.load %arg5[%c0_3, %c0_4] : memref<1x512xf32, #tpu.memory_space<vmem>>, vector<1x512xf32>
    %4 = vector.broadcast %3 : vector<1x512xf32> to vector<64x512xf32>
    %5 = arith.addf %2, %4 : vector<64x512xf32>
    %c0_5 = arith.constant 0 : index
    %c0_6 = arith.constant 0 : index
    %6 = vector.load %arg11[%c0_5, %c0_6] : memref<64x512xf32, #tpu.memory_space<vmem>>, vector<64x512xf32>
    tpu.vector_store %arg11[%c0_5, %c0_6], %5 {strides = array<i32>} : memref<64x512xf32, #tpu.memory_space<vmem>>, vector<64x512xf32>,
    %c0_7 = arith.constant 0 : index
    %c0_8 = arith.constant 0 : index
    %7 = vector.load %arg0[%c0_7, %c0_8] : memref<64x16xf32, #tpu.memory_space<vmem>>, vector<64x16xf32>
    %c0_9 = arith.constant 0 : index
    %c0_10 = arith.constant 0 : index
    %8 = vector.load %arg2[%c0_9, %c0_10] : memref<16x512xf32, #tpu.memory_space<vmem>>, vector<16x512xf32>
    %cst_11 = arith.constant dense<0.000000e+00> : vector<64x512xf32>
    %9 = tpu.matmul %7, %8, %cst_11 {dimension_numbers = #tpu.dot_dimension_numbers<[1], [0], [0], [1], [0, 0, 1, 1], [], []>} : vector<64x16xf32>, vector<16x512xf32>, vector<64x512xf32> -> vector<64x512xf32>
    %c0_12 = arith.constant 0 : index
    %c0_13 = arith.constant 0 : index
    %10 = vector.load %arg6[%c0_12, %c0_13] : memref<1x512xf32, #tpu.memory_space<vmem>>, vector<1x512xf32>
    %11 = vector.broadcast %10 : vector<1x512xf32> to vector<64x512xf32>
    %12 = arith.addf %9, %11 : vector<64x512xf32>
    %c0_14 = arith.constant 0 : index
    %c0_15 = arith.constant 0 : index
    %13 = vector.load %arg12[%c0_14, %c0_15] : memref<64x512xf32, #tpu.memory_space<vmem>>, vector<64x512xf32>
    tpu.vector_store %arg12[%c0_14, %c0_15], %12 {strides = array<i32>} : memref<64x512xf32, #tpu.memory_space<vmem>>, vector<64x512xf32>,
    %cst_16 = arith.constant 0.000000e+00 : f32
    %14 = vector.broadcast %cst_16 : f32 to vector<8x128xf32>
    %cst_17 = arith.constant 0.000000e+00 : f32
    %15 = vector.broadcast %cst_17 : f32 to vector<8x128xf32>
    %cst_18 = arith.constant 0.000000e+00 : f32
    %16 = vector.broadcast %cst_18 : f32 to vector<8x128xf32>
    %cst_19 = arith.constant 0.000000e+00 : f32
    %17 = vector.broadcast %cst_19 : f32 to vector<8x128xf32>
    %c0_i32 = arith.constant 0 : i32
    %c8_i32 = arith.constant 8 : i32
    %18 = arith.muli %c0_i32, %c8_i32 : i32
    %19 = tpu.assume_multiple %18, 8 : i32
    %c7_i32 = arith.constant 7 : i32
    %20 = arith.subi %c7_i32, %c0_i32 : i32
    %c8_i32_20 = arith.constant 8 : i32
    %21 = arith.muli %20, %c8_i32_20 : i32
    %22 = tpu.assume_multiple %21, 8 : i32
    %c0_21 = arith.constant 0 : index
    %c0_22 = arith.constant 0 : index
    %23 = vector.load %arg3[%c0_21, %c0_22] : memref<128x512xf32, #tpu.memory_space<vmem>>, vector<128x512xf32>
    %cst_23 = arith.constant dense<0.000000e+00> : vector<8x512xf32>
    %24 = tpu.matmul %14, %23, %cst_23 {dimension_numbers = #tpu.dot_dimension_numbers<[1], [0], [0], [1], [0, 0, 1, 1], [], []>} : vector<8x128xf32>, vector<128x512xf32>, vector<8x512xf32> -> vector<8x512xf32>
    %c0_24 = arith.constant 0 : index
    %c0_25 = arith.constant 0 : index
    %25 = vector.load %arg4[%c0_24, %c0_25] : memref<128x512xf32, #tpu.memory_space<vmem>>, vector<128x512xf32>
    %cst_26 = arith.constant dense<0.000000e+00> : vector<8x512xf32>
    %26 = tpu.matmul %15, %25, %cst_26 {dimension_numbers = #tpu.dot_dimension_numbers<[1], [0], [0], [1], [0, 0, 1, 1], [], []>} : vector<8x128xf32>, vector<128x512xf32>, vector<8x512xf32> -> vector<8x512xf32>
    %27 = arith.index_cast %19 : i32 to index
    %c0_27 = arith.constant 0 : index
    %28 = vector.load %arg11[%27, %c0_27] : memref<64x512xf32, #tpu.memory_space<vmem>>, vector<8x512xf32>
    %29 = arith.addf %24, %28 : vector<8x512xf32>
    %30 = arith.index_cast %22 : i32 to index
    %c0_28 = arith.constant 0 : index
    %31 = vector.load %arg12[%30, %c0_28] : memref<64x512xf32, #tpu.memory_space<vmem>>, vector<8x512xf32>
    %32 = arith.addf %26, %31 : vector<8x512xf32>
    %33 = vector.extract_strided_slice %29 {offsets = [0, 0], sizes = [8, 128], strides = [1, 1]} : vector<8x512xf32> to vector<8x128xf32>
    %34 = arith.negf %33 : vector<8x128xf32>
    %35 = math.exp %34 : vector<8x128xf32>
    %cst_29 = arith.constant 1.000000e+00 : f32
    %36 = vector.broadcast %cst_29 : f32 to vector<8x128xf32>
    %37 = arith.addf %36, %35 : vector<8x128xf32>
    %38 = arith.divf %36, %37 : vector<8x128xf32>
    %39 = vector.extract_strided_slice %29 {offsets = [0, 128], sizes = [8, 128], strides = [1, 1]} : vector<8x512xf32> to vector<8x128xf32>
    %40 = arith.negf %39 : vector<8x128xf32>
    %41 = math.exp %40 : vector<8x128xf32>
    %cst_30 = arith.constant 1.000000e+00 : f32
    %42 = vector.broadcast %cst_30 : f32 to vector<8x128xf32>
    %43 = arith.addf %42, %41 : vector<8x128xf32>
    %44 = arith.divf %42, %43 : vector<8x128xf32>
    %45 = vector.extract_strided_slice %29 {offsets = [0, 256], sizes = [8, 128], strides = [1, 1]} : vector<8x512xf32> to vector<8x128xf32>
    %46 = math.tanh %45 : vector<8x128xf32>
    %47 = vector.extract_strided_slice %29 {offsets = [0, 384], sizes = [8, 128], strides = [1, 1]} : vector<8x512xf32> to vector<8x128xf32>
    %48 = arith.negf %47 : vector<8x128xf32>
    %49 = math.exp %48 : vector<8x128xf32>
    %cst_31 = arith.constant 1.000000e+00 : f32
    %50 = vector.broadcast %cst_31 : f32 to vector<8x128xf32>
    %51 = arith.addf %50, %49 : vector<8x128xf32>
    %52 = arith.divf %50, %51 : vector<8x128xf32>
    %53 = arith.mulf %44, %16 : vector<8x128xf32>
    %54 = arith.mulf %38, %46 : vector<8x128xf32>
    %55 = arith.addf %53, %54 : vector<8x128xf32>
    %56 = math.tanh %55 : vector<8x128xf32>
    %57 = arith.mulf %52, %56 : vector<8x128xf32>
    %58 = vector.extract_strided_slice %32 {offsets = [0, 0], sizes = [8, 128], strides = [1, 1]} : vector<8x512xf32> to vector<8x128xf32>
    %59 = arith.negf %58 : vector<8x128xf32>
    %60 = math.exp %59 : vector<8x128xf32>
    %cst_32 = arith.constant 1.000000e+00 : f32
    %61 = vector.broadcast %cst_32 : f32 to vector<8x128xf32>
    %62 = arith.addf %61, %60 : vector<8x128xf32>
    %63 = arith.divf %61, %62 : vector<8x128xf32>
    %64 = vector.extract_strided_slice %32 {offsets = [0, 128], sizes = [8, 128], strides = [1, 1]} : vector<8x512xf32> to vector<8x128xf32>
    %65 = arith.negf %64 : vector<8x128xf32>
    %66 = math.exp %65 : vector<8x128xf32>
    %cst_33 = arith.constant 1.000000e+00 : f32
    %67 = vector.broadcast %cst_33 : f32 to vector<8x128xf32>
    %68 = arith.addf %67, %66 : vector<8x128xf32>
    %69 = arith.divf %67, %68 : vector<8x128xf32>
    %70 = vector.extract_strided_slice %32 {offsets = [0, 256], sizes = [8, 128], strides = [1, 1]} : vector<8x512xf32> to vector<8x128xf32>
    %71 = math.tanh %70 : vector<8x128xf32>
    %72 = vector.extract_strided_slice %32 {offsets = [0, 384], sizes = [8, 128], strides = [1, 1]} : vector<8x512xf32> to vector<8x128xf32>
    %73 = arith.negf %72 : vector<8x128xf32>
    %74 = math.exp %73 : vector<8x128xf32>
    %cst_34 = arith.constant 1.000000e+00 : f32
    %75 = vector.broadcast %cst_34 : f32 to vector<8x128xf32>
    %76 = arith.addf %75, %74 : vector<8x128xf32>
    %77 = arith.divf %75, %76 : vector<8x128xf32>
    %78 = arith.mulf %69, %17 : vector<8x128xf32>
    %79 = arith.mulf %63, %71 : vector<8x128xf32>
    %80 = arith.addf %78, %79 : vector<8x128xf32>
    %81 = math.tanh %80 : vector<8x128xf32>
    %82 = arith.mulf %77, %81 : vector<8x128xf32>
    %83 = arith.index_cast %19 : i32 to index
    %c0_35 = arith.constant 0 : index
    %84 = vector.load %arg13[%83, %c0_35] : memref<64x128xf32, #tpu.memory_space<vmem>>, vector<8x128xf32>
    tpu.vector_store %arg13[%83, %c0_35], %57 {strides = array<i32>} : memref<64x128xf32, #tpu.memory_space<vmem>>, vector<8x128xf32>,
    %85 = arith.index_cast %22 : i32 to index
    %c0_36 = arith.constant 0 : index
    %86 = vector.load %arg14[%85, %c0_36] : memref<64x128xf32, #tpu.memory_space<vmem>>, vector<8x128xf32>
    tpu.vector_store %arg14[%85, %c0_36], %82 {strides = array<i32>} : memref<64x128xf32, #tpu.memory_space<vmem>>, vector<8x128xf32>,
    %c1_i32 = arith.constant 1 : i32
    %c8_i32_37 = arith.constant 8 : i32
    %87 = arith.muli %c1_i32, %c8_i32_37 : i32
    %88 = tpu.assume_multiple %87, 8 : i32
    %c7_i32_38 = arith.constant 7 : i32
    %89 = arith.subi %c7_i32_38, %c1_i32 : i32
    %c8_i32_39 = arith.constant 8 : i32
    %90 = arith.muli %89, %c8_i32_39 : i32
    %91 = tpu.assume_multiple %90, 8 : i32
    %c0_40 = arith.constant 0 : index
    %c0_41 = arith.constant 0 : index
    %92 = vector.load %arg3[%c0_40, %c0_41] : memref<128x512xf32, #tpu.memory_space<vmem>>, vector<128x512xf32>
    %cst_42 = arith.constant dense<0.000000e+00> : vector<8x512xf32>
    %93 = tpu.matmul %57, %92, %cst_42 {dimension_numbers = #tpu.dot_dimension_numbers<[1], [0], [0], [1], [0, 0, 1, 1], [], []>} : vector<8x128xf32>, vector<128x512xf32>, vector<8x512xf32> -> vector<8x512xf32>
    %c0_43 = arith.constant 0 : index
    %c0_44 = arith.constant 0 : index
    %94 = vector.load %arg4[%c0_43, %c0_44] : memref<128x512xf32, #tpu.memory_space<vmem>>, vector<128x512xf32>
    %cst_45 = arith.constant dense<0.000000e+00> : vector<8x512xf32>
    %95 = tpu.matmul %82, %94, %cst_45 {dimension_numbers = #tpu.dot_dimension_numbers<[1], [0], [0], [1], [0, 0, 1, 1], [], []>} : vector<8x128xf32>, vector<128x512xf32>, vector<8x512xf32> -> vector<8x512xf32>
    %96 = arith.index_cast %88 : i32 to index
    %c0_46 = arith.constant 0 : index
    %97 = vector.load %arg11[%96, %c0_46] : memref<64x512xf32, #tpu.memory_space<vmem>>, vector<8x512xf32>
    %98 = arith.addf %93, %97 : vector<8x512xf32>
    %99 = arith.index_cast %91 : i32 to index
    %c0_47 = arith.constant 0 : index
    %100 = vector.load %arg12[%99, %c0_47] : memref<64x512xf32, #tpu.memory_space<vmem>>, vector<8x512xf32>
    %101 = arith.addf %95, %100 : vector<8x512xf32>
    %102 = vector.extract_strided_slice %98 {offsets = [0, 0], sizes = [8, 128], strides = [1, 1]} : vector<8x512xf32> to vector<8x128xf32>
    %103 = arith.negf %102 : vector<8x128xf32>
    %104 = math.exp %103 : vector<8x128xf32>
    %cst_48 = arith.constant 1.000000e+00 : f32
    %105 = vector.broadcast %cst_48 : f32 to vector<8x128xf32>
    %106 = arith.addf %105, %104 : vector<8x128xf32>
    %107 = arith.divf %105, %106 : vector<8x128xf32>
    %108 = vector.extract_strided_slice %98 {offsets = [0, 128], sizes = [8, 128], strides = [1, 1]} : vector<8x512xf32> to vector<8x128xf32>
    %109 = arith.negf %108 : vector<8x128xf32>
    %110 = math.exp %109 : vector<8x128xf32>
    %cst_49 = arith.constant 1.000000e+00 : f32
    %111 = vector.broadcast %cst_49 : f32 to vector<8x128xf32>
    %112 = arith.addf %111, %110 : vector<8x128xf32>
    %113 = arith.divf %111, %112 : vector<8x128xf32>
    %114 = vector.extract_strided_slice %98 {offsets = [0, 256], sizes = [8, 128], strides = [1, 1]} : vector<8x512xf32> to vector<8x128xf32>
    %115 = math.tanh %114 : vector<8x128xf32>
    %116 = vector.extract_strided_slice %98 {offsets = [0, 384], sizes = [8, 128], strides = [1, 1]} : vector<8x512xf32> to vector<8x128xf32>
    %117 = arith.negf %116 : vector<8x128xf32>
    %118 = math.exp %117 : vector<8x128xf32>
    %cst_50 = arith.constant 1.000000e+00 : f32
    %119 = vector.broadcast %cst_50 : f32 to vector<8x128xf32>
    %120 = arith.addf %119, %118 : vector<8x128xf32>
    %121 = arith.divf %119, %120 : vector<8x128xf32>
    %122 = arith.mulf %113, %55 : vector<8x128xf32>
    %123 = arith.mulf %107, %115 : vector<8x128xf32>
    %124 = arith.addf %122, %123 : vector<8x128xf32>
    %125 = math.tanh %124 : vector<8x128xf32>
    %126 = arith.mulf %121, %125 : vector<8x128xf32>
    %127 = vector.extract_strided_slice %101 {offsets = [0, 0], sizes = [8, 128], strides = [1, 1]} : vector<8x512xf32> to vector<8x128xf32>
    %128 = arith.negf %127 : vector<8x128xf32>
    %129 = math.exp %128 : vector<8x128xf32>
    %cst_51 = arith.constant 1.000000e+00 : f32
    %130 = vector.broadcast %cst_51 : f32 to vector<8x128xf32>
    %131 = arith.addf %130, %129 : vector<8x128xf32>
    %132 = arith.divf %130, %131 : vector<8x128xf32>
    %133 = vector.extract_strided_slice %101 {offsets = [0, 128], sizes = [8, 128], strides = [1, 1]} : vector<8x512xf32> to vector<8x128xf32>
    %134 = arith.negf %133 : vector<8x128xf32>
    %135 = math.exp %134 : vector<8x128xf32>
    %cst_52 = arith.constant 1.000000e+00 : f32
    %136 = vector.broadcast %cst_52 : f32 to vector<8x128xf32>
    %137 = arith.addf %136, %135 : vector<8x128xf32>
    %138 = arith.divf %136, %137 : vector<8x128xf32>
    %139 = vector.extract_strided_slice %101 {offsets = [0, 256], sizes = [8, 128], strides = [1, 1]} : vector<8x512xf32> to vector<8x128xf32>
    %140 = math.tanh %139 : vector<8x128xf32>
    %141 = vector.extract_strided_slice %101 {offsets = [0, 384], sizes = [8, 128], strides = [1, 1]} : vector<8x512xf32> to vector<8x128xf32>
    %142 = arith.negf %141 : vector<8x128xf32>
    %143 = math.exp %142 : vector<8x128xf32>
    %cst_53 = arith.constant 1.000000e+00 : f32
    %144 = vector.broadcast %cst_53 : f32 to vector<8x128xf32>
    %145 = arith.addf %144, %143 : vector<8x128xf32>
    %146 = arith.divf %144, %145 : vector<8x128xf32>
    %147 = arith.mulf %138, %80 : vector<8x128xf32>
    %148 = arith.mulf %132, %140 : vector<8x128xf32>
    %149 = arith.addf %147, %148 : vector<8x128xf32>
    %150 = math.tanh %149 : vector<8x128xf32>
    %151 = arith.mulf %146, %150 : vector<8x128xf32>
    %152 = arith.index_cast %88 : i32 to index
    %c0_54 = arith.constant 0 : index
    %153 = vector.load %arg13[%152, %c0_54] : memref<64x128xf32, #tpu.memory_space<vmem>>, vector<8x128xf32>
    tpu.vector_store %arg13[%152, %c0_54], %126 {strides = array<i32>} : memref<64x128xf32, #tpu.memory_space<vmem>>, vector<8x128xf32>,
    %154 = arith.index_cast %91 : i32 to index
    %c0_55 = arith.constant 0 : index
    %155 = vector.load %arg14[%154, %c0_55] : memref<64x128xf32, #tpu.memory_space<vmem>>, vector<8x128xf32>
    tpu.vector_store %arg14[%154, %c0_55], %151 {strides = array<i32>} : memref<64x128xf32, #tpu.memory_space<vmem>>, vector<8x128xf32>,
    %c2_i32 = arith.constant 2 : i32
    %c8_i32_56 = arith.constant 8 : i32
    %156 = arith.muli %c2_i32, %c8_i32_56 : i32
    %157 = tpu.assume_multiple %156, 8 : i32
    %c7_i32_57 = arith.constant 7 : i32
    %158 = arith.subi %c7_i32_57, %c2_i32 : i32
    %c8_i32_58 = arith.constant 8 : i32
    %159 = arith.muli %158, %c8_i32_58 : i32
    %160 = tpu.assume_multiple %159, 8 : i32
    %c0_59 = arith.constant 0 : index
    %c0_60 = arith.constant 0 : index
    %161 = vector.load %arg3[%c0_59, %c0_60] : memref<128x512xf32, #tpu.memory_space<vmem>>, vector<128x512xf32>
    %cst_61 = arith.constant dense<0.000000e+00> : vector<8x512xf32>
    %162 = tpu.matmul %126, %161, %cst_61 {dimension_numbers = #tpu.dot_dimension_numbers<[1], [0], [0], [1], [0, 0, 1, 1], [], []>} : vector<8x128xf32>, vector<128x512xf32>, vector<8x512xf32> -> vector<8x512xf32>
    %c0_62 = arith.constant 0 : index
    %c0_63 = arith.constant 0 : index
    %163 = vector.load %arg4[%c0_62, %c0_63] : memref<128x512xf32, #tpu.memory_space<vmem>>, vector<128x512xf32>
    %cst_64 = arith.constant dense<0.000000e+00> : vector<8x512xf32>
    %164 = tpu.matmul %151, %163, %cst_64 {dimension_numbers = #tpu.dot_dimension_numbers<[1], [0], [0], [1], [0, 0, 1, 1], [], []>} : vector<8x128xf32>, vector<128x512xf32>, vector<8x512xf32> -> vector<8x512xf32>
    %165 = arith.index_cast %157 : i32 to index
    %c0_65 = arith.constant 0 : index
    %166 = vector.load %arg11[%165, %c0_65] : memref<64x512xf32, #tpu.memory_space<vmem>>, vector<8x512xf32>
    %167 = arith.addf %162, %166 : vector<8x512xf32>
    %168 = arith.index_cast %160 : i32 to index
    %c0_66 = arith.constant 0 : index
    %169 = vector.load %arg12[%168, %c0_66] : memref<64x512xf32, #tpu.memory_space<vmem>>, vector<8x512xf32>
    %170 = arith.addf %164, %169 : vector<8x512xf32>
    %171 = vector.extract_strided_slice %167 {offsets = [0, 0], sizes = [8, 128], strides = [1, 1]} : vector<8x512xf32> to vector<8x128xf32>
    %172 = arith.negf %171 : vector<8x128xf32>
    %173 = math.exp %172 : vector<8x128xf32>
    %cst_67 = arith.constant 1.000000e+00 : f32
    %174 = vector.broadcast %cst_67 : f32 to vector<8x128xf32>
    %175 = arith.addf %174, %173 : vector<8x128xf32>
    %176 = arith.divf %174, %175 : vector<8x128xf32>
    %177 = vector.extract_strided_slice %167 {offsets = [0, 128], sizes = [8, 128], strides = [1, 1]} : vector<8x512xf32> to vector<8x128xf32>
    %178 = arith.negf %177 : vector<8x128xf32>
    %179 = math.exp %178 : vector<8x128xf32>
    %cst_68 = arith.constant 1.000000e+00 : f32
    %180 = vector.broadcast %cst_68 : f32 to vector<8x128xf32>
    %181 = arith.addf %180, %179 : vector<8x128xf32>
    %182 = arith.divf %180, %181 : vector<8x128xf32>
    %183 = vector.extract_strided_slice %167 {offsets = [0, 256], sizes = [8, 128], strides = [1, 1]} : vector<8x512xf32> to vector<8x128xf32>
    %184 = math.tanh %183 : vector<8x128xf32>
    %185 = vector.extract_strided_slice %167 {offsets = [0, 384], sizes = [8, 128], strides = [1, 1]} : vector<8x512xf32> to vector<8x128xf32>
    %186 = arith.negf %185 : vector<8x128xf32>
    %187 = math.exp %186 : vector<8x128xf32>
    %cst_69 = arith.constant 1.000000e+00 : f32
    %188 = vector.broadcast %cst_69 : f32 to vector<8x128xf32>
    %189 = arith.addf %188, %187 : vector<8x128xf32>
    %190 = arith.divf %188, %189 : vector<8x128xf32>
    %191 = arith.mulf %182, %124 : vector<8x128xf32>
    %192 = arith.mulf %176, %184 : vector<8x128xf32>
    %193 = arith.addf %191, %192 : vector<8x128xf32>
    %194 = math.tanh %193 : vector<8x128xf32>
    %195 = arith.mulf %190, %194 : vector<8x128xf32>
    %196 = vector.extract_strided_slice %170 {offsets = [0, 0], sizes = [8, 128], strides = [1, 1]} : vector<8x512xf32> to vector<8x128xf32>
    %197 = arith.negf %196 : vector<8x128xf32>
    %198 = math.exp %197 : vector<8x128xf32>
    %cst_70 = arith.constant 1.000000e+00 : f32
    %199 = vector.broadcast %cst_70 : f32 to vector<8x128xf32>
    %200 = arith.addf %199, %198 : vector<8x128xf32>
    %201 = arith.divf %199, %200 : vector<8x128xf32>
    %202 = vector.extract_strided_slice %170 {offsets = [0, 128], sizes = [8, 128], strides = [1, 1]} : vector<8x512xf32> to vector<8x128xf32>
    %203 = arith.negf %202 : vector<8x128xf32>
    %204 = math.exp %203 : vector<8x128xf32>
    %cst_71 = arith.constant 1.000000e+00 : f32
    %205 = vector.broadcast %cst_71 : f32 to vector<8x128xf32>
    %206 = arith.addf %205, %204 : vector<8x128xf32>
    %207 = arith.divf %205, %206 : vector<8x128xf32>
    %208 = vector.extract_strided_slice %170 {offsets = [0, 256], sizes = [8, 128], strides = [1, 1]} : vector<8x512xf32> to vector<8x128xf32>
    %209 = math.tanh %208 : vector<8x128xf32>
    %210 = vector.extract_strided_slice %170 {offsets = [0, 384], sizes = [8, 128], strides = [1, 1]} : vector<8x512xf32> to vector<8x128xf32>
    %211 = arith.negf %210 : vector<8x128xf32>
    %212 = math.exp %211 : vector<8x128xf32>
    %cst_72 = arith.constant 1.000000e+00 : f32
    %213 = vector.broadcast %cst_72 : f32 to vector<8x128xf32>
    %214 = arith.addf %213, %212 : vector<8x128xf32>
    %215 = arith.divf %213, %214 : vector<8x128xf32>
    %216 = arith.mulf %207, %149 : vector<8x128xf32>
    %217 = arith.mulf %201, %209 : vector<8x128xf32>
    %218 = arith.addf %216, %217 : vector<8x128xf32>
    %219 = math.tanh %218 : vector<8x128xf32>
    %220 = arith.mulf %215, %219 : vector<8x128xf32>
    %221 = arith.index_cast %157 : i32 to index
    %c0_73 = arith.constant 0 : index
    %222 = vector.load %arg13[%221, %c0_73] : memref<64x128xf32, #tpu.memory_space<vmem>>, vector<8x128xf32>
    tpu.vector_store %arg13[%221, %c0_73], %195 {strides = array<i32>} : memref<64x128xf32, #tpu.memory_space<vmem>>, vector<8x128xf32>,
    %223 = arith.index_cast %160 : i32 to index
    %c0_74 = arith.constant 0 : index
    %224 = vector.load %arg14[%223, %c0_74] : memref<64x128xf32, #tpu.memory_space<vmem>>, vector<8x128xf32>
    tpu.vector_store %arg14[%223, %c0_74], %220 {strides = array<i32>} : memref<64x128xf32, #tpu.memory_space<vmem>>, vector<8x128xf32>,
    %c3_i32 = arith.constant 3 : i32
    %c8_i32_75 = arith.constant 8 : i32
    %225 = arith.muli %c3_i32, %c8_i32_75 : i32
    %226 = tpu.assume_multiple %225, 8 : i32
    %c7_i32_76 = arith.constant 7 : i32
    %227 = arith.subi %c7_i32_76, %c3_i32 : i32
    %c8_i32_77 = arith.constant 8 : i32
    %228 = arith.muli %227, %c8_i32_77 : i32
    %229 = tpu.assume_multiple %228, 8 : i32
    %c0_78 = arith.constant 0 : index
    %c0_79 = arith.constant 0 : index
    %230 = vector.load %arg3[%c0_78, %c0_79] : memref<128x512xf32, #tpu.memory_space<vmem>>, vector<128x512xf32>
    %cst_80 = arith.constant dense<0.000000e+00> : vector<8x512xf32>
    %231 = tpu.matmul %195, %230, %cst_80 {dimension_numbers = #tpu.dot_dimension_numbers<[1], [0], [0], [1], [0, 0, 1, 1], [], []>} : vector<8x128xf32>, vector<128x512xf32>, vector<8x512xf32> -> vector<8x512xf32>
    %c0_81 = arith.constant 0 : index
    %c0_82 = arith.constant 0 : index
    %232 = vector.load %arg4[%c0_81, %c0_82] : memref<128x512xf32, #tpu.memory_space<vmem>>, vector<128x512xf32>
    %cst_83 = arith.constant dense<0.000000e+00> : vector<8x512xf32>
    %233 = tpu.matmul %220, %232, %cst_83 {dimension_numbers = #tpu.dot_dimension_numbers<[1], [0], [0], [1], [0, 0, 1, 1], [], []>} : vector<8x128xf32>, vector<128x512xf32>, vector<8x512xf32> -> vector<8x512xf32>
    %234 = arith.index_cast %226 : i32 to index
    %c0_84 = arith.constant 0 : index
    %235 = vector.load %arg11[%234, %c0_84] : memref<64x512xf32, #tpu.memory_space<vmem>>, vector<8x512xf32>
    %236 = arith.addf %231, %235 : vector<8x512xf32>
    %237 = arith.index_cast %229 : i32 to index
    %c0_85 = arith.constant 0 : index
    %238 = vector.load %arg12[%237, %c0_85] : memref<64x512xf32, #tpu.memory_space<vmem>>, vector<8x512xf32>
    %239 = arith.addf %233, %238 : vector<8x512xf32>
    %240 = vector.extract_strided_slice %236 {offsets = [0, 0], sizes = [8, 128], strides = [1, 1]} : vector<8x512xf32> to vector<8x128xf32>
    %241 = arith.negf %240 : vector<8x128xf32>
    %242 = math.exp %241 : vector<8x128xf32>
    %cst_86 = arith.constant 1.000000e+00 : f32
    %243 = vector.broadcast %cst_86 : f32 to vector<8x128xf32>
    %244 = arith.addf %243, %242 : vector<8x128xf32>
    %245 = arith.divf %243, %244 : vector<8x128xf32>
    %246 = vector.extract_strided_slice %236 {offsets = [0, 128], sizes = [8, 128], strides = [1, 1]} : vector<8x512xf32> to vector<8x128xf32>
    %247 = arith.negf %246 : vector<8x128xf32>
    %248 = math.exp %247 : vector<8x128xf32>
    %cst_87 = arith.constant 1.000000e+00 : f32
    %249 = vector.broadcast %cst_87 : f32 to vector<8x128xf32>
    %250 = arith.addf %249, %248 : vector<8x128xf32>
    %251 = arith.divf %249, %250 : vector<8x128xf32>
    %252 = vector.extract_strided_slice %236 {offsets = [0, 256], sizes = [8, 128], strides = [1, 1]} : vector<8x512xf32> to vector<8x128xf32>
    %253 = math.tanh %252 : vector<8x128xf32>
    %254 = vector.extract_strided_slice %236 {offsets = [0, 384], sizes = [8, 128], strides = [1, 1]} : vector<8x512xf32> to vector<8x128xf32>
    %255 = arith.negf %254 : vector<8x128xf32>
    %256 = math.exp %255 : vector<8x128xf32>
    %cst_88 = arith.constant 1.000000e+00 : f32
    %257 = vector.broadcast %cst_88 : f32 to vector<8x128xf32>
    %258 = arith.addf %257, %256 : vector<8x128xf32>
    %259 = arith.divf %257, %258 : vector<8x128xf32>
    %260 = arith.mulf %251, %193 : vector<8x128xf32>
    %261 = arith.mulf %245, %253 : vector<8x128xf32>
    %262 = arith.addf %260, %261 : vector<8x128xf32>
    %263 = math.tanh %262 : vector<8x128xf32>
    %264 = arith.mulf %259, %263 : vector<8x128xf32>
    %265 = vector.extract_strided_slice %239 {offsets = [0, 0], sizes = [8, 128], strides = [1, 1]} : vector<8x512xf32> to vector<8x128xf32>
    %266 = arith.negf %265 : vector<8x128xf32>
    %267 = math.exp %266 : vector<8x128xf32>
    %cst_89 = arith.constant 1.000000e+00 : f32
    %268 = vector.broadcast %cst_89 : f32 to vector<8x128xf32>
    %269 = arith.addf %268, %267 : vector<8x128xf32>
    %270 = arith.divf %268, %269 : vector<8x128xf32>
    %271 = vector.extract_strided_slice %239 {offsets = [0, 128], sizes = [8, 128], strides = [1, 1]} : vector<8x512xf32> to vector<8x128xf32>
    %272 = arith.negf %271 : vector<8x128xf32>
    %273 = math.exp %272 : vector<8x128xf32>
    %cst_90 = arith.constant 1.000000e+00 : f32
    %274 = vector.broadcast %cst_90 : f32 to vector<8x128xf32>
    %275 = arith.addf %274, %273 : vector<8x128xf32>
    %276 = arith.divf %274, %275 : vector<8x128xf32>
    %277 = vector.extract_strided_slice %239 {offsets = [0, 256], sizes = [8, 128], strides = [1, 1]} : vector<8x512xf32> to vector<8x128xf32>
    %278 = math.tanh %277 : vector<8x128xf32>
    %279 = vector.extract_strided_slice %239 {offsets = [0, 384], sizes = [8, 128], strides = [1, 1]} : vector<8x512xf32> to vector<8x128xf32>
    %280 = arith.negf %279 : vector<8x128xf32>
    %281 = math.exp %280 : vector<8x128xf32>
    %cst_91 = arith.constant 1.000000e+00 : f32
    %282 = vector.broadcast %cst_91 : f32 to vector<8x128xf32>
    %283 = arith.addf %282, %281 : vector<8x128xf32>
    %284 = arith.divf %282, %283 : vector<8x128xf32>
    %285 = arith.mulf %276, %218 : vector<8x128xf32>
    %286 = arith.mulf %270, %278 : vector<8x128xf32>
    %287 = arith.addf %285, %286 : vector<8x128xf32>
    %288 = math.tanh %287 : vector<8x128xf32>
    %289 = arith.mulf %284, %288 : vector<8x128xf32>
    %290 = arith.index_cast %226 : i32 to index
    %c0_92 = arith.constant 0 : index
    %291 = vector.load %arg13[%290, %c0_92] : memref<64x128xf32, #tpu.memory_space<vmem>>, vector<8x128xf32>
    tpu.vector_store %arg13[%290, %c0_92], %264 {strides = array<i32>} : memref<64x128xf32, #tpu.memory_space<vmem>>, vector<8x128xf32>,
    %292 = arith.index_cast %229 : i32 to index
    %c0_93 = arith.constant 0 : index
    %293 = vector.load %arg14[%292, %c0_93] : memref<64x128xf32, #tpu.memory_space<vmem>>, vector<8x128xf32>
    tpu.vector_store %arg14[%292, %c0_93], %289 {strides = array<i32>} : memref<64x128xf32, #tpu.memory_space<vmem>>, vector<8x128xf32>,
    %c4_i32 = arith.constant 4 : i32
    %c8_i32_94 = arith.constant 8 : i32
    %294 = arith.muli %c4_i32, %c8_i32_94 : i32
    %295 = tpu.assume_multiple %294, 8 : i32
    %c7_i32_95 = arith.constant 7 : i32
    %296 = arith.subi %c7_i32_95, %c4_i32 : i32
    %c8_i32_96 = arith.constant 8 : i32
    %297 = arith.muli %296, %c8_i32_96 : i32
    %298 = tpu.assume_multiple %297, 8 : i32
    %c0_97 = arith.constant 0 : index
    %c0_98 = arith.constant 0 : index
    %299 = vector.load %arg3[%c0_97, %c0_98] : memref<128x512xf32, #tpu.memory_space<vmem>>, vector<128x512xf32>
    %cst_99 = arith.constant dense<0.000000e+00> : vector<8x512xf32>
    %300 = tpu.matmul %264, %299, %cst_99 {dimension_numbers = #tpu.dot_dimension_numbers<[1], [0], [0], [1], [0, 0, 1, 1], [], []>} : vector<8x128xf32>, vector<128x512xf32>, vector<8x512xf32> -> vector<8x512xf32>
    %c0_100 = arith.constant 0 : index
    %c0_101 = arith.constant 0 : index
    %301 = vector.load %arg4[%c0_100, %c0_101] : memref<128x512xf32, #tpu.memory_space<vmem>>, vector<128x512xf32>
    %cst_102 = arith.constant dense<0.000000e+00> : vector<8x512xf32>
    %302 = tpu.matmul %289, %301, %cst_102 {dimension_numbers = #tpu.dot_dimension_numbers<[1], [0], [0], [1], [0, 0, 1, 1], [], []>} : vector<8x128xf32>, vector<128x512xf32>, vector<8x512xf32> -> vector<8x512xf32>
    %303 = arith.index_cast %295 : i32 to index
    %c0_103 = arith.constant 0 : index
    %304 = vector.load %arg11[%303, %c0_103] : memref<64x512xf32, #tpu.memory_space<vmem>>, vector<8x512xf32>
    %305 = arith.addf %300, %304 : vector<8x512xf32>
    %306 = arith.index_cast %298 : i32 to index
    %c0_104 = arith.constant 0 : index
    %307 = vector.load %arg12[%306, %c0_104] : memref<64x512xf32, #tpu.memory_space<vmem>>, vector<8x512xf32>
    %308 = arith.addf %302, %307 : vector<8x512xf32>
    %309 = vector.extract_strided_slice %305 {offsets = [0, 0], sizes = [8, 128], strides = [1, 1]} : vector<8x512xf32> to vector<8x128xf32>
    %310 = arith.negf %309 : vector<8x128xf32>
    %311 = math.exp %310 : vector<8x128xf32>
    %cst_105 = arith.constant 1.000000e+00 : f32
    %312 = vector.broadcast %cst_105 : f32 to vector<8x128xf32>
    %313 = arith.addf %312, %311 : vector<8x128xf32>
    %314 = arith.divf %312, %313 : vector<8x128xf32>
    %315 = vector.extract_strided_slice %305 {offsets = [0, 128], sizes = [8, 128], strides = [1, 1]} : vector<8x512xf32> to vector<8x128xf32>
    %316 = arith.negf %315 : vector<8x128xf32>
    %317 = math.exp %316 : vector<8x128xf32>
    %cst_106 = arith.constant 1.000000e+00 : f32
    %318 = vector.broadcast %cst_106 : f32 to vector<8x128xf32>
    %319 = arith.addf %318, %317 : vector<8x128xf32>
    %320 = arith.divf %318, %319 : vector<8x128xf32>
    %321 = vector.extract_strided_slice %305 {offsets = [0, 256], sizes = [8, 128], strides = [1, 1]} : vector<8x512xf32> to vector<8x128xf32>
    %322 = math.tanh %321 : vector<8x128xf32>
    %323 = vector.extract_strided_slice %305 {offsets = [0, 384], sizes = [8, 128], strides = [1, 1]} : vector<8x512xf32> to vector<8x128xf32>
    %324 = arith.negf %323 : vector<8x128xf32>
    %325 = math.exp %324 : vector<8x128xf32>
    %cst_107 = arith.constant 1.000000e+00 : f32
    %326 = vector.broadcast %cst_107 : f32 to vector<8x128xf32>
    %327 = arith.addf %326, %325 : vector<8x128xf32>
    %328 = arith.divf %326, %327 : vector<8x128xf32>
    %329 = arith.mulf %320, %262 : vector<8x128xf32>
    %330 = arith.mulf %314, %322 : vector<8x128xf32>
    %331 = arith.addf %329, %330 : vector<8x128xf32>
    %332 = math.tanh %331 : vector<8x128xf32>
    %333 = arith.mulf %328, %332 : vector<8x128xf32>
    %334 = vector.extract_strided_slice %308 {offsets = [0, 0], sizes = [8, 128], strides = [1, 1]} : vector<8x512xf32> to vector<8x128xf32>
    %335 = arith.negf %334 : vector<8x128xf32>
    %336 = math.exp %335 : vector<8x128xf32>
    %cst_108 = arith.constant 1.000000e+00 : f32
    %337 = vector.broadcast %cst_108 : f32 to vector<8x128xf32>
    %338 = arith.addf %337, %336 : vector<8x128xf32>
    %339 = arith.divf %337, %338 : vector<8x128xf32>
    %340 = vector.extract_strided_slice %308 {offsets = [0, 128], sizes = [8, 128], strides = [1, 1]} : vector<8x512xf32> to vector<8x128xf32>
    %341 = arith.negf %340 : vector<8x128xf32>
    %342 = math.exp %341 : vector<8x128xf32>
    %cst_109 = arith.constant 1.000000e+00 : f32
    %343 = vector.broadcast %cst_109 : f32 to vector<8x128xf32>
    %344 = arith.addf %343, %342 : vector<8x128xf32>
    %345 = arith.divf %343, %344 : vector<8x128xf32>
    %346 = vector.extract_strided_slice %308 {offsets = [0, 256], sizes = [8, 128], strides = [1, 1]} : vector<8x512xf32> to vector<8x128xf32>
    %347 = math.tanh %346 : vector<8x128xf32>
    %348 = vector.extract_strided_slice %308 {offsets = [0, 384], sizes = [8, 128], strides = [1, 1]} : vector<8x512xf32> to vector<8x128xf32>
    %349 = arith.negf %348 : vector<8x128xf32>
    %350 = math.exp %349 : vector<8x128xf32>
    %cst_110 = arith.constant 1.000000e+00 : f32
    %351 = vector.broadcast %cst_110 : f32 to vector<8x128xf32>
    %352 = arith.addf %351, %350 : vector<8x128xf32>
    %353 = arith.divf %351, %352 : vector<8x128xf32>
    %354 = arith.mulf %345, %287 : vector<8x128xf32>
    %355 = arith.mulf %339, %347 : vector<8x128xf32>
    %356 = arith.addf %354, %355 : vector<8x128xf32>
    %357 = math.tanh %356 : vector<8x128xf32>
    %358 = arith.mulf %353, %357 : vector<8x128xf32>
    %359 = arith.index_cast %295 : i32 to index
    %c0_111 = arith.constant 0 : index
    %360 = vector.load %arg13[%359, %c0_111] : memref<64x128xf32, #tpu.memory_space<vmem>>, vector<8x128xf32>
    tpu.vector_store %arg13[%359, %c0_111], %333 {strides = array<i32>} : memref<64x128xf32, #tpu.memory_space<vmem>>, vector<8x128xf32>,
    %361 = arith.index_cast %298 : i32 to index
    %c0_112 = arith.constant 0 : index
    %362 = vector.load %arg14[%361, %c0_112] : memref<64x128xf32, #tpu.memory_space<vmem>>, vector<8x128xf32>
    tpu.vector_store %arg14[%361, %c0_112], %358 {strides = array<i32>} : memref<64x128xf32, #tpu.memory_space<vmem>>, vector<8x128xf32>,
    %c5_i32 = arith.constant 5 : i32
    %c8_i32_113 = arith.constant 8 : i32
    %363 = arith.muli %c5_i32, %c8_i32_113 : i32
    %364 = tpu.assume_multiple %363, 8 : i32
    %c7_i32_114 = arith.constant 7 : i32
    %365 = arith.subi %c7_i32_114, %c5_i32 : i32
    %c8_i32_115 = arith.constant 8 : i32
    %366 = arith.muli %365, %c8_i32_115 : i32
    %367 = tpu.assume_multiple %366, 8 : i32
    %c0_116 = arith.constant 0 : index
    %c0_117 = arith.constant 0 : index
    %368 = vector.load %arg3[%c0_116, %c0_117] : memref<128x512xf32, #tpu.memory_space<vmem>>, vector<128x512xf32>
    %cst_118 = arith.constant dense<0.000000e+00> : vector<8x512xf32>
    %369 = tpu.matmul %333, %368, %cst_118 {dimension_numbers = #tpu.dot_dimension_numbers<[1], [0], [0], [1], [0, 0, 1, 1], [], []>} : vector<8x128xf32>, vector<128x512xf32>, vector<8x512xf32> -> vector<8x512xf32>
    %c0_119 = arith.constant 0 : index
    %c0_120 = arith.constant 0 : index
    %370 = vector.load %arg4[%c0_119, %c0_120] : memref<128x512xf32, #tpu.memory_space<vmem>>, vector<128x512xf32>
    %cst_121 = arith.constant dense<0.000000e+00> : vector<8x512xf32>
    %371 = tpu.matmul %358, %370, %cst_121 {dimension_numbers = #tpu.dot_dimension_numbers<[1], [0], [0], [1], [0, 0, 1, 1], [], []>} : vector<8x128xf32>, vector<128x512xf32>, vector<8x512xf32> -> vector<8x512xf32>
    %372 = arith.index_cast %364 : i32 to index
    %c0_122 = arith.constant 0 : index
    %373 = vector.load %arg11[%372, %c0_122] : memref<64x512xf32, #tpu.memory_space<vmem>>, vector<8x512xf32>
    %374 = arith.addf %369, %373 : vector<8x512xf32>
    %375 = arith.index_cast %367 : i32 to index
    %c0_123 = arith.constant 0 : index
    %376 = vector.load %arg12[%375, %c0_123] : memref<64x512xf32, #tpu.memory_space<vmem>>, vector<8x512xf32>
    %377 = arith.addf %371, %376 : vector<8x512xf32>
    %378 = vector.extract_strided_slice %374 {offsets = [0, 0], sizes = [8, 128], strides = [1, 1]} : vector<8x512xf32> to vector<8x128xf32>
    %379 = arith.negf %378 : vector<8x128xf32>
    %380 = math.exp %379 : vector<8x128xf32>
    %cst_124 = arith.constant 1.000000e+00 : f32
    %381 = vector.broadcast %cst_124 : f32 to vector<8x128xf32>
    %382 = arith.addf %381, %380 : vector<8x128xf32>
    %383 = arith.divf %381, %382 : vector<8x128xf32>
    %384 = vector.extract_strided_slice %374 {offsets = [0, 128], sizes = [8, 128], strides = [1, 1]} : vector<8x512xf32> to vector<8x128xf32>
    %385 = arith.negf %384 : vector<8x128xf32>
    %386 = math.exp %385 : vector<8x128xf32>
    %cst_125 = arith.constant 1.000000e+00 : f32
    %387 = vector.broadcast %cst_125 : f32 to vector<8x128xf32>
    %388 = arith.addf %387, %386 : vector<8x128xf32>
    %389 = arith.divf %387, %388 : vector<8x128xf32>
    %390 = vector.extract_strided_slice %374 {offsets = [0, 256], sizes = [8, 128], strides = [1, 1]} : vector<8x512xf32> to vector<8x128xf32>
    %391 = math.tanh %390 : vector<8x128xf32>
    %392 = vector.extract_strided_slice %374 {offsets = [0, 384], sizes = [8, 128], strides = [1, 1]} : vector<8x512xf32> to vector<8x128xf32>
    %393 = arith.negf %392 : vector<8x128xf32>
    %394 = math.exp %393 : vector<8x128xf32>
    %cst_126 = arith.constant 1.000000e+00 : f32
    %395 = vector.broadcast %cst_126 : f32 to vector<8x128xf32>
    %396 = arith.addf %395, %394 : vector<8x128xf32>
    %397 = arith.divf %395, %396 : vector<8x128xf32>
    %398 = arith.mulf %389, %331 : vector<8x128xf32>
    %399 = arith.mulf %383, %391 : vector<8x128xf32>
    %400 = arith.addf %398, %399 : vector<8x128xf32>
    %401 = math.tanh %400 : vector<8x128xf32>
    %402 = arith.mulf %397, %401 : vector<8x128xf32>
    %403 = vector.extract_strided_slice %377 {offsets = [0, 0], sizes = [8, 128], strides = [1, 1]} : vector<8x512xf32> to vector<8x128xf32>
    %404 = arith.negf %403 : vector<8x128xf32>
    %405 = math.exp %404 : vector<8x128xf32>
    %cst_127 = arith.constant 1.000000e+00 : f32
    %406 = vector.broadcast %cst_127 : f32 to vector<8x128xf32>
    %407 = arith.addf %406, %405 : vector<8x128xf32>
    %408 = arith.divf %406, %407 : vector<8x128xf32>
    %409 = vector.extract_strided_slice %377 {offsets = [0, 128], sizes = [8, 128], strides = [1, 1]} : vector<8x512xf32> to vector<8x128xf32>
    %410 = arith.negf %409 : vector<8x128xf32>
    %411 = math.exp %410 : vector<8x128xf32>
    %cst_128 = arith.constant 1.000000e+00 : f32
    %412 = vector.broadcast %cst_128 : f32 to vector<8x128xf32>
    %413 = arith.addf %412, %411 : vector<8x128xf32>
    %414 = arith.divf %412, %413 : vector<8x128xf32>
    %415 = vector.extract_strided_slice %377 {offsets = [0, 256], sizes = [8, 128], strides = [1, 1]} : vector<8x512xf32> to vector<8x128xf32>
    %416 = math.tanh %415 : vector<8x128xf32>
    %417 = vector.extract_strided_slice %377 {offsets = [0, 384], sizes = [8, 128], strides = [1, 1]} : vector<8x512xf32> to vector<8x128xf32>
    %418 = arith.negf %417 : vector<8x128xf32>
    %419 = math.exp %418 : vector<8x128xf32>
    %cst_129 = arith.constant 1.000000e+00 : f32
    %420 = vector.broadcast %cst_129 : f32 to vector<8x128xf32>
    %421 = arith.addf %420, %419 : vector<8x128xf32>
    %422 = arith.divf %420, %421 : vector<8x128xf32>
    %423 = arith.mulf %414, %356 : vector<8x128xf32>
    %424 = arith.mulf %408, %416 : vector<8x128xf32>
    %425 = arith.addf %423, %424 : vector<8x128xf32>
    %426 = math.tanh %425 : vector<8x128xf32>
    %427 = arith.mulf %422, %426 : vector<8x128xf32>
    %428 = arith.index_cast %364 : i32 to index
    %c0_130 = arith.constant 0 : index
    %429 = vector.load %arg13[%428, %c0_130] : memref<64x128xf32, #tpu.memory_space<vmem>>, vector<8x128xf32>
    tpu.vector_store %arg13[%428, %c0_130], %402 {strides = array<i32>} : memref<64x128xf32, #tpu.memory_space<vmem>>, vector<8x128xf32>,
    %430 = arith.index_cast %367 : i32 to index
    %c0_131 = arith.constant 0 : index
    %431 = vector.load %arg14[%430, %c0_131] : memref<64x128xf32, #tpu.memory_space<vmem>>, vector<8x128xf32>
    tpu.vector_store %arg14[%430, %c0_131], %427 {strides = array<i32>} : memref<64x128xf32, #tpu.memory_space<vmem>>, vector<8x128xf32>,
    %c6_i32 = arith.constant 6 : i32
    %c8_i32_132 = arith.constant 8 : i32
    %432 = arith.muli %c6_i32, %c8_i32_132 : i32
    %433 = tpu.assume_multiple %432, 8 : i32
    %c7_i32_133 = arith.constant 7 : i32
    %434 = arith.subi %c7_i32_133, %c6_i32 : i32
    %c8_i32_134 = arith.constant 8 : i32
    %435 = arith.muli %434, %c8_i32_134 : i32
    %436 = tpu.assume_multiple %435, 8 : i32
    %c0_135 = arith.constant 0 : index
    %c0_136 = arith.constant 0 : index
    %437 = vector.load %arg3[%c0_135, %c0_136] : memref<128x512xf32, #tpu.memory_space<vmem>>, vector<128x512xf32>
    %cst_137 = arith.constant dense<0.000000e+00> : vector<8x512xf32>
    %438 = tpu.matmul %402, %437, %cst_137 {dimension_numbers = #tpu.dot_dimension_numbers<[1], [0], [0], [1], [0, 0, 1, 1], [], []>} : vector<8x128xf32>, vector<128x512xf32>, vector<8x512xf32> -> vector<8x512xf32>
    %c0_138 = arith.constant 0 : index
    %c0_139 = arith.constant 0 : index
    %439 = vector.load %arg4[%c0_138, %c0_139] : memref<128x512xf32, #tpu.memory_space<vmem>>, vector<128x512xf32>
    %cst_140 = arith.constant dense<0.000000e+00> : vector<8x512xf32>
    %440 = tpu.matmul %427, %439, %cst_140 {dimension_numbers = #tpu.dot_dimension_numbers<[1], [0], [0], [1], [0, 0, 1, 1], [], []>} : vector<8x128xf32>, vector<128x512xf32>, vector<8x512xf32> -> vector<8x512xf32>
    %441 = arith.index_cast %433 : i32 to index
    %c0_141 = arith.constant 0 : index
    %442 = vector.load %arg11[%441, %c0_141] : memref<64x512xf32, #tpu.memory_space<vmem>>, vector<8x512xf32>
    %443 = arith.addf %438, %442 : vector<8x512xf32>
    %444 = arith.index_cast %436 : i32 to index
    %c0_142 = arith.constant 0 : index
    %445 = vector.load %arg12[%444, %c0_142] : memref<64x512xf32, #tpu.memory_space<vmem>>, vector<8x512xf32>
    %446 = arith.addf %440, %445 : vector<8x512xf32>
    %447 = vector.extract_strided_slice %443 {offsets = [0, 0], sizes = [8, 128], strides = [1, 1]} : vector<8x512xf32> to vector<8x128xf32>
    %448 = arith.negf %447 : vector<8x128xf32>
    %449 = math.exp %448 : vector<8x128xf32>
    %cst_143 = arith.constant 1.000000e+00 : f32
    %450 = vector.broadcast %cst_143 : f32 to vector<8x128xf32>
    %451 = arith.addf %450, %449 : vector<8x128xf32>
    %452 = arith.divf %450, %451 : vector<8x128xf32>
    %453 = vector.extract_strided_slice %443 {offsets = [0, 128], sizes = [8, 128], strides = [1, 1]} : vector<8x512xf32> to vector<8x128xf32>
    %454 = arith.negf %453 : vector<8x128xf32>
    %455 = math.exp %454 : vector<8x128xf32>
    %cst_144 = arith.constant 1.000000e+00 : f32
    %456 = vector.broadcast %cst_144 : f32 to vector<8x128xf32>
    %457 = arith.addf %456, %455 : vector<8x128xf32>
    %458 = arith.divf %456, %457 : vector<8x128xf32>
    %459 = vector.extract_strided_slice %443 {offsets = [0, 256], sizes = [8, 128], strides = [1, 1]} : vector<8x512xf32> to vector<8x128xf32>
    %460 = math.tanh %459 : vector<8x128xf32>
    %461 = vector.extract_strided_slice %443 {offsets = [0, 384], sizes = [8, 128], strides = [1, 1]} : vector<8x512xf32> to vector<8x128xf32>
    %462 = arith.negf %461 : vector<8x128xf32>
    %463 = math.exp %462 : vector<8x128xf32>
    %cst_145 = arith.constant 1.000000e+00 : f32
    %464 = vector.broadcast %cst_145 : f32 to vector<8x128xf32>
    %465 = arith.addf %464, %463 : vector<8x128xf32>
    %466 = arith.divf %464, %465 : vector<8x128xf32>
    %467 = arith.mulf %458, %400 : vector<8x128xf32>
    %468 = arith.mulf %452, %460 : vector<8x128xf32>
    %469 = arith.addf %467, %468 : vector<8x128xf32>
    %470 = math.tanh %469 : vector<8x128xf32>
    %471 = arith.mulf %466, %470 : vector<8x128xf32>
    %472 = vector.extract_strided_slice %446 {offsets = [0, 0], sizes = [8, 128], strides = [1, 1]} : vector<8x512xf32> to vector<8x128xf32>
    %473 = arith.negf %472 : vector<8x128xf32>
    %474 = math.exp %473 : vector<8x128xf32>
    %cst_146 = arith.constant 1.000000e+00 : f32
    %475 = vector.broadcast %cst_146 : f32 to vector<8x128xf32>
    %476 = arith.addf %475, %474 : vector<8x128xf32>
    %477 = arith.divf %475, %476 : vector<8x128xf32>
    %478 = vector.extract_strided_slice %446 {offsets = [0, 128], sizes = [8, 128], strides = [1, 1]} : vector<8x512xf32> to vector<8x128xf32>
    %479 = arith.negf %478 : vector<8x128xf32>
    %480 = math.exp %479 : vector<8x128xf32>
    %cst_147 = arith.constant 1.000000e+00 : f32
    %481 = vector.broadcast %cst_147 : f32 to vector<8x128xf32>
    %482 = arith.addf %481, %480 : vector<8x128xf32>
    %483 = arith.divf %481, %482 : vector<8x128xf32>
    %484 = vector.extract_strided_slice %446 {offsets = [0, 256], sizes = [8, 128], strides = [1, 1]} : vector<8x512xf32> to vector<8x128xf32>
    %485 = math.tanh %484 : vector<8x128xf32>
    %486 = vector.extract_strided_slice %446 {offsets = [0, 384], sizes = [8, 128], strides = [1, 1]} : vector<8x512xf32> to vector<8x128xf32>
    %487 = arith.negf %486 : vector<8x128xf32>
    %488 = math.exp %487 : vector<8x128xf32>
    %cst_148 = arith.constant 1.000000e+00 : f32
    %489 = vector.broadcast %cst_148 : f32 to vector<8x128xf32>
    %490 = arith.addf %489, %488 : vector<8x128xf32>
    %491 = arith.divf %489, %490 : vector<8x128xf32>
    %492 = arith.mulf %483, %425 : vector<8x128xf32>
    %493 = arith.mulf %477, %485 : vector<8x128xf32>
    %494 = arith.addf %492, %493 : vector<8x128xf32>
    %495 = math.tanh %494 : vector<8x128xf32>
    %496 = arith.mulf %491, %495 : vector<8x128xf32>
    %497 = arith.index_cast %433 : i32 to index
    %c0_149 = arith.constant 0 : index
    %498 = vector.load %arg13[%497, %c0_149] : memref<64x128xf32, #tpu.memory_space<vmem>>, vector<8x128xf32>
    tpu.vector_store %arg13[%497, %c0_149], %471 {strides = array<i32>} : memref<64x128xf32, #tpu.memory_space<vmem>>, vector<8x128xf32>,
    %499 = arith.index_cast %436 : i32 to index
    %c0_150 = arith.constant 0 : index
    %500 = vector.load %arg14[%499, %c0_150] : memref<64x128xf32, #tpu.memory_space<vmem>>, vector<8x128xf32>
    tpu.vector_store %arg14[%499, %c0_150], %496 {strides = array<i32>} : memref<64x128xf32, #tpu.memory_space<vmem>>, vector<8x128xf32>,
    %c7_i32_151 = arith.constant 7 : i32
    %c8_i32_152 = arith.constant 8 : i32
    %501 = arith.muli %c7_i32_151, %c8_i32_152 : i32
    %502 = tpu.assume_multiple %501, 8 : i32
    %c7_i32_153 = arith.constant 7 : i32
    %503 = arith.subi %c7_i32_153, %c7_i32_151 : i32
    %c8_i32_154 = arith.constant 8 : i32
    %504 = arith.muli %503, %c8_i32_154 : i32
    %505 = tpu.assume_multiple %504, 8 : i32
    %c0_155 = arith.constant 0 : index
    %c0_156 = arith.constant 0 : index
    %506 = vector.load %arg3[%c0_155, %c0_156] : memref<128x512xf32, #tpu.memory_space<vmem>>, vector<128x512xf32>
    %cst_157 = arith.constant dense<0.000000e+00> : vector<8x512xf32>
    %507 = tpu.matmul %471, %506, %cst_157 {dimension_numbers = #tpu.dot_dimension_numbers<[1], [0], [0], [1], [0, 0, 1, 1], [], []>} : vector<8x128xf32>, vector<128x512xf32>, vector<8x512xf32> -> vector<8x512xf32>
    %c0_158 = arith.constant 0 : index
    %c0_159 = arith.constant 0 : index
    %508 = vector.load %arg4[%c0_158, %c0_159] : memref<128x512xf32, #tpu.memory_space<vmem>>, vector<128x512xf32>
    %cst_160 = arith.constant dense<0.000000e+00> : vector<8x512xf32>
    %509 = tpu.matmul %496, %508, %cst_160 {dimension_numbers = #tpu.dot_dimension_numbers<[1], [0], [0], [1], [0, 0, 1, 1], [], []>} : vector<8x128xf32>, vector<128x512xf32>, vector<8x512xf32> -> vector<8x512xf32>
    %510 = arith.index_cast %502 : i32 to index
    %c0_161 = arith.constant 0 : index
    %511 = vector.load %arg11[%510, %c0_161] : memref<64x512xf32, #tpu.memory_space<vmem>>, vector<8x512xf32>
    %512 = arith.addf %507, %511 : vector<8x512xf32>
    %513 = arith.index_cast %505 : i32 to index
    %c0_162 = arith.constant 0 : index
    %514 = vector.load %arg12[%513, %c0_162] : memref<64x512xf32, #tpu.memory_space<vmem>>, vector<8x512xf32>
    %515 = arith.addf %509, %514 : vector<8x512xf32>
    %516 = vector.extract_strided_slice %512 {offsets = [0, 0], sizes = [8, 128], strides = [1, 1]} : vector<8x512xf32> to vector<8x128xf32>
    %517 = arith.negf %516 : vector<8x128xf32>
    %518 = math.exp %517 : vector<8x128xf32>
    %cst_163 = arith.constant 1.000000e+00 : f32
    %519 = vector.broadcast %cst_163 : f32 to vector<8x128xf32>
    %520 = arith.addf %519, %518 : vector<8x128xf32>
    %521 = arith.divf %519, %520 : vector<8x128xf32>
    %522 = vector.extract_strided_slice %512 {offsets = [0, 128], sizes = [8, 128], strides = [1, 1]} : vector<8x512xf32> to vector<8x128xf32>
    %523 = arith.negf %522 : vector<8x128xf32>
    %524 = math.exp %523 : vector<8x128xf32>
    %cst_164 = arith.constant 1.000000e+00 : f32
    %525 = vector.broadcast %cst_164 : f32 to vector<8x128xf32>
    %526 = arith.addf %525, %524 : vector<8x128xf32>
    %527 = arith.divf %525, %526 : vector<8x128xf32>
    %528 = vector.extract_strided_slice %512 {offsets = [0, 256], sizes = [8, 128], strides = [1, 1]} : vector<8x512xf32> to vector<8x128xf32>
    %529 = math.tanh %528 : vector<8x128xf32>
    %530 = vector.extract_strided_slice %512 {offsets = [0, 384], sizes = [8, 128], strides = [1, 1]} : vector<8x512xf32> to vector<8x128xf32>
    %531 = arith.negf %530 : vector<8x128xf32>
    %532 = math.exp %531 : vector<8x128xf32>
    %cst_165 = arith.constant 1.000000e+00 : f32
    %533 = vector.broadcast %cst_165 : f32 to vector<8x128xf32>
    %534 = arith.addf %533, %532 : vector<8x128xf32>
    %535 = arith.divf %533, %534 : vector<8x128xf32>
    %536 = arith.mulf %527, %469 : vector<8x128xf32>
    %537 = arith.mulf %521, %529 : vector<8x128xf32>
    %538 = arith.addf %536, %537 : vector<8x128xf32>
    %539 = math.tanh %538 : vector<8x128xf32>
    %540 = arith.mulf %535, %539 : vector<8x128xf32>
    %541 = vector.extract_strided_slice %515 {offsets = [0, 0], sizes = [8, 128], strides = [1, 1]} : vector<8x512xf32> to vector<8x128xf32>
    %542 = arith.negf %541 : vector<8x128xf32>
    %543 = math.exp %542 : vector<8x128xf32>
    %cst_166 = arith.constant 1.000000e+00 : f32
    %544 = vector.broadcast %cst_166 : f32 to vector<8x128xf32>
    %545 = arith.addf %544, %543 : vector<8x128xf32>
    %546 = arith.divf %544, %545 : vector<8x128xf32>
    %547 = vector.extract_strided_slice %515 {offsets = [0, 128], sizes = [8, 128], strides = [1, 1]} : vector<8x512xf32> to vector<8x128xf32>
    %548 = arith.negf %547 : vector<8x128xf32>
    %549 = math.exp %548 : vector<8x128xf32>
    %cst_167 = arith.constant 1.000000e+00 : f32
    %550 = vector.broadcast %cst_167 : f32 to vector<8x128xf32>
    %551 = arith.addf %550, %549 : vector<8x128xf32>
    %552 = arith.divf %550, %551 : vector<8x128xf32>
    %553 = vector.extract_strided_slice %515 {offsets = [0, 256], sizes = [8, 128], strides = [1, 1]} : vector<8x512xf32> to vector<8x128xf32>
    %554 = math.tanh %553 : vector<8x128xf32>
    %555 = vector.extract_strided_slice %515 {offsets = [0, 384], sizes = [8, 128], strides = [1, 1]} : vector<8x512xf32> to vector<8x128xf32>
    %556 = arith.negf %555 : vector<8x128xf32>
    %557 = math.exp %556 : vector<8x128xf32>
    %cst_168 = arith.constant 1.000000e+00 : f32
    %558 = vector.broadcast %cst_168 : f32 to vector<8x128xf32>
    %559 = arith.addf %558, %557 : vector<8x128xf32>
    %560 = arith.divf %558, %559 : vector<8x128xf32>
    %561 = arith.mulf %552, %494 : vector<8x128xf32>
    %562 = arith.mulf %546, %554 : vector<8x128xf32>
    %563 = arith.addf %561, %562 : vector<8x128xf32>
    %564 = math.tanh %563 : vector<8x128xf32>
    %565 = arith.mulf %560, %564 : vector<8x128xf32>
    %566 = arith.index_cast %502 : i32 to index
    %c0_169 = arith.constant 0 : index
    %567 = vector.load %arg13[%566, %c0_169] : memref<64x128xf32, #tpu.memory_space<vmem>>, vector<8x128xf32>
    tpu.vector_store %arg13[%566, %c0_169], %540 {strides = array<i32>} : memref<64x128xf32, #tpu.memory_space<vmem>>, vector<8x128xf32>,
    %568 = arith.index_cast %505 : i32 to index
    %c0_170 = arith.constant 0 : index
    %569 = vector.load %arg14[%568, %c0_170] : memref<64x128xf32, #tpu.memory_space<vmem>>, vector<8x128xf32>
    tpu.vector_store %arg14[%568, %c0_170], %565 {strides = array<i32>} : memref<64x128xf32, #tpu.memory_space<vmem>>, vector<8x128xf32>,
    %c8_i32_171 = arith.constant 8 : i32
    %c0_172 = arith.constant 0 : index
    %c0_173 = arith.constant 0 : index
    %570 = vector.load %arg13[%c0_172, %c0_173] : memref<64x128xf32, #tpu.memory_space<vmem>>, vector<64x128xf32>
    %c0_174 = arith.constant 0 : index
    %c0_175 = arith.constant 0 : index
    %571 = vector.load %arg7[%c0_174, %c0_175] : memref<128x128xf32, #tpu.memory_space<vmem>>, vector<128x128xf32>
    %cst_176 = arith.constant dense<0.000000e+00> : vector<64x128xf32>
    %572 = tpu.matmul %570, %571, %cst_176 {dimension_numbers = #tpu.dot_dimension_numbers<[1], [0], [0], [1], [0, 0, 1, 1], [], []>} : vector<64x128xf32>, vector<128x128xf32>, vector<64x128xf32> -> vector<64x128xf32>
    %c0_177 = arith.constant 0 : index
    %c0_178 = arith.constant 0 : index
    %573 = vector.load %arg14[%c0_177, %c0_178] : memref<64x128xf32, #tpu.memory_space<vmem>>, vector<64x128xf32>
    %c0_179 = arith.constant 0 : index
    %c0_180 = arith.constant 0 : index
    %574 = vector.load %arg8[%c0_179, %c0_180] : memref<128x128xf32, #tpu.memory_space<vmem>>, vector<128x128xf32>
    %cst_181 = arith.constant dense<0.000000e+00> : vector<64x128xf32>
    %575 = tpu.matmul %573, %574, %cst_181 {dimension_numbers = #tpu.dot_dimension_numbers<[1], [0], [0], [1], [0, 0, 1, 1], [], []>} : vector<64x128xf32>, vector<128x128xf32>, vector<64x128xf32> -> vector<64x128xf32>
    %576 = arith.addf %572, %575 : vector<64x128xf32>
    %c0_182 = arith.constant 0 : index
    %c0_183 = arith.constant 0 : index
    %577 = vector.load %arg9[%c0_182, %c0_183] : memref<1x128xf32, #tpu.memory_space<vmem>>, vector<1x128xf32>
    %578 = vector.broadcast %577 : vector<1x128xf32> to vector<64x128xf32>
    %579 = arith.addf %576, %578 : vector<64x128xf32>
    %c0_184 = arith.constant 0 : index
    %c0_185 = arith.constant 0 : index
    %580 = vector.load %arg10[%c0_184, %c0_185] : memref<64x128xf32, #tpu.memory_space<vmem>>, vector<64x128xf32>
    tpu.vector_store %arg10[%c0_184, %c0_185], %579 {strides = array<i32>} : memref<64x128xf32, #tpu.memory_space<vmem>>, vector<64x128xf32>,
    return
  }
}

</mosaic_0001>

<llo_original>
// kernel: bidirectional_lstm_forward.1
$region0: #{bidirectional_lstm_forward.1}
  #allocation0 [shape = 'u32[]', space=smem, size = 0x4, offset = 0x4, fixed_abs, tag = 'smem constant byte address 0x4 - core index']
  #allocation1 [shape = 'u32[144,128]{1,0:T(1,128)}', space=vmem, size = 0x12000, scoped, tag = 'internal scratch']
  #allocation2 [shape = 'f32[64,512]{1,0:T(8,128)}', space=vmem, size = 0x20000, scoped, tag = 'scratch operand']
  #allocation3 [shape = 'f32[64,512]{1,0:T(8,128)}', space=vmem, size = 0x20000, scoped, tag = 'scratch operand']
  #allocation4 [shape = 'f32[64,128]{1,0:T(8,128)}', space=vmem, size = 0x8000, scoped, tag = 'scratch operand']
  #allocation5 [shape = 'f32[64,128]{1,0:T(8,128)}', space=vmem, size = 0x8000, scoped, tag = 'scratch operand']
  %s0 = inlined_call_operand.vmem [shape: f32[64,16], index: 0, kind: input, shape index: {}]
  %s1 = inlined_call_operand.vmem [shape: f32[16,512], index: 1, kind: input, shape index: {}]
  %s2 = inlined_call_operand.vmem [shape: f32[16,512], index: 2, kind: input, shape index: {}]
  %s3 = inlined_call_operand.vmem [shape: f32[128,512], index: 3, kind: input, shape index: {}]
  %s4 = inlined_call_operand.vmem [shape: f32[128,512], index: 4, kind: input, shape index: {}]
  %s5 = inlined_call_operand.vmem [shape: f32[1,512], index: 5, kind: input, shape index: {}]
  %s6 = inlined_call_operand.vmem [shape: f32[1,512], index: 6, kind: input, shape index: {}]
  %s7 = inlined_call_operand.vmem [shape: f32[128,128], index: 7, kind: input, shape index: {}]
  %s8 = inlined_call_operand.vmem [shape: f32[128,128], index: 8, kind: input, shape index: {}]
  %s9 = inlined_call_operand.vmem [shape: f32[1,128], index: 9, kind: input, shape index: {}]
  %s10 = inlined_call_operand.vmem [shape: f32[64,128], index: 10, kind: output, shape index: {}]
  %s11 = sld [smem:[#allocation0]]
  $region50: #{bidirectional_lstm_forward.1} parent=0
    _
  %s13 = ssub.s32 1, %s11
  %s14 = scalar_select 0, %s13, %s11
  // Predicated region
  $region2: #{bidirectional_lstm_forward.1} parent=0 // pred_check
    _
  $region3: #{bidirectional_lstm_forward.1} parent=0 // pred_check_branch
    %16 = sbr.rel (0) target = $region5
  $region4: #{bidirectional_lstm_forward.1} parent=0 // pred_region
    _
  $region5: #{bidirectional_lstm_forward.1} parent=0 // pred_fallthru
    _
  // Predicated region
  $region6: #{bidirectional_lstm_forward.1} parent=0 // pred_check
    _
  $region7: #{bidirectional_lstm_forward.1} parent=0 // pred_check_branch
    %18 = sbr.rel (0) target = $region9
  $region8: #{bidirectional_lstm_forward.1} parent=0 // pred_region
    _
  $region9: #{bidirectional_lstm_forward.1} parent=0 // pred_fallthru
    _
  // Predicated region
  $region10: #{bidirectional_lstm_forward.1} parent=0 // pred_check
    _
  $region11: #{bidirectional_lstm_forward.1} parent=0 // pred_check_branch
    %20 = sbr.rel (0) target = $region13
  $region12: #{bidirectional_lstm_forward.1} parent=0 // pred_region
    _
  $region13: #{bidirectional_lstm_forward.1} parent=0 // pred_fallthru
    _
  // Predicated region
  $region14: #{bidirectional_lstm_forward.1} parent=0 // pred_check
    _
  $region15: #{bidirectional_lstm_forward.1} parent=0 // pred_check_branch
    %22 = sbr.rel (0) target = $region17
  $region16: #{bidirectional_lstm_forward.1} parent=0 // pred_region
    _
  $region17: #{bidirectional_lstm_forward.1} parent=0 // pred_fallthru
    _
  // Predicated region
  $region18: #{bidirectional_lstm_forward.1} parent=0 // pred_check
    _
  $region19: #{bidirectional_lstm_forward.1} parent=0 // pred_check_branch
    %24 = sbr.rel (0) target = $region21
  $region20: #{bidirectional_lstm_forward.1} parent=0 // pred_region
    _
  $region21: #{bidirectional_lstm_forward.1} parent=0 // pred_fallthru
    _
  // Predicated region
  $region22: #{bidirectional_lstm_forward.1} parent=0 // pred_check
    _
  $region23: #{bidirectional_lstm_forward.1} parent=0 // pred_check_branch
    %26 = sbr.rel (0) target = $region25
  $region24: #{bidirectional_lstm_forward.1} parent=0 // pred_region
    _
  $region25: #{bidirectional_lstm_forward.1} parent=0 // pred_fallthru
    _
  // Predicated region
  $region26: #{bidirectional_lstm_forward.1} parent=0 // pred_check
    _
  $region27: #{bidirectional_lstm_forward.1} parent=0 // pred_check_branch
    %28 = sbr.rel (0) target = $region29
  $region28: #{bidirectional_lstm_forward.1} parent=0 // pred_region
    _
  $region29: #{bidirectional_lstm_forward.1} parent=0 // pred_fallthru
    _
  // Predicated region
  $region30: #{bidirectional_lstm_forward.1} parent=0 // pred_check
    _
  $region31: #{bidirectional_lstm_forward.1} parent=0 // pred_check_branch
    %30 = sbr.rel (0) target = $region33
  $region32: #{bidirectional_lstm_forward.1} parent=0 // pred_region
    _
  $region33: #{bidirectional_lstm_forward.1} parent=0 // pred_fallthru
    _
  // Predicated region
  $region34: #{bidirectional_lstm_forward.1} parent=0 // pred_check
    _
  $region35: #{bidirectional_lstm_forward.1} parent=0 // pred_check_branch
    %32 = sbr.rel (0) target = $region37
  $region36: #{bidirectional_lstm_forward.1} parent=0 // pred_region
    _
  $region37: #{bidirectional_lstm_forward.1} parent=0 // pred_fallthru
    _
  // Predicated region
  $region38: #{bidirectional_lstm_forward.1} parent=0 // pred_check
    _
  $region39: #{bidirectional_lstm_forward.1} parent=0 // pred_check_branch
    %34 = sbr.rel (0) target = $region41
  $region40: #{bidirectional_lstm_forward.1} parent=0 // pred_region
    _
  $region41: #{bidirectional_lstm_forward.1} parent=0 // pred_fallthru
    _
  %v35 = vld [vmem:[%s0] sm:$0xff]
  %v36 = vld [vmem:[%s0 + $0x8] sm:$0xff]
  %v37 = vld [vmem:[%s0 + $0x10] sm:$0xff]
  %v38 = vld [vmem:[%s0 + $0x18] sm:$0xff]
  %v39 = vld [vmem:[%s0 + $0x20] sm:$0xff]
  %v40 = vld [vmem:[%s0 + $0x28] sm:$0xff]
  %v41 = vld [vmem:[%s0 + $0x30] sm:$0xff]
  %v42 = vld [vmem:[%s0 + $0x38] sm:$0xff]
  %v43 = vld [vmem:[%s1] sm:$0xff]
  %v44 = vld [vmem:[%s1 + $0x8] sm:$0xff]
  %v45 = vld [vmem:[%s1 + $0x10] sm:$0xff]
  %v46 = vld [vmem:[%s1 + $0x18] sm:$0xff]
  %v47 = vld [vmem:[%s1 + $0x20] sm:$0xff]
  %v48 = vld [vmem:[%s1 + $0x28] sm:$0xff]
  %v49 = vld [vmem:[%s1 + $0x30] sm:$0xff]
  %v50 = vld [vmem:[%s1 + $0x38] sm:$0xff]
  %v51 = vld [vmem:[%s5] sm:$0xf]
  %v53 = vlaneseq
  %v54 = vshrl.u32 %v53, 7
  %v55 = vsub.s32 0, %v54
  %v56 = vrot.slane %v51, %v55
  %v57 = vlaneseq
  %v58 = vshrl.u32 %v57, 7
  %v59 = vsub.s32 1, %v58
  %v60 = vrot.slane %v51, %v59
  %v61 = vlaneseq
  %v62 = vshrl.u32 %v61, 7
  %v63 = vsub.s32 2, %v62
  %v64 = vrot.slane %v51, %v63
  %v65 = vlaneseq
  %v66 = vshrl.u32 %v65, 7
  %v67 = vsub.s32 3, %v66
  %v68 = vrot.slane %v51, %v67
  %vm73 = vcmask 130048
  %v75 = vsel %vm73, %v35, 0
  %v78 = vsel %vm73, %v36, 0
  %v81 = vsel %vm73, %v37, 0
  %v84 = vsel %vm73, %v38, 0
  %v87 = vsel %vm73, %v39, 0
  %v90 = vsel %vm73, %v40, 0
  %v93 = vsel %vm73, %v41, 0
  %v96 = vsel %vm73, %v42, 0
  %98 = vmatprep.subr.mxu0 %v44
  %99 = vmatpush1.msra.mxu0 %v43
  %100 = vmatprep.subr.mxu0 %v48
  %101 = vmatpush1.msra.mxu0 %v47
  %102 = vmatprep.subr.mxu0 0.0
  %103 = vmatpush1.msra.mxu0 0.0
  %104 = vmatprep.subr.mxu0 0.0
  %105 = vmatpush1.msra.mxu0 0.0
  %106 = vmatprep.subr.mxu0 0.0
  %107 = vmatpush1.msra.mxu0 0.0
  %108 = vmatprep.subr.mxu0 0.0
  %109 = vmatpush1.msra.mxu0 0.0
  %110 = vmatprep.subr.mxu0 0.0
  %111 = vmatpush1.msra.mxu0 0.0
  %112 = vmatprep.subr.mxu0 0.0
  %113 = vmatpush1.msra.mxu0 0.0
  %114 = vmatprep.subr.mxu0 0.0
  %115 = vmatpush1.msra.mxu0 0.0
  %116 = vmatprep.subr.mxu0 0.0
  %117 = vmatpush1.msra.mxu0 0.0
  %118 = vmatprep.subr.mxu0 0.0
  %119 = vmatpush1.msra.mxu0 0.0
  %120 = vmatprep.subr.mxu0 0.0
  %121 = vmatpush1.msra.mxu0 0.0
  %122 = vmatprep.subr.mxu0 0.0
  %123 = vmatpush1.msra.mxu0 0.0
  %124 = vmatprep.subr.mxu0 0.0
  %125 = vmatpush1.msra.mxu0 0.0
  %126 = vmatprep.subr.mxu0 0.0
  %127 = vmatpush1.msra.mxu0 0.0
  %128 = vmatprep.subr.mxu0 0.0
  %129 = vmatpush1.msra.mxu0 0.0
  %130 = vmatprep.subr.mxu0 0.0
  %131 = vmatpush1.msra.mxu0 0.0
  %132 = vmatprep.subr.mxu0 0.0
  %133 = vmatpush1.msra.mxu0 0.0
  %134 = vmatprep.subr.mxu0 0.0
  %135 = vmatpush1.msra.mxu0 0.0
  %136 = vmatprep.subr.mxu0 0.0
  %137 = vmatpush1.msra.mxu0 0.0
  %138 = vmatprep.subr.mxu0 0.0
  %139 = vmatpush1.msra.mxu0 0.0
  %140 = vmatprep.subr.mxu0 0.0
  %141 = vmatpush1.msra.mxu0 0.0
  %142 = vmatprep.subr.mxu0 0.0
  %143 = vmatpush1.msra.mxu0 0.0
  %144 = vmatprep.subr.mxu0 0.0
  %145 = vmatpush1.msra.mxu0 0.0
  %146 = vmatprep.subr.mxu0 0.0
  %147 = vmatpush1.msra.mxu0 0.0
  %148 = vmatprep.subr.mxu0 0.0
  %149 = vmatpush1.msra.mxu0 0.0
  %150 = vmatprep.subr.mxu0 0.0
  %151 = vmatpush1.msra.mxu0 0.0
  %152 = vmatprep.subr.mxu0 0.0
  %153 = vmatpush1.msra.mxu0 0.0
  %154 = vmatprep.subr.mxu0 0.0
  %155 = vmatpush1.msra.mxu0 0.0
  %156 = vmatprep.subr.mxu0 0.0
  %157 = vmatpush1.msra.mxu0 0.0
  %158 = vmatprep.subr.mxu0 0.0
  %159 = vmatpush1.msra.mxu0 0.0
  %160 = vmatprep.subr.mxu0 0.0
  %161 = vmatpush1.msra.mxu0 0.0
  %162 = vmatprep.mubr.f32.mxu0 0.0
  %163 = vmatmul.mubr.f32.gmra.mrb[0].mxu0 %v75
  %v164 = vpop.f32.mrb[0].mxu0
  %v165 = vadd.f32 %v56, %v164
  %v166 = vpop.f32.mrb[0].mxu0
  %v167 = vadd.f32 %v60, %v166
  %168 = vmatprep.mubr.f32.mxu0 0.0
  %169 = vmatmul.mubr.f32.gmra.mrb[0].mxu0 %v78
  %v170 = vpop.f32.mrb[0].mxu0
  %v171 = vadd.f32 %v56, %v170
  %v172 = vpop.f32.mrb[0].mxu0
  %v173 = vadd.f32 %v60, %v172
  %174 = vmatprep.mubr.f32.mxu0 0.0
  %175 = vmatmul.mubr.f32.gmra.mrb[0].mxu0 %v81
  %v176 = vpop.f32.mrb[0].mxu0
  %v177 = vadd.f32 %v56, %v176
  %v178 = vpop.f32.mrb[0].mxu0
  %v179 = vadd.f32 %v60, %v178
  %180 = vmatprep.mubr.f32.mxu0 0.0
  %181 = vmatmul.mubr.f32.gmra.mrb[0].mxu0 %v84
  %v182 = vpop.f32.mrb[0].mxu0
  %v183 = vadd.f32 %v56, %v182
  %v184 = vpop.f32.mrb[0].mxu0
  %v185 = vadd.f32 %v60, %v184
  %186 = vmatprep.mubr.f32.mxu0 0.0
  %187 = vmatmul.mubr.f32.gmra.mrb[0].mxu0 %v87
  %v188 = vpop.f32.mrb[0].mxu0
  %v189 = vadd.f32 %v56, %v188
  %v190 = vpop.f32.mrb[0].mxu0
  %v191 = vadd.f32 %v60, %v190
  %192 = vmatprep.mubr.f32.mxu0 0.0
  %193 = vmatmul.mubr.f32.gmra.mrb[0].mxu0 %v90
  %v194 = vpop.f32.mrb[0].mxu0
  %v195 = vadd.f32 %v56, %v194
  %v196 = vpop.f32.mrb[0].mxu0
  %v197 = vadd.f32 %v60, %v196
  %198 = vmatprep.mubr.f32.mxu0 0.0
  %199 = vmatmul.mubr.f32.gmra.mrb[0].mxu0 %v93
  %v200 = vpop.f32.mrb[0].mxu0
  %v201 = vadd.f32 %v56, %v200
  %v202 = vpop.f32.mrb[0].mxu0
  %v203 = vadd.f32 %v60, %v202
  %204 = vmatprep.mubr.f32.mxu0 0.0
  %205 = vmatmul.mubr.f32.gmra.mrb[0].mxu0 %v96
  %v206 = vpop.f32.mrb[0].mxu0
  %v207 = vadd.f32 %v56, %v206
  %v208 = vpop.f32.mrb[0].mxu0
  %v209 = vadd.f32 %v60, %v208
  %210 = vdwg.mxu0
  %211 = vmatprep.subr.mxu0 %v46
  %212 = vmatpush1.msra.mxu0 %v45
  %213 = vmatprep.subr.mxu0 %v50
  %214 = vmatpush1.msra.mxu0 %v49
  %215 = vmatprep.subr.mxu0 0.0
  %216 = vmatpush1.msra.mxu0 0.0
  %217 = vmatprep.subr.mxu0 0.0
  %218 = vmatpush1.msra.mxu0 0.0
  %219 = vmatprep.subr.mxu0 0.0
  %220 = vmatpush1.msra.mxu0 0.0
  %221 = vmatprep.subr.mxu0 0.0
  %222 = vmatpush1.msra.mxu0 0.0
  %223 = vmatprep.subr.mxu0 0.0
  %224 = vmatpush1.msra.mxu0 0.0
  %225 = vmatprep.subr.mxu0 0.0
  %226 = vmatpush1.msra.mxu0 0.0
  %227 = vmatprep.subr.mxu0 0.0
  %228 = vmatpush1.msra.mxu0 0.0
  %229 = vmatprep.subr.mxu0 0.0
  %230 = vmatpush1.msra.mxu0 0.0
  %231 = vmatprep.subr.mxu0 0.0
  %232 = vmatpush1.msra.mxu0 0.0
  %233 = vmatprep.subr.mxu0 0.0
  %234 = vmatpush1.msra.mxu0 0.0
  %235 = vmatprep.subr.mxu0 0.0
  %236 = vmatpush1.msra.mxu0 0.0
  %237 = vmatprep.subr.mxu0 0.0
  %238 = vmatpush1.msra.mxu0 0.0
  %239 = vmatprep.subr.mxu0 0.0
  %240 = vmatpush1.msra.mxu0 0.0
  %241 = vmatprep.subr.mxu0 0.0
  %242 = vmatpush1.msra.mxu0 0.0
  %243 = vmatprep.subr.mxu0 0.0
  %244 = vmatpush1.msra.mxu0 0.0
  %245 = vmatprep.subr.mxu0 0.0
  %246 = vmatpush1.msra.mxu0 0.0
  %247 = vmatprep.subr.mxu0 0.0
  %248 = vmatpush1.msra.mxu0 0.0
  %249 = vmatprep.subr.mxu0 0.0
  %250 = vmatpush1.msra.mxu0 0.0
  %251 = vmatprep.subr.mxu0 0.0
  %252 = vmatpush1.msra.mxu0 0.0
  %253 = vmatprep.subr.mxu0 0.0
  %254 = vmatpush1.msra.mxu0 0.0
  %255 = vmatprep.subr.mxu0 0.0
  %256 = vmatpush1.msra.mxu0 0.0
  %257 = vmatprep.subr.mxu0 0.0
  %258 = vmatpush1.msra.mxu0 0.0
  %259 = vmatprep.subr.mxu0 0.0
  %260 = vmatpush1.msra.mxu0 0.0
  %261 = vmatprep.subr.mxu0 0.0
  %262 = vmatpush1.msra.mxu0 0.0
  %263 = vmatprep.subr.mxu0 0.0
  %264 = vmatpush1.msra.mxu0 0.0
  %265 = vmatprep.subr.mxu0 0.0
  %266 = vmatpush1.msra.mxu0 0.0
  %267 = vmatprep.subr.mxu0 0.0
  %268 = vmatpush1.msra.mxu0 0.0
  %269 = vmatprep.subr.mxu0 0.0
  %270 = vmatpush1.msra.mxu0 0.0
  %271 = vmatprep.subr.mxu0 0.0
  %272 = vmatpush1.msra.mxu0 0.0
  %273 = vmatprep.subr.mxu0 0.0
  %274 = vmatpush1.msra.mxu0 0.0
  %275 = vmatprep.mubr.f32.mxu0 0.0
  %276 = vmatmul.mubr.f32.gmra.mrb[0].mxu0 %v75
  %v277 = vpop.f32.mrb[0].mxu0
  %v278 = vadd.f32 %v64, %v277
  %v279 = vpop.f32.mrb[0].mxu0
  %v280 = vadd.f32 %v68, %v279
  %281 = vmatprep.mubr.f32.mxu0 0.0
  %282 = vmatmul.mubr.f32.gmra.mrb[0].mxu0 %v78
  %v283 = vpop.f32.mrb[0].mxu0
  %v284 = vadd.f32 %v64, %v283
  %v285 = vpop.f32.mrb[0].mxu0
  %v286 = vadd.f32 %v68, %v285
  %287 = vmatprep.mubr.f32.mxu0 0.0
  %288 = vmatmul.mubr.f32.gmra.mrb[0].mxu0 %v81
  %v289 = vpop.f32.mrb[0].mxu0
  %v290 = vadd.f32 %v64, %v289
  %v291 = vpop.f32.mrb[0].mxu0
  %v292 = vadd.f32 %v68, %v291
  %293 = vmatprep.mubr.f32.mxu0 0.0
  %294 = vmatmul.mubr.f32.gmra.mrb[0].mxu0 %v84
  %v295 = vpop.f32.mrb[0].mxu0
  %v296 = vadd.f32 %v64, %v295
  %v297 = vpop.f32.mrb[0].mxu0
  %v298 = vadd.f32 %v68, %v297
  %299 = vmatprep.mubr.f32.mxu0 0.0
  %300 = vmatmul.mubr.f32.gmra.mrb[0].mxu0 %v87
  %v301 = vpop.f32.mrb[0].mxu0
  %v302 = vadd.f32 %v64, %v301
  %v303 = vpop.f32.mrb[0].mxu0
  %v304 = vadd.f32 %v68, %v303
  %305 = vmatprep.mubr.f32.mxu0 0.0
  %306 = vmatmul.mubr.f32.gmra.mrb[0].mxu0 %v90
  %v307 = vpop.f32.mrb[0].mxu0
  %v308 = vadd.f32 %v64, %v307
  %v309 = vpop.f32.mrb[0].mxu0
  %v310 = vadd.f32 %v68, %v309
  %311 = vmatprep.mubr.f32.mxu0 0.0
  %312 = vmatmul.mubr.f32.gmra.mrb[0].mxu0 %v93
  %v313 = vpop.f32.mrb[0].mxu0
  %v314 = vadd.f32 %v64, %v313
  %v315 = vpop.f32.mrb[0].mxu0
  %v316 = vadd.f32 %v68, %v315
  %317 = vmatprep.mubr.f32.mxu0 0.0
  %318 = vmatmul.mubr.f32.gmra.mrb[0].mxu0 %v96
  %v319 = vpop.f32.mrb[0].mxu0
  %v320 = vadd.f32 %v64, %v319
  %v321 = vpop.f32.mrb[0].mxu0
  %v322 = vadd.f32 %v68, %v321
  %323 = vdwg.mxu0
  %324 = vst [vmem:[#allocation2] sm:$0xff] %v165
  %325 = vst [vmem:[#allocation2 + $0x8] sm:$0xff] %v167
  %326 = vst [vmem:[#allocation2 + $0x10] sm:$0xff] %v278
  %327 = vst [vmem:[#allocation2 + $0x18] sm:$0xff] %v280
  %328 = vst [vmem:[#allocation2 + $0x20] sm:$0xff] %v171
  %329 = vst [vmem:[#allocation2 + $0x28] sm:$0xff] %v173
  %330 = vst [vmem:[#allocation2 + $0x30] sm:$0xff] %v284
  %331 = vst [vmem:[#allocation2 + $0x38] sm:$0xff] %v286
  %332 = vst [vmem:[#allocation2 + $0x40] sm:$0xff] %v177
  %333 = vst [vmem:[#allocation2 + $0x48] sm:$0xff] %v179
  %334 = vst [vmem:[#allocation2 + $0x50] sm:$0xff] %v290
  %335 = vst [vmem:[#allocation2 + $0x58] sm:$0xff] %v292
  %336 = vst [vmem:[#allocation2 + $0x60] sm:$0xff] %v183
  %337 = vst [vmem:[#allocation2 + $0x68] sm:$0xff] %v185
  %338 = vst [vmem:[#allocation2 + $0x70] sm:$0xff] %v296
  %339 = vst [vmem:[#allocation2 + $0x78] sm:$0xff] %v298
  %340 = vst [vmem:[#allocation2 + $0x80] sm:$0xff] %v189
  %341 = vst [vmem:[#allocation2 + $0x88] sm:$0xff] %v191
  %342 = vst [vmem:[#allocation2 + $0x90] sm:$0xff] %v302
  %343 = vst [vmem:[#allocation2 + $0x98] sm:$0xff] %v304
  %344 = vst [vmem:[#allocation2 + $0xa0] sm:$0xff] %v195
  %345 = vst [vmem:[#allocation2 + $0xa8] sm:$0xff] %v197
  %346 = vst [vmem:[#allocation2 + $0xb0] sm:$0xff] %v308
  %347 = vst [vmem:[#allocation2 + $0xb8] sm:$0xff] %v310
  %348 = vst [vmem:[#allocation2 + $0xc0] sm:$0xff] %v201
  %349 = vst [vmem:[#allocation2 + $0xc8] sm:$0xff] %v203
  %350 = vst [vmem:[#allocation2 + $0xd0] sm:$0xff] %v314
  %351 = vst [vmem:[#allocation2 + $0xd8] sm:$0xff] %v316
  %352 = vst [vmem:[#allocation2 + $0xe0] sm:$0xff] %v207
  %353 = vst [vmem:[#allocation2 + $0xe8] sm:$0xff] %v209
  %354 = vst [vmem:[#allocation2 + $0xf0] sm:$0xff] %v320
  %355 = vst [vmem:[#allocation2 + $0xf8] sm:$0xff] %v322
  %v356 = vld [vmem:[%s0] sm:$0xff]
  %v357 = vld [vmem:[%s0 + $0x8] sm:$0xff]
  %v358 = vld [vmem:[%s0 + $0x10] sm:$0xff]
  %v359 = vld [vmem:[%s0 + $0x18] sm:$0xff]
  %v360 = vld [vmem:[%s0 + $0x20] sm:$0xff]
  %v361 = vld [vmem:[%s0 + $0x28] sm:$0xff]
  %v362 = vld [vmem:[%s0 + $0x30] sm:$0xff]
  %v363 = vld [vmem:[%s0 + $0x38] sm:$0xff]
  %v364 = vld [vmem:[%s2] sm:$0xff]
  %v365 = vld [vmem:[%s2 + $0x8] sm:$0xff]
  %v366 = vld [vmem:[%s2 + $0x10] sm:$0xff]
  %v367 = vld [vmem:[%s2 + $0x18] sm:$0xff]
  %v368 = vld [vmem:[%s2 + $0x20] sm:$0xff]
  %v369 = vld [vmem:[%s2 + $0x28] sm:$0xff]
  %v370 = vld [vmem:[%s2 + $0x30] sm:$0xff]
  %v371 = vld [vmem:[%s2 + $0x38] sm:$0xff]
  %v372 = vld [vmem:[%s6] sm:$0xf]
  %v374 = vlaneseq
  %v375 = vshrl.u32 %v374, 7
  %v376 = vsub.s32 0, %v375
  %v377 = vrot.slane %v372, %v376
  %v378 = vlaneseq
  %v379 = vshrl.u32 %v378, 7
  %v380 = vsub.s32 1, %v379
  %v381 = vrot.slane %v372, %v380
  %v382 = vlaneseq
  %v383 = vshrl.u32 %v382, 7
  %v384 = vsub.s32 2, %v383
  %v385 = vrot.slane %v372, %v384
  %v386 = vlaneseq
  %v387 = vshrl.u32 %v386, 7
  %v388 = vsub.s32 3, %v387
  %v389 = vrot.slane %v372, %v388
  %v395 = vsel %vm73, %v356, 0
  %v398 = vsel %vm73, %v357, 0
  %v401 = vsel %vm73, %v358, 0
  %v404 = vsel %vm73, %v359, 0
  %v407 = vsel %vm73, %v360, 0
  %v410 = vsel %vm73, %v361, 0
  %v413 = vsel %vm73, %v362, 0
  %v416 = vsel %vm73, %v363, 0
  %418 = vmatprep.subr.mxu0 %v365
  %419 = vmatpush1.msra.mxu0 %v364
  %420 = vmatprep.subr.mxu0 %v369
  %421 = vmatpush1.msra.mxu0 %v368
  %422 = vmatprep.subr.mxu0 0.0
  %423 = vmatpush1.msra.mxu0 0.0
  %424 = vmatprep.subr.mxu0 0.0
  %425 = vmatpush1.msra.mxu0 0.0
  %426 = vmatprep.subr.mxu0 0.0
  %427 = vmatpush1.msra.mxu0 0.0
  %428 = vmatprep.subr.mxu0 0.0
  %429 = vmatpush1.msra.mxu0 0.0
  %430 = vmatprep.subr.mxu0 0.0
  %431 = vmatpush1.msra.mxu0 0.0
  %432 = vmatprep.subr.mxu0 0.0
  %433 = vmatpush1.msra.mxu0 0.0
  %434 = vmatprep.subr.mxu0 0.0
  %435 = vmatpush1.msra.mxu0 0.0
  %436 = vmatprep.subr.mxu0 0.0
  %437 = vmatpush1.msra.mxu0 0.0
  %438 = vmatprep.subr.mxu0 0.0
  %439 = vmatpush1.msra.mxu0 0.0
  %440 = vmatprep.subr.mxu0 0.0
  %441 = vmatpush1.msra.mxu0 0.0
  %442 = vmatprep.subr.mxu0 0.0
  %443 = vmatpush1.msra.mxu0 0.0
  %444 = vmatprep.subr.mxu0 0.0
  %445 = vmatpush1.msra.mxu0 0.0
  %446 = vmatprep.subr.mxu0 0.0
  %447 = vmatpush1.msra.mxu0 0.0
  %448 = vmatprep.subr.mxu0 0.0
  %449 = vmatpush1.msra.mxu0 0.0
  %450 = vmatprep.subr.mxu0 0.0
  %451 = vmatpush1.msra.mxu0 0.0
  %452 = vmatprep.subr.mxu0 0.0
  %453 = vmatpush1.msra.mxu0 0.0
  %454 = vmatprep.subr.mxu0 0.0
  %455 = vmatpush1.msra.mxu0 0.0
  %456 = vmatprep.subr.mxu0 0.0
  %457 = vmatpush1.msra.mxu0 0.0
  %458 = vmatprep.subr.mxu0 0.0
  %459 = vmatpush1.msra.mxu0 0.0
  %460 = vmatprep.subr.mxu0 0.0
  %461 = vmatpush1.msra.mxu0 0.0
  %462 = vmatprep.subr.mxu0 0.0
  %463 = vmatpush1.msra.mxu0 0.0
  %464 = vmatprep.subr.mxu0 0.0
  %465 = vmatpush1.msra.mxu0 0.0
  %466 = vmatprep.subr.mxu0 0.0
  %467 = vmatpush1.msra.mxu0 0.0
  %468 = vmatprep.subr.mxu0 0.0
  %469 = vmatpush1.msra.mxu0 0.0
  %470 = vmatprep.subr.mxu0 0.0
  %471 = vmatpush1.msra.mxu0 0.0
  %472 = vmatprep.subr.mxu0 0.0
  %473 = vmatpush1.msra.mxu0 0.0
  %474 = vmatprep.subr.mxu0 0.0
  %475 = vmatpush1.msra.mxu0 0.0
  %476 = vmatprep.subr.mxu0 0.0
  %477 = vmatpush1.msra.mxu0 0.0
  %478 = vmatprep.subr.mxu0 0.0
  %479 = vmatpush1.msra.mxu0 0.0
  %480 = vmatprep.subr.mxu0 0.0
  %481 = vmatpush1.msra.mxu0 0.0
  %482 = vmatprep.mubr.f32.mxu0 0.0
  %483 = vmatmul.mubr.f32.gmra.mrb[0].mxu0 %v395
  %v484 = vpop.f32.mrb[0].mxu0
  %v485 = vadd.f32 %v377, %v484
  %v486 = vpop.f32.mrb[0].mxu0
  %v487 = vadd.f32 %v381, %v486
  %488 = vmatprep.mubr.f32.mxu0 0.0
  %489 = vmatmul.mubr.f32.gmra.mrb[0].mxu0 %v398
  %v490 = vpop.f32.mrb[0].mxu0
  %v491 = vadd.f32 %v377, %v490
  %v492 = vpop.f32.mrb[0].mxu0
  %v493 = vadd.f32 %v381, %v492
  %494 = vmatprep.mubr.f32.mxu0 0.0
  %495 = vmatmul.mubr.f32.gmra.mrb[0].mxu0 %v401
  %v496 = vpop.f32.mrb[0].mxu0
  %v497 = vadd.f32 %v377, %v496
  %v498 = vpop.f32.mrb[0].mxu0
  %v499 = vadd.f32 %v381, %v498
  %500 = vmatprep.mubr.f32.mxu0 0.0
  %501 = vmatmul.mubr.f32.gmra.mrb[0].mxu0 %v404
  %v502 = vpop.f32.mrb[0].mxu0
  %v503 = vadd.f32 %v377, %v502
  %v504 = vpop.f32.mrb[0].mxu0
  %v505 = vadd.f32 %v381, %v504
  %506 = vmatprep.mubr.f32.mxu0 0.0
  %507 = vmatmul.mubr.f32.gmra.mrb[0].mxu0 %v407
  %v508 = vpop.f32.mrb[0].mxu0
  %v509 = vadd.f32 %v377, %v508
  %v510 = vpop.f32.mrb[0].mxu0
  %v511 = vadd.f32 %v381, %v510
  %512 = vmatprep.mubr.f32.mxu0 0.0
  %513 = vmatmul.mubr.f32.gmra.mrb[0].mxu0 %v410
  %v514 = vpop.f32.mrb[0].mxu0
  %v515 = vadd.f32 %v377, %v514
  %v516 = vpop.f32.mrb[0].mxu0
  %v517 = vadd.f32 %v381, %v516
  %518 = vmatprep.mubr.f32.mxu0 0.0
  %519 = vmatmul.mubr.f32.gmra.mrb[0].mxu0 %v413
  %v520 = vpop.f32.mrb[0].mxu0
  %v521 = vadd.f32 %v377, %v520
  %v522 = vpop.f32.mrb[0].mxu0
  %v523 = vadd.f32 %v381, %v522
  %524 = vmatprep.mubr.f32.mxu0 0.0
  %525 = vmatmul.mubr.f32.gmra.mrb[0].mxu0 %v416
  %v526 = vpop.f32.mrb[0].mxu0
  %v527 = vadd.f32 %v377, %v526
  %v528 = vpop.f32.mrb[0].mxu0
  %v529 = vadd.f32 %v381, %v528
  %530 = vdwg.mxu0
  %531 = vmatprep.subr.mxu0 %v367
  %532 = vmatpush1.msra.mxu0 %v366
  %533 = vmatprep.subr.mxu0 %v371
  %534 = vmatpush1.msra.mxu0 %v370
  %535 = vmatprep.subr.mxu0 0.0
  %536 = vmatpush1.msra.mxu0 0.0
  %537 = vmatprep.subr.mxu0 0.0
  %538 = vmatpush1.msra.mxu0 0.0
  %539 = vmatprep.subr.mxu0 0.0
  %540 = vmatpush1.msra.mxu0 0.0
  %541 = vmatprep.subr.mxu0 0.0
  %542 = vmatpush1.msra.mxu0 0.0
  %543 = vmatprep.subr.mxu0 0.0
  %544 = vmatpush1.msra.mxu0 0.0
  %545 = vmatprep.subr.mxu0 0.0
  %546 = vmatpush1.msra.mxu0 0.0
  %547 = vmatprep.subr.mxu0 0.0
  %548 = vmatpush1.msra.mxu0 0.0
  %549 = vmatprep.subr.mxu0 0.0
  %550 = vmatpush1.msra.mxu0 0.0
  %551 = vmatprep.subr.mxu0 0.0
  %552 = vmatpush1.msra.mxu0 0.0
  %553 = vmatprep.subr.mxu0 0.0
  %554 = vmatpush1.msra.mxu0 0.0
  %555 = vmatprep.subr.mxu0 0.0
  %556 = vmatpush1.msra.mxu0 0.0
  %557 = vmatprep.subr.mxu0 0.0
  %558 = vmatpush1.msra.mxu0 0.0
  %559 = vmatprep.subr.mxu0 0.0
  %560 = vmatpush1.msra.mxu0 0.0
  %561 = vmatprep.subr.mxu0 0.0
  %562 = vmatpush1.msra.mxu0 0.0
  %563 = vmatprep.subr.mxu0 0.0
  %564 = vmatpush1.msra.mxu0 0.0
  %565 = vmatprep.subr.mxu0 0.0
  %566 = vmatpush1.msra.mxu0 0.0
  %567 = vmatprep.subr.mxu0 0.0
  %568 = vmatpush1.msra.mxu0 0.0
  %569 = vmatprep.subr.mxu0 0.0
  %570 = vmatpush1.msra.mxu0 0.0
  %571 = vmatprep.subr.mxu0 0.0
  %572 = vmatpush1.msra.mxu0 0.0
  %573 = vmatprep.subr.mxu0 0.0
  %574 = vmatpush1.msra.mxu0 0.0
  %575 = vmatprep.subr.mxu0 0.0
  %576 = vmatpush1.msra.mxu0 0.0
  %577 = vmatprep.subr.mxu0 0.0
  %578 = vmatpush1.msra.mxu0 0.0
  %579 = vmatprep.subr.mxu0 0.0
  %580 = vmatpush1.msra.mxu0 0.0
  %581 = vmatprep.subr.mxu0 0.0
  %582 = vmatpush1.msra.mxu0 0.0
  %583 = vmatprep.subr.mxu0 0.0
  %584 = vmatpush1.msra.mxu0 0.0
  %585 = vmatprep.subr.mxu0 0.0
  %586 = vmatpush1.msra.mxu0 0.0
  %587 = vmatprep.subr.mxu0 0.0
  %588 = vmatpush1.msra.mxu0 0.0
  %589 = vmatprep.subr.mxu0 0.0
  %590 = vmatpush1.msra.mxu0 0.0
  %591 = vmatprep.subr.mxu0 0.0
  %592 = vmatpush1.msra.mxu0 0.0
  %593 = vmatprep.subr.mxu0 0.0
  %594 = vmatpush1.msra.mxu0 0.0
  %595 = vmatprep.mubr.f32.mxu0 0.0
  %596 = vmatmul.mubr.f32.gmra.mrb[0].mxu0 %v395
  %v597 = vpop.f32.mrb[0].mxu0
  %v598 = vadd.f32 %v385, %v597
  %v599 = vpop.f32.mrb[0].mxu0
  %v600 = vadd.f32 %v389, %v599
  %601 = vmatprep.mubr.f32.mxu0 0.0
  %602 = vmatmul.mubr.f32.gmra.mrb[0].mxu0 %v398
  %v603 = vpop.f32.mrb[0].mxu0
  %v604 = vadd.f32 %v385, %v603
  %v605 = vpop.f32.mrb[0].mxu0
  %v606 = vadd.f32 %v389, %v605
  %607 = vmatprep.mubr.f32.mxu0 0.0
  %608 = vmatmul.mubr.f32.gmra.mrb[0].mxu0 %v401
  %v609 = vpop.f32.mrb[0].mxu0
  %v610 = vadd.f32 %v385, %v609
  %v611 = vpop.f32.mrb[0].mxu0
  %v612 = vadd.f32 %v389, %v611
  %613 = vmatprep.mubr.f32.mxu0 0.0
  %614 = vmatmul.mubr.f32.gmra.mrb[0].mxu0 %v404
  %v615 = vpop.f32.mrb[0].mxu0
  %v616 = vadd.f32 %v385, %v615
  %v617 = vpop.f32.mrb[0].mxu0
  %v618 = vadd.f32 %v389, %v617
  %619 = vmatprep.mubr.f32.mxu0 0.0
  %620 = vmatmul.mubr.f32.gmra.mrb[0].mxu0 %v407
  %v621 = vpop.f32.mrb[0].mxu0
  %v622 = vadd.f32 %v385, %v621
  %v623 = vpop.f32.mrb[0].mxu0
  %v624 = vadd.f32 %v389, %v623
  %625 = vmatprep.mubr.f32.mxu0 0.0
  %626 = vmatmul.mubr.f32.gmra.mrb[0].mxu0 %v410
  %v627 = vpop.f32.mrb[0].mxu0
  %v628 = vadd.f32 %v385, %v627
  %v629 = vpop.f32.mrb[0].mxu0
  %v630 = vadd.f32 %v389, %v629
  %631 = vmatprep.mubr.f32.mxu0 0.0
  %632 = vmatmul.mubr.f32.gmra.mrb[0].mxu0 %v413
  %v633 = vpop.f32.mrb[0].mxu0
  %v634 = vadd.f32 %v385, %v633
  %v635 = vpop.f32.mrb[0].mxu0
  %v636 = vadd.f32 %v389, %v635
  %637 = vmatprep.mubr.f32.mxu0 0.0
  %638 = vmatmul.mubr.f32.gmra.mrb[0].mxu0 %v416
  %v639 = vpop.f32.mrb[0].mxu0
  %v640 = vadd.f32 %v385, %v639
  %v641 = vpop.f32.mrb[0].mxu0
  %v642 = vadd.f32 %v389, %v641
  %643 = vdwg.mxu0
  %644 = vst [vmem:[#allocation3] sm:$0xff] %v485
  %645 = vst [vmem:[#allocation3 + $0x8] sm:$0xff] %v487
  %646 = vst [vmem:[#allocation3 + $0x10] sm:$0xff] %v598
  %647 = vst [vmem:[#allocation3 + $0x18] sm:$0xff] %v600
  %648 = vst [vmem:[#allocation3 + $0x20] sm:$0xff] %v491
  %649 = vst [vmem:[#allocation3 + $0x28] sm:$0xff] %v493
  %650 = vst [vmem:[#allocation3 + $0x30] sm:$0xff] %v604
  %651 = vst [vmem:[#allocation3 + $0x38] sm:$0xff] %v606
  %652 = vst [vmem:[#allocation3 + $0x40] sm:$0xff] %v497
  %653 = vst [vmem:[#allocation3 + $0x48] sm:$0xff] %v499
  %654 = vst [vmem:[#allocation3 + $0x50] sm:$0xff] %v610
  %655 = vst [vmem:[#allocation3 + $0x58] sm:$0xff] %v612
  %656 = vst [vmem:[#allocation3 + $0x60] sm:$0xff] %v503
  %657 = vst [vmem:[#allocation3 + $0x68] sm:$0xff] %v505
  %658 = vst [vmem:[#allocation3 + $0x70] sm:$0xff] %v616
  %659 = vst [vmem:[#allocation3 + $0x78] sm:$0xff] %v618
  %660 = vst [vmem:[#allocation3 + $0x80] sm:$0xff] %v509
  %661 = vst [vmem:[#allocation3 + $0x88] sm:$0xff] %v511
  %662 = vst [vmem:[#allocation3 + $0x90] sm:$0xff] %v622
  %663 = vst [vmem:[#allocation3 + $0x98] sm:$0xff] %v624
  %664 = vst [vmem:[#allocation3 + $0xa0] sm:$0xff] %v515
  %665 = vst [vmem:[#allocation3 + $0xa8] sm:$0xff] %v517
  %666 = vst [vmem:[#allocation3 + $0xb0] sm:$0xff] %v628
  %667 = vst [vmem:[#allocation3 + $0xb8] sm:$0xff] %v630
  %668 = vst [vmem:[#allocation3 + $0xc0] sm:$0xff] %v521
  %669 = vst [vmem:[#allocation3 + $0xc8] sm:$0xff] %v523
  %670 = vst [vmem:[#allocation3 + $0xd0] sm:$0xff] %v634
  %671 = vst [vmem:[#allocation3 + $0xd8] sm:$0xff] %v636
  %672 = vst [vmem:[#allocation3 + $0xe0] sm:$0xff] %v527
  %673 = vst [vmem:[#allocation3 + $0xe8] sm:$0xff] %v529
  %674 = vst [vmem:[#allocation3 + $0xf0] sm:$0xff] %v640
  %675 = vst [vmem:[#allocation3 + $0xf8] sm:$0xff] %v642
  %v676 = vld [vmem:[%s3] sm:$0xff]
  %v677 = vld [vmem:[%s3 + $0x8] sm:$0xff]
  %v678 = vld [vmem:[%s3 + $0x10] sm:$0xff]
  %v679 = vld [vmem:[%s3 + $0x18] sm:$0xff]
  %v680 = vld [vmem:[%s3 + $0x20] sm:$0xff]
  %v681 = vld [vmem:[%s3 + $0x28] sm:$0xff]
  %v682 = vld [vmem:[%s3 + $0x30] sm:$0xff]
  %v683 = vld [vmem:[%s3 + $0x38] sm:$0xff]
  %v684 = vld [vmem:[%s3 + $0x40] sm:$0xff]
  %v685 = vld [vmem:[%s3 + $0x48] sm:$0xff]
  %v686 = vld [vmem:[%s3 + $0x50] sm:$0xff]
  %v687 = vld [vmem:[%s3 + $0x58] sm:$0xff]
  %v688 = vld [vmem:[%s3 + $0x60] sm:$0xff]
  %v689 = vld [vmem:[%s3 + $0x68] sm:$0xff]
  %v690 = vld [vmem:[%s3 + $0x70] sm:$0xff]
  %v691 = vld [vmem:[%s3 + $0x78] sm:$0xff]
  %v692 = vld [vmem:[%s3 + $0x80] sm:$0xff]
  %v693 = vld [vmem:[%s3 + $0x88] sm:$0xff]
  %v694 = vld [vmem:[%s3 + $0x90] sm:$0xff]
  %v695 = vld [vmem:[%s3 + $0x98] sm:$0xff]
  %v696 = vld [vmem:[%s3 + $0xa0] sm:$0xff]
  %v697 = vld [vmem:[%s3 + $0xa8] sm:$0xff]
  %v698 = vld [vmem:[%s3 + $0xb0] sm:$0xff]
  %v699 = vld [vmem:[%s3 + $0xb8] sm:$0xff]
  %v700 = vld [vmem:[%s3 + $0xc0] sm:$0xff]
  %v701 = vld [vmem:[%s3 + $0xc8] sm:$0xff]
  %v702 = vld [vmem:[%s3 + $0xd0] sm:$0xff]
  %v703 = vld [vmem:[%s3 + $0xd8] sm:$0xff]
  %v704 = vld [vmem:[%s3 + $0xe0] sm:$0xff]
  %v705 = vld [vmem:[%s3 + $0xe8] sm:$0xff]
  %v706 = vld [vmem:[%s3 + $0xf0] sm:$0xff]
  %v707 = vld [vmem:[%s3 + $0xf8] sm:$0xff]
  %v708 = vld [vmem:[%s3 + $0x100] sm:$0xff]
  %v709 = vld [vmem:[%s3 + $0x108] sm:$0xff]
  %v710 = vld [vmem:[%s3 + $0x110] sm:$0xff]
  %v711 = vld [vmem:[%s3 + $0x118] sm:$0xff]
  %v712 = vld [vmem:[%s3 + $0x120] sm:$0xff]
  %v713 = vld [vmem:[%s3 + $0x128] sm:$0xff]
  %v714 = vld [vmem:[%s3 + $0x130] sm:$0xff]
  %v715 = vld [vmem:[%s3 + $0x138] sm:$0xff]
  %v716 = vld [vmem:[%s3 + $0x140] sm:$0xff]
  %v717 = vld [vmem:[%s3 + $0x148] sm:$0xff]
  %v718 = vld [vmem:[%s3 + $0x150] sm:$0xff]
  %v719 = vld [vmem:[%s3 + $0x158] sm:$0xff]
  %v720 = vld [vmem:[%s3 + $0x160] sm:$0xff]
  %v721 = vld [vmem:[%s3 + $0x168] sm:$0xff]
  %v722 = vld [vmem:[%s3 + $0x170] sm:$0xff]
  %v723 = vld [vmem:[%s3 + $0x178] sm:$0xff]
  %v724 = vld [vmem:[%s3 + $0x180] sm:$0xff]
  %v725 = vld [vmem:[%s3 + $0x188] sm:$0xff]
  %v726 = vld [vmem:[%s3 + $0x190] sm:$0xff]
  %v727 = vld [vmem:[%s3 + $0x198] sm:$0xff]
  %v728 = vld [vmem:[%s3 + $0x1a0] sm:$0xff]
  %v729 = vld [vmem:[%s3 + $0x1a8] sm:$0xff]
  %v730 = vld [vmem:[%s3 + $0x1b0] sm:$0xff]
  %v731 = vld [vmem:[%s3 + $0x1b8] sm:$0xff]
  %v732 = vld [vmem:[%s3 + $0x1c0] sm:$0xff]
  %v733 = vld [vmem:[%s3 + $0x1c8] sm:$0xff]
  %v734 = vld [vmem:[%s3 + $0x1d0] sm:$0xff]
  %v735 = vld [vmem:[%s3 + $0x1d8] sm:$0xff]
  %v736 = vld [vmem:[%s3 + $0x1e0] sm:$0xff]
  %v737 = vld [vmem:[%s3 + $0x1e8] sm:$0xff]
  %v738 = vld [vmem:[%s3 + $0x1f0] sm:$0xff]
  %v739 = vld [vmem:[%s3 + $0x1f8] sm:$0xff]
  %v740 = vld [vmem:[%s4] sm:$0xff]
  %v741 = vld [vmem:[%s4 + $0x8] sm:$0xff]
  %v742 = vld [vmem:[%s4 + $0x10] sm:$0xff]
  %v743 = vld [vmem:[%s4 + $0x18] sm:$0xff]
  %v744 = vld [vmem:[%s4 + $0x20] sm:$0xff]
  %v745 = vld [vmem:[%s4 + $0x28] sm:$0xff]
  %v746 = vld [vmem:[%s4 + $0x30] sm:$0xff]
  %v747 = vld [vmem:[%s4 + $0x38] sm:$0xff]
  %v748 = vld [vmem:[%s4 + $0x40] sm:$0xff]
  %v749 = vld [vmem:[%s4 + $0x48] sm:$0xff]
  %v750 = vld [vmem:[%s4 + $0x50] sm:$0xff]
  %v751 = vld [vmem:[%s4 + $0x58] sm:$0xff]
  %v752 = vld [vmem:[%s4 + $0x60] sm:$0xff]
  %v753 = vld [vmem:[%s4 + $0x68] sm:$0xff]
  %v754 = vld [vmem:[%s4 + $0x70] sm:$0xff]
  %v755 = vld [vmem:[%s4 + $0x78] sm:$0xff]
  %v756 = vld [vmem:[%s4 + $0x80] sm:$0xff]
  %v757 = vld [vmem:[%s4 + $0x88] sm:$0xff]
  %v758 = vld [vmem:[%s4 + $0x90] sm:$0xff]
  %v759 = vld [vmem:[%s4 + $0x98] sm:$0xff]
  %v760 = vld [vmem:[%s4 + $0xa0] sm:$0xff]
  %v761 = vld [vmem:[%s4 + $0xa8] sm:$0xff]
  %v762 = vld [vmem:[%s4 + $0xb0] sm:$0xff]
  %v763 = vld [vmem:[%s4 + $0xb8] sm:$0xff]
  %v764 = vld [vmem:[%s4 + $0xc0] sm:$0xff]
  %v765 = vld [vmem:[%s4 + $0xc8] sm:$0xff]
  %v766 = vld [vmem:[%s4 + $0xd0] sm:$0xff]
  %v767 = vld [vmem:[%s4 + $0xd8] sm:$0xff]
  %v768 = vld [vmem:[%s4 + $0xe0] sm:$0xff]
  %v769 = vld [vmem:[%s4 + $0xe8] sm:$0xff]
  %v770 = vld [vmem:[%s4 + $0xf0] sm:$0xff]
  %v771 = vld [vmem:[%s4 + $0xf8] sm:$0xff]
  %v772 = vld [vmem:[%s4 + $0x100] sm:$0xff]
  %v773 = vld [vmem:[%s4 + $0x108] sm:$0xff]
  %v774 = vld [vmem:[%s4 + $0x110] sm:$0xff]
  %v775 = vld [vmem:[%s4 + $0x118] sm:$0xff]
  %v776 = vld [vmem:[%s4 + $0x120] sm:$0xff]
  %v777 = vld [vmem:[%s4 + $0x128] sm:$0xff]
  %v778 = vld [vmem:[%s4 + $0x130] sm:$0xff]
  %v779 = vld [vmem:[%s4 + $0x138] sm:$0xff]
  %v780 = vld [vmem:[%s4 + $0x140] sm:$0xff]
  %v781 = vld [vmem:[%s4 + $0x148] sm:$0xff]
  %v782 = vld [vmem:[%s4 + $0x150] sm:$0xff]
  %v783 = vld [vmem:[%s4 + $0x158] sm:$0xff]
  %v784 = vld [vmem:[%s4 + $0x160] sm:$0xff]
  %v785 = vld [vmem:[%s4 + $0x168] sm:$0xff]
  %v786 = vld [vmem:[%s4 + $0x170] sm:$0xff]
  %v787 = vld [vmem:[%s4 + $0x178] sm:$0xff]
  %v788 = vld [vmem:[%s4 + $0x180] sm:$0xff]
  %v789 = vld [vmem:[%s4 + $0x188] sm:$0xff]
  %v790 = vld [vmem:[%s4 + $0x190] sm:$0xff]
  %v791 = vld [vmem:[%s4 + $0x198] sm:$0xff]
  %v792 = vld [vmem:[%s4 + $0x1a0] sm:$0xff]
  %v793 = vld [vmem:[%s4 + $0x1a8] sm:$0xff]
  %v794 = vld [vmem:[%s4 + $0x1b0] sm:$0xff]
  %v795 = vld [vmem:[%s4 + $0x1b8] sm:$0xff]
  %v796 = vld [vmem:[%s4 + $0x1c0] sm:$0xff]
  %v797 = vld [vmem:[%s4 + $0x1c8] sm:$0xff]
  %v798 = vld [vmem:[%s4 + $0x1d0] sm:$0xff]
  %v799 = vld [vmem:[%s4 + $0x1d8] sm:$0xff]
  %v800 = vld [vmem:[%s4 + $0x1e0] sm:$0xff]
  %v801 = vld [vmem:[%s4 + $0x1e8] sm:$0xff]
  %v802 = vld [vmem:[%s4 + $0x1f0] sm:$0xff]
  %v803 = vld [vmem:[%s4 + $0x1f8] sm:$0xff]
  %s804 = smul.u32 0, 4
  %s805 = smul.addr %s804, 8
  %s806 = scalar_lea.vmem [#allocation2], %s805
  %v807 = vld [vmem:[%s806] sm:$0xff]
  %v808 = vld [vmem:[%s806 + $0x8] sm:$0xff]
  %v809 = vld [vmem:[%s806 + $0x10] sm:$0xff]
  %v810 = vld [vmem:[%s806 + $0x18] sm:$0xff]
  %811 = vmatprep.subr.mxu0 %v677
  %812 = vmatpush1.msra.mxu0 %v676
  %813 = vmatprep.subr.mxu0 %v681
  %814 = vmatpush1.msra.mxu0 %v680
  %815 = vmatprep.subr.mxu0 %v685
  %816 = vmatpush1.msra.mxu0 %v684
  %817 = vmatprep.subr.mxu0 %v689
  %818 = vmatpush1.msra.mxu0 %v688
  %819 = vmatprep.subr.mxu0 %v693
  %820 = vmatpush1.msra.mxu0 %v692
  %821 = vmatprep.subr.mxu0 %v697
  %822 = vmatpush1.msra.mxu0 %v696
  %823 = vmatprep.subr.mxu0 %v701
  %824 = vmatpush1.msra.mxu0 %v700
  %825 = vmatprep.subr.mxu0 %v705
  %826 = vmatpush1.msra.mxu0 %v704
  %827 = vmatprep.subr.mxu0 %v709
  %828 = vmatpush1.msra.mxu0 %v708
  %829 = vmatprep.subr.mxu0 %v713
  %830 = vmatpush1.msra.mxu0 %v712
  %831 = vmatprep.subr.mxu0 %v717
  %832 = vmatpush1.msra.mxu0 %v716
  %833 = vmatprep.subr.mxu0 %v721
  %834 = vmatpush1.msra.mxu0 %v720
  %835 = vmatprep.subr.mxu0 %v725
  %836 = vmatpush1.msra.mxu0 %v724
  %837 = vmatprep.subr.mxu0 %v729
  %838 = vmatpush1.msra.mxu0 %v728
  %839 = vmatprep.subr.mxu0 %v733
  %840 = vmatpush1.msra.mxu0 %v732
  %841 = vmatprep.subr.mxu0 %v737
  %842 = vmatpush1.msra.mxu0 %v736
  %843 = vmatprep.subr.mxu0 0.0
  %844 = vmatpush1.msra.mxu0 0.0
  %845 = vmatprep.subr.mxu0 0.0
  %846 = vmatpush1.msra.mxu0 0.0
  %847 = vmatprep.subr.mxu0 0.0
  %848 = vmatpush1.msra.mxu0 0.0
  %849 = vmatprep.subr.mxu0 0.0
  %850 = vmatpush1.msra.mxu0 0.0
  %851 = vmatprep.subr.mxu0 0.0
  %852 = vmatpush1.msra.mxu0 0.0
  %853 = vmatprep.subr.mxu0 0.0
  %854 = vmatpush1.msra.mxu0 0.0
  %855 = vmatprep.subr.mxu0 0.0
  %856 = vmatpush1.msra.mxu0 0.0
  %857 = vmatprep.subr.mxu0 0.0
  %858 = vmatpush1.msra.mxu0 0.0
  %859 = vmatprep.subr.mxu0 0.0
  %860 = vmatpush1.msra.mxu0 0.0
  %861 = vmatprep.subr.mxu0 0.0
  %862 = vmatpush1.msra.mxu0 0.0
  %863 = vmatprep.subr.mxu0 0.0
  %864 = vmatpush1.msra.mxu0 0.0
  %865 = vmatprep.subr.mxu0 0.0
  %866 = vmatpush1.msra.mxu0 0.0
  %867 = vmatprep.subr.mxu0 0.0
  %868 = vmatpush1.msra.mxu0 0.0
  %869 = vmatprep.subr.mxu0 0.0
  %870 = vmatpush1.msra.mxu0 0.0
  %871 = vmatprep.subr.mxu0 0.0
  %872 = vmatpush1.msra.mxu0 0.0
  %873 = vmatprep.subr.mxu0 0.0
  %874 = vmatpush1.msra.mxu0 0.0
  %875 = vmatprep.mubr.f32.mxu0 0.0
  %876 = vmatmul.mubr.f32.gmra.mrb[0].mxu0 0.0
  %v877 = vpop.f32.mrb[0].mxu0
  %v878 = vadd.f32 %v807, %v877
  %v879 = vpop.f32.mrb[0].mxu0
  %v880 = vadd.f32 %v808, %v879
  %881 = vdwg.mxu0
  %882 = vmatprep.subr.mxu0 %v679
  %883 = vmatpush1.msra.mxu0 %v678
  %884 = vmatprep.subr.mxu0 %v683
  %885 = vmatpush1.msra.mxu0 %v682
  %886 = vmatprep.subr.mxu0 %v687
  %887 = vmatpush1.msra.mxu0 %v686
  %888 = vmatprep.subr.mxu0 %v691
  %889 = vmatpush1.msra.mxu0 %v690
  %890 = vmatprep.subr.mxu0 %v695
  %891 = vmatpush1.msra.mxu0 %v694
  %892 = vmatprep.subr.mxu0 %v699
  %893 = vmatpush1.msra.mxu0 %v698
  %894 = vmatprep.subr.mxu0 %v703
  %895 = vmatpush1.msra.mxu0 %v702
  %896 = vmatprep.subr.mxu0 %v707
  %897 = vmatpush1.msra.mxu0 %v706
  %898 = vmatprep.subr.mxu0 %v711
  %899 = vmatpush1.msra.mxu0 %v710
  %900 = vmatprep.subr.mxu0 %v715
  %901 = vmatpush1.msra.mxu0 %v714
  %902 = vmatprep.subr.mxu0 %v719
  %903 = vmatpush1.msra.mxu0 %v718
  %904 = vmatprep.subr.mxu0 %v723
  %905 = vmatpush1.msra.mxu0 %v722
  %906 = vmatprep.subr.mxu0 %v727
  %907 = vmatpush1.msra.mxu0 %v726
  %908 = vmatprep.subr.mxu0 %v731
  %909 = vmatpush1.msra.mxu0 %v730
  %910 = vmatprep.subr.mxu0 %v735
  %911 = vmatpush1.msra.mxu0 %v734
  %912 = vmatprep.subr.mxu0 %v739
  %913 = vmatpush1.msra.mxu0 %v738
  %914 = vmatprep.subr.mxu0 0.0
  %915 = vmatpush1.msra.mxu0 0.0
  %916 = vmatprep.subr.mxu0 0.0
  %917 = vmatpush1.msra.mxu0 0.0
  %918 = vmatprep.subr.mxu0 0.0
  %919 = vmatpush1.msra.mxu0 0.0
  %920 = vmatprep.subr.mxu0 0.0
  %921 = vmatpush1.msra.mxu0 0.0
  %922 = vmatprep.subr.mxu0 0.0
  %923 = vmatpush1.msra.mxu0 0.0
  %924 = vmatprep.subr.mxu0 0.0
  %925 = vmatpush1.msra.mxu0 0.0
  %926 = vmatprep.subr.mxu0 0.0
  %927 = vmatpush1.msra.mxu0 0.0
  %928 = vmatprep.subr.mxu0 0.0
  %929 = vmatpush1.msra.mxu0 0.0
  %930 = vmatprep.subr.mxu0 0.0
  %931 = vmatpush1.msra.mxu0 0.0
  %932 = vmatprep.subr.mxu0 0.0
  %933 = vmatpush1.msra.mxu0 0.0
  %934 = vmatprep.subr.mxu0 0.0
  %935 = vmatpush1.msra.mxu0 0.0
  %936 = vmatprep.subr.mxu0 0.0
  %937 = vmatpush1.msra.mxu0 0.0
  %938 = vmatprep.subr.mxu0 0.0
  %939 = vmatpush1.msra.mxu0 0.0
  %940 = vmatprep.subr.mxu0 0.0
  %941 = vmatpush1.msra.mxu0 0.0
  %942 = vmatprep.subr.mxu0 0.0
  %943 = vmatpush1.msra.mxu0 0.0
  %944 = vmatprep.subr.mxu0 0.0
  %945 = vmatpush1.msra.mxu0 0.0
  %946 = vmatprep.mubr.f32.mxu0 0.0
  %947 = vmatmul.mubr.f32.gmra.mrb[0].mxu0 0.0
  %v948 = vpop.f32.mrb[0].mxu0
  %v949 = vadd.f32 %v809, %v948
  %v950 = vpop.f32.mrb[0].mxu0
  %v951 = vadd.f32 %v810, %v950
  %952 = vdwg.mxu0
  %s953 = smul.u32 7, 4
  %s954 = smul.addr %s953, 8
  %s955 = scalar_lea.vmem [#allocation3], %s954
  %v956 = vld [vmem:[%s955] sm:$0xff]
  %v957 = vld [vmem:[%s955 + $0x8] sm:$0xff]
  %v958 = vld [vmem:[%s955 + $0x10] sm:$0xff]
  %v959 = vld [vmem:[%s955 + $0x18] sm:$0xff]
  %960 = vmatprep.subr.mxu0 %v741
  %961 = vmatpush1.msra.mxu0 %v740
  %962 = vmatprep.subr.mxu0 %v745
  %963 = vmatpush1.msra.mxu0 %v744
  %964 = vmatprep.subr.mxu0 %v749
  %965 = vmatpush1.msra.mxu0 %v748
  %966 = vmatprep.subr.mxu0 %v753
  %967 = vmatpush1.msra.mxu0 %v752
  %968 = vmatprep.subr.mxu0 %v757
  %969 = vmatpush1.msra.mxu0 %v756
  %970 = vmatprep.subr.mxu0 %v761
  %971 = vmatpush1.msra.mxu0 %v760
  %972 = vmatprep.subr.mxu0 %v765
  %973 = vmatpush1.msra.mxu0 %v764
  %974 = vmatprep.subr.mxu0 %v769
  %975 = vmatpush1.msra.mxu0 %v768
  %976 = vmatprep.subr.mxu0 %v773
  %977 = vmatpush1.msra.mxu0 %v772
  %978 = vmatprep.subr.mxu0 %v777
  %979 = vmatpush1.msra.mxu0 %v776
  %980 = vmatprep.subr.mxu0 %v781
  %981 = vmatpush1.msra.mxu0 %v780
  %982 = vmatprep.subr.mxu0 %v785
  %983 = vmatpush1.msra.mxu0 %v784
  %984 = vmatprep.subr.mxu0 %v789
  %985 = vmatpush1.msra.mxu0 %v788
  %986 = vmatprep.subr.mxu0 %v793
  %987 = vmatpush1.msra.mxu0 %v792
  %988 = vmatprep.subr.mxu0 %v797
  %989 = vmatpush1.msra.mxu0 %v796
  %990 = vmatprep.subr.mxu0 %v801
  %991 = vmatpush1.msra.mxu0 %v800
  %992 = vmatprep.subr.mxu0 0.0
  %993 = vmatpush1.msra.mxu0 0.0
  %994 = vmatprep.subr.mxu0 0.0
  %995 = vmatpush1.msra.mxu0 0.0
  %996 = vmatprep.subr.mxu0 0.0
  %997 = vmatpush1.msra.mxu0 0.0
  %998 = vmatprep.subr.mxu0 0.0
  %999 = vmatpush1.msra.mxu0 0.0
  %1000 = vmatprep.subr.mxu0 0.0
  %1001 = vmatpush1.msra.mxu0 0.0
  %1002 = vmatprep.subr.mxu0 0.0
  %1003 = vmatpush1.msra.mxu0 0.0
  %1004 = vmatprep.subr.mxu0 0.0
  %1005 = vmatpush1.msra.mxu0 0.0
  %1006 = vmatprep.subr.mxu0 0.0
  %1007 = vmatpush1.msra.mxu0 0.0
  %1008 = vmatprep.subr.mxu0 0.0
  %1009 = vmatpush1.msra.mxu0 0.0
  %1010 = vmatprep.subr.mxu0 0.0
  %1011 = vmatpush1.msra.mxu0 0.0
  %1012 = vmatprep.subr.mxu0 0.0
  %1013 = vmatpush1.msra.mxu0 0.0
  %1014 = vmatprep.subr.mxu0 0.0
  %1015 = vmatpush1.msra.mxu0 0.0
  %1016 = vmatprep.subr.mxu0 0.0
  %1017 = vmatpush1.msra.mxu0 0.0
  %1018 = vmatprep.subr.mxu0 0.0
  %1019 = vmatpush1.msra.mxu0 0.0
  %1020 = vmatprep.subr.mxu0 0.0
  %1021 = vmatpush1.msra.mxu0 0.0
  %1022 = vmatprep.subr.mxu0 0.0
  %1023 = vmatpush1.msra.mxu0 0.0
  %1024 = vmatprep.mubr.f32.mxu0 0.0
  %1025 = vmatmul.mubr.f32.gmra.mrb[0].mxu0 0.0
  %v1026 = vpop.f32.mrb[0].mxu0
  %v1027 = vadd.f32 %v956, %v1026
  %v1028 = vpop.f32.mrb[0].mxu0
  %v1029 = vadd.f32 %v957, %v1028
  %1030 = vdwg.mxu0
  %1031 = vmatprep.subr.mxu0 %v743
  %1032 = vmatpush1.msra.mxu0 %v742
  %1033 = vmatprep.subr.mxu0 %v747
  %1034 = vmatpush1.msra.mxu0 %v746
  %1035 = vmatprep.subr.mxu0 %v751
  %1036 = vmatpush1.msra.mxu0 %v750
  %1037 = vmatprep.subr.mxu0 %v755
  %1038 = vmatpush1.msra.mxu0 %v754
  %1039 = vmatprep.subr.mxu0 %v759
  %1040 = vmatpush1.msra.mxu0 %v758
  %1041 = vmatprep.subr.mxu0 %v763
  %1042 = vmatpush1.msra.mxu0 %v762
  %1043 = vmatprep.subr.mxu0 %v767
  %1044 = vmatpush1.msra.mxu0 %v766
  %1045 = vmatprep.subr.mxu0 %v771
  %1046 = vmatpush1.msra.mxu0 %v770
  %1047 = vmatprep.subr.mxu0 %v775
  %1048 = vmatpush1.msra.mxu0 %v774
  %1049 = vmatprep.subr.mxu0 %v779
  %1050 = vmatpush1.msra.mxu0 %v778
  %1051 = vmatprep.subr.mxu0 %v783
  %1052 = vmatpush1.msra.mxu0 %v782
  %1053 = vmatprep.subr.mxu0 %v787
  %1054 = vmatpush1.msra.mxu0 %v786
  %1055 = vmatprep.subr.mxu0 %v791
  %1056 = vmatpush1.msra.mxu0 %v790
  %1057 = vmatprep.subr.mxu0 %v795
  %1058 = vmatpush1.msra.mxu0 %v794
  %1059 = vmatprep.subr.mxu0 %v799
  %1060 = vmatpush1.msra.mxu0 %v798
  %1061 = vmatprep.subr.mxu0 %v803
  %1062 = vmatpush1.msra.mxu0 %v802
  %1063 = vmatprep.subr.mxu0 0.0
  %1064 = vmatpush1.msra.mxu0 0.0
  %1065 = vmatprep.subr.mxu0 0.0
  %1066 = vmatpush1.msra.mxu0 0.0
  %1067 = vmatprep.subr.mxu0 0.0
  %1068 = vmatpush1.msra.mxu0 0.0
  %1069 = vmatprep.subr.mxu0 0.0
  %1070 = vmatpush1.msra.mxu0 0.0
  %1071 = vmatprep.subr.mxu0 0.0
  %1072 = vmatpush1.msra.mxu0 0.0
  %1073 = vmatprep.subr.mxu0 0.0
  %1074 = vmatpush1.msra.mxu0 0.0
  %1075 = vmatprep.subr.mxu0 0.0
  %1076 = vmatpush1.msra.mxu0 0.0
  %1077 = vmatprep.subr.mxu0 0.0
  %1078 = vmatpush1.msra.mxu0 0.0
  %1079 = vmatprep.subr.mxu0 0.0
  %1080 = vmatpush1.msra.mxu0 0.0
  %1081 = vmatprep.subr.mxu0 0.0
  %1082 = vmatpush1.msra.mxu0 0.0
  %1083 = vmatprep.subr.mxu0 0.0
  %1084 = vmatpush1.msra.mxu0 0.0
  %1085 = vmatprep.subr.mxu0 0.0
  %1086 = vmatpush1.msra.mxu0 0.0
  %1087 = vmatprep.subr.mxu0 0.0
  %1088 = vmatpush1.msra.mxu0 0.0
  %1089 = vmatprep.subr.mxu0 0.0
  %1090 = vmatpush1.msra.mxu0 0.0
  %1091 = vmatprep.subr.mxu0 0.0
  %1092 = vmatpush1.msra.mxu0 0.0
  %1093 = vmatprep.subr.mxu0 0.0
  %1094 = vmatpush1.msra.mxu0 0.0
  %1095 = vmatprep.mubr.f32.mxu0 0.0
  %1096 = vmatmul.mubr.f32.gmra.mrb[0].mxu0 0.0
  %v1097 = vpop.f32.mrb[0].mxu0
  %v1098 = vadd.f32 %v958, %v1097
  %v1099 = vpop.f32.mrb[0].mxu0
  %v1100 = vadd.f32 %v959, %v1099
  %1101 = vdwg.mxu0
  %v1102 = vxor.u32 %v878, 2147483648
  %v1103 = vmul.f32 %v1102, 1.442695
  %v1104 = vpow.pop %v1103
  %v1105 = vadd.f32 %v1104, 1.0
  %v1106 = vrcp.pop %v1105
  %v1107 = vmul.f32 1.0, %v1106
  %v1108 = vxor.u32 %v880, 2147483648
  %v1109 = vmul.f32 %v1108, 1.442695
  %v1110 = vpow.pop %v1109
  %v1111 = vadd.f32 %v1110, 1.0
  %v1112 = vrcp.pop %v1111
  %v1113 = vmul.f32 1.0, %v1112
  %v1114 = vtanh.pop %v949
  %v1115 = vxor.u32 %v951, 2147483648
  %v1116 = vmul.f32 %v1115, 1.442695
  %v1117 = vpow.pop %v1116
  %v1118 = vadd.f32 %v1117, 1.0
  %v1119 = vrcp.pop %v1118
  %v1120 = vmul.f32 1.0, %v1119
  %v1121 = vmul.f32 %v1113, 0.0
  %v1122 = vmul.f32 %v1107, %v1114
  %v1123 = vadd.f32 %v1121, %v1122
  %v1124 = vtanh.pop %v1123
  %v1125 = vmul.f32 %v1120, %v1124
  %v1126 = vxor.u32 %v1027, 2147483648
  %v1127 = vmul.f32 %v1126, 1.442695
  %v1128 = vpow.pop %v1127
  %v1129 = vadd.f32 %v1128, 1.0
  %v1130 = vrcp.pop %v1129
  %v1131 = vmul.f32 1.0, %v1130
  %v1132 = vxor.u32 %v1029, 2147483648
  %v1133 = vmul.f32 %v1132, 1.442695
  %v1134 = vpow.pop %v1133
  %v1135 = vadd.f32 %v1134, 1.0
  %v1136 = vrcp.pop %v1135
  %v1137 = vmul.f32 1.0, %v1136
  %v1138 = vtanh.pop %v1098
  %v1139 = vxor.u32 %v1100, 2147483648
  %v1140 = vmul.f32 %v1139, 1.442695
  %v1141 = vpow.pop %v1140
  %v1142 = vadd.f32 %v1141, 1.0
  %v1143 = vrcp.pop %v1142
  %v1144 = vmul.f32 1.0, %v1143
  %v1145 = vmul.f32 %v1137, 0.0
  %v1146 = vmul.f32 %v1131, %v1138
  %v1147 = vadd.f32 %v1145, %v1146
  %v1148 = vtanh.pop %v1147
  %v1149 = vmul.f32 %v1144, %v1148
  %1150 = vst [vmem:[#allocation4] sm:$0xff] %v1125
  %s1151 = scalar_lea.vmem [#allocation5], 56
  %1152 = vst [vmem:[%s1151] sm:$0xff] %v1149
  %v1153 = vld [vmem:[%s3] sm:$0xff]
  %v1154 = vld [vmem:[%s3 + $0x8] sm:$0xff]
  %v1155 = vld [vmem:[%s3 + $0x10] sm:$0xff]
  %v1156 = vld [vmem:[%s3 + $0x18] sm:$0xff]
  %v1157 = vld [vmem:[%s3 + $0x20] sm:$0xff]
  %v1158 = vld [vmem:[%s3 + $0x28] sm:$0xff]
  %v1159 = vld [vmem:[%s3 + $0x30] sm:$0xff]
  %v1160 = vld [vmem:[%s3 + $0x38] sm:$0xff]
  %v1161 = vld [vmem:[%s3 + $0x40] sm:$0xff]
  %v1162 = vld [vmem:[%s3 + $0x48] sm:$0xff]
  %v1163 = vld [vmem:[%s3 + $0x50] sm:$0xff]
  %v1164 = vld [vmem:[%s3 + $0x58] sm:$0xff]
  %v1165 = vld [vmem:[%s3 + $0x60] sm:$0xff]
  %v1166 = vld [vmem:[%s3 + $0x68] sm:$0xff]
  %v1167 = vld [vmem:[%s3 + $0x70] sm:$0xff]
  %v1168 = vld [vmem:[%s3 + $0x78] sm:$0xff]
  %v1169 = vld [vmem:[%s3 + $0x80] sm:$0xff]
  %v1170 = vld [vmem:[%s3 + $0x88] sm:$0xff]
  %v1171 = vld [vmem:[%s3 + $0x90] sm:$0xff]
  %v1172 = vld [vmem:[%s3 + $0x98] sm:$0xff]
  %v1173 = vld [vmem:[%s3 + $0xa0] sm:$0xff]
  %v1174 = vld [vmem:[%s3 + $0xa8] sm:$0xff]
  %v1175 = vld [vmem:[%s3 + $0xb0] sm:$0xff]
  %v1176 = vld [vmem:[%s3 + $0xb8] sm:$0xff]
  %v1177 = vld [vmem:[%s3 + $0xc0] sm:$0xff]
  %v1178 = vld [vmem:[%s3 + $0xc8] sm:$0xff]
  %v1179 = vld [vmem:[%s3 + $0xd0] sm:$0xff]
  %v1180 = vld [vmem:[%s3 + $0xd8] sm:$0xff]
  %v1181 = vld [vmem:[%s3 + $0xe0] sm:$0xff]
  %v1182 = vld [vmem:[%s3 + $0xe8] sm:$0xff]
  %v1183 = vld [vmem:[%s3 + $0xf0] sm:$0xff]
  %v1184 = vld [vmem:[%s3 + $0xf8] sm:$0xff]
  %v1185 = vld [vmem:[%s3 + $0x100] sm:$0xff]
  %v1186 = vld [vmem:[%s3 + $0x108] sm:$0xff]
  %v1187 = vld [vmem:[%s3 + $0x110] sm:$0xff]
  %v1188 = vld [vmem:[%s3 + $0x118] sm:$0xff]
  %v1189 = vld [vmem:[%s3 + $0x120] sm:$0xff]
  %v1190 = vld [vmem:[%s3 + $0x128] sm:$0xff]
  %v1191 = vld [vmem:[%s3 + $0x130] sm:$0xff]
  %v1192 = vld [vmem:[%s3 + $0x138] sm:$0xff]
  %v1193 = vld [vmem:[%s3 + $0x140] sm:$0xff]
  %v1194 = vld [vmem:[%s3 + $0x148] sm:$0xff]
  %v1195 = vld [vmem:[%s3 + $0x150] sm:$0xff]
  %v1196 = vld [vmem:[%s3 + $0x158] sm:$0xff]
  %v1197 = vld [vmem:[%s3 + $0x160] sm:$0xff]
  %v1198 = vld [vmem:[%s3 + $0x168] sm:$0xff]
  %v1199 = vld [vmem:[%s3 + $0x170] sm:$0xff]
  %v1200 = vld [vmem:[%s3 + $0x178] sm:$0xff]
  %v1201 = vld [vmem:[%s3 + $0x180] sm:$0xff]
  %v1202 = vld [vmem:[%s3 + $0x188] sm:$0xff]
  %v1203 = vld [vmem:[%s3 + $0x190] sm:$0xff]
  %v1204 = vld [vmem:[%s3 + $0x198] sm:$0xff]
  %v1205 = vld [vmem:[%s3 + $0x1a0] sm:$0xff]
  %v1206 = vld [vmem:[%s3 + $0x1a8] sm:$0xff]
  %v1207 = vld [vmem:[%s3 + $0x1b0] sm:$0xff]
  %v1208 = vld [vmem:[%s3 + $0x1b8] sm:$0xff]
  %v1209 = vld [vmem:[%s3 + $0x1c0] sm:$0xff]
  %v1210 = vld [vmem:[%s3 + $0x1c8] sm:$0xff]
  %v1211 = vld [vmem:[%s3 + $0x1d0] sm:$0xff]
  %v1212 = vld [vmem:[%s3 + $0x1d8] sm:$0xff]
  %v1213 = vld [vmem:[%s3 + $0x1e0] sm:$0xff]
  %v1214 = vld [vmem:[%s3 + $0x1e8] sm:$0xff]
  %v1215 = vld [vmem:[%s3 + $0x1f0] sm:$0xff]
  %v1216 = vld [vmem:[%s3 + $0x1f8] sm:$0xff]
  %v1217 = vld [vmem:[%s4] sm:$0xff]
  %v1218 = vld [vmem:[%s4 + $0x8] sm:$0xff]
  %v1219 = vld [vmem:[%s4 + $0x10] sm:$0xff]
  %v1220 = vld [vmem:[%s4 + $0x18] sm:$0xff]
  %v1221 = vld [vmem:[%s4 + $0x20] sm:$0xff]
  %v1222 = vld [vmem:[%s4 + $0x28] sm:$0xff]
  %v1223 = vld [vmem:[%s4 + $0x30] sm:$0xff]
  %v1224 = vld [vmem:[%s4 + $0x38] sm:$0xff]
  %v1225 = vld [vmem:[%s4 + $0x40] sm:$0xff]
  %v1226 = vld [vmem:[%s4 + $0x48] sm:$0xff]
  %v1227 = vld [vmem:[%s4 + $0x50] sm:$0xff]
  %v1228 = vld [vmem:[%s4 + $0x58] sm:$0xff]
  %v1229 = vld [vmem:[%s4 + $0x60] sm:$0xff]
  %v1230 = vld [vmem:[%s4 + $0x68] sm:$0xff]
  %v1231 = vld [vmem:[%s4 + $0x70] sm:$0xff]
  %v1232 = vld [vmem:[%s4 + $0x78] sm:$0xff]
  %v1233 = vld [vmem:[%s4 + $0x80] sm:$0xff]
  %v1234 = vld [vmem:[%s4 + $0x88] sm:$0xff]
  %v1235 = vld [vmem:[%s4 + $0x90] sm:$0xff]
  %v1236 = vld [vmem:[%s4 + $0x98] sm:$0xff]
  %v1237 = vld [vmem:[%s4 + $0xa0] sm:$0xff]
  %v1238 = vld [vmem:[%s4 + $0xa8] sm:$0xff]
  %v1239 = vld [vmem:[%s4 + $0xb0] sm:$0xff]
  %v1240 = vld [vmem:[%s4 + $0xb8] sm:$0xff]
  %v1241 = vld [vmem:[%s4 + $0xc0] sm:$0xff]
  %v1242 = vld [vmem:[%s4 + $0xc8] sm:$0xff]
  %v1243 = vld [vmem:[%s4 + $0xd0] sm:$0xff]
  %v1244 = vld [vmem:[%s4 + $0xd8] sm:$0xff]
  %v1245 = vld [vmem:[%s4 + $0xe0] sm:$0xff]
  %v1246 = vld [vmem:[%s4 + $0xe8] sm:$0xff]
  %v1247 = vld [vmem:[%s4 + $0xf0] sm:$0xff]
  %v1248 = vld [vmem:[%s4 + $0xf8] sm:$0xff]
  %v1249 = vld [vmem:[%s4 + $0x100] sm:$0xff]
  %v1250 = vld [vmem:[%s4 + $0x108] sm:$0xff]
  %v1251 = vld [vmem:[%s4 + $0x110] sm:$0xff]
  %v1252 = vld [vmem:[%s4 + $0x118] sm:$0xff]
  %v1253 = vld [vmem:[%s4 + $0x120] sm:$0xff]
  %v1254 = vld [vmem:[%s4 + $0x128] sm:$0xff]
  %v1255 = vld [vmem:[%s4 + $0x130] sm:$0xff]
  %v1256 = vld [vmem:[%s4 + $0x138] sm:$0xff]
  %v1257 = vld [vmem:[%s4 + $0x140] sm:$0xff]
  %v1258 = vld [vmem:[%s4 + $0x148] sm:$0xff]
  %v1259 = vld [vmem:[%s4 + $0x150] sm:$0xff]
  %v1260 = vld [vmem:[%s4 + $0x158] sm:$0xff]
  %v1261 = vld [vmem:[%s4 + $0x160] sm:$0xff]
  %v1262 = vld [vmem:[%s4 + $0x168] sm:$0xff]
  %v1263 = vld [vmem:[%s4 + $0x170] sm:$0xff]
  %v1264 = vld [vmem:[%s4 + $0x178] sm:$0xff]
  %v1265 = vld [vmem:[%s4 + $0x180] sm:$0xff]
  %v1266 = vld [vmem:[%s4 + $0x188] sm:$0xff]
  %v1267 = vld [vmem:[%s4 + $0x190] sm:$0xff]
  %v1268 = vld [vmem:[%s4 + $0x198] sm:$0xff]
  %v1269 = vld [vmem:[%s4 + $0x1a0] sm:$0xff]
  %v1270 = vld [vmem:[%s4 + $0x1a8] sm:$0xff]
  %v1271 = vld [vmem:[%s4 + $0x1b0] sm:$0xff]
  %v1272 = vld [vmem:[%s4 + $0x1b8] sm:$0xff]
  %v1273 = vld [vmem:[%s4 + $0x1c0] sm:$0xff]
  %v1274 = vld [vmem:[%s4 + $0x1c8] sm:$0xff]
  %v1275 = vld [vmem:[%s4 + $0x1d0] sm:$0xff]
  %v1276 = vld [vmem:[%s4 + $0x1d8] sm:$0xff]
  %v1277 = vld [vmem:[%s4 + $0x1e0] sm:$0xff]
  %v1278 = vld [vmem:[%s4 + $0x1e8] sm:$0xff]
  %v1279 = vld [vmem:[%s4 + $0x1f0] sm:$0xff]
  %v1280 = vld [vmem:[%s4 + $0x1f8] sm:$0xff]
  %s1281 = smul.u32 1, 4
  %s1282 = smul.addr %s1281, 8
  %s1283 = scalar_lea.vmem [#allocation2], %s1282
  %v1284 = vld [vmem:[%s1283] sm:$0xff]
  %v1285 = vld [vmem:[%s1283 + $0x8] sm:$0xff]
  %v1286 = vld [vmem:[%s1283 + $0x10] sm:$0xff]
  %v1287 = vld [vmem:[%s1283 + $0x18] sm:$0xff]
  %1288 = vmatprep.subr.mxu0 %v1154
  %1289 = vmatpush1.msra.mxu0 %v1153
  %1290 = vmatprep.subr.mxu0 %v1158
  %1291 = vmatpush1.msra.mxu0 %v1157
  %1292 = vmatprep.subr.mxu0 %v1162
  %1293 = vmatpush1.msra.mxu0 %v1161
  %1294 = vmatprep.subr.mxu0 %v1166
  %1295 = vmatpush1.msra.mxu0 %v1165
  %1296 = vmatprep.subr.mxu0 %v1170
  %1297 = vmatpush1.msra.mxu0 %v1169
  %1298 = vmatprep.subr.mxu0 %v1174
  %1299 = vmatpush1.msra.mxu0 %v1173
  %1300 = vmatprep.subr.mxu0 %v1178
  %1301 = vmatpush1.msra.mxu0 %v1177
  %1302 = vmatprep.subr.mxu0 %v1182
  %1303 = vmatpush1.msra.mxu0 %v1181
  %1304 = vmatprep.subr.mxu0 %v1186
  %1305 = vmatpush1.msra.mxu0 %v1185
  %1306 = vmatprep.subr.mxu0 %v1190
  %1307 = vmatpush1.msra.mxu0 %v1189
  %1308 = vmatprep.subr.mxu0 %v1194
  %1309 = vmatpush1.msra.mxu0 %v1193
  %1310 = vmatprep.subr.mxu0 %v1198
  %1311 = vmatpush1.msra.mxu0 %v1197
  %1312 = vmatprep.subr.mxu0 %v1202
  %1313 = vmatpush1.msra.mxu0 %v1201
  %1314 = vmatprep.subr.mxu0 %v1206
  %1315 = vmatpush1.msra.mxu0 %v1205
  %1316 = vmatprep.subr.mxu0 %v1210
  %1317 = vmatpush1.msra.mxu0 %v1209
  %1318 = vmatprep.subr.mxu0 %v1214
  %1319 = vmatpush1.msra.mxu0 %v1213
  %1320 = vmatprep.subr.mxu0 0.0
  %1321 = vmatpush1.msra.mxu0 0.0
  %1322 = vmatprep.subr.mxu0 0.0
  %1323 = vmatpush1.msra.mxu0 0.0
  %1324 = vmatprep.subr.mxu0 0.0
  %1325 = vmatpush1.msra.mxu0 0.0
  %1326 = vmatprep.subr.mxu0 0.0
  %1327 = vmatpush1.msra.mxu0 0.0
  %1328 = vmatprep.subr.mxu0 0.0
  %1329 = vmatpush1.msra.mxu0 0.0
  %1330 = vmatprep.subr.mxu0 0.0
  %1331 = vmatpush1.msra.mxu0 0.0
  %1332 = vmatprep.subr.mxu0 0.0
  %1333 = vmatpush1.msra.mxu0 0.0
  %1334 = vmatprep.subr.mxu0 0.0
  %1335 = vmatpush1.msra.mxu0 0.0
  %1336 = vmatprep.subr.mxu0 0.0
  %1337 = vmatpush1.msra.mxu0 0.0
  %1338 = vmatprep.subr.mxu0 0.0
  %1339 = vmatpush1.msra.mxu0 0.0
  %1340 = vmatprep.subr.mxu0 0.0
  %1341 = vmatpush1.msra.mxu0 0.0
  %1342 = vmatprep.subr.mxu0 0.0
  %1343 = vmatpush1.msra.mxu0 0.0
  %1344 = vmatprep.subr.mxu0 0.0
  %1345 = vmatpush1.msra.mxu0 0.0
  %1346 = vmatprep.subr.mxu0 0.0
  %1347 = vmatpush1.msra.mxu0 0.0
  %1348 = vmatprep.subr.mxu0 0.0
  %1349 = vmatpush1.msra.mxu0 0.0
  %1350 = vmatprep.subr.mxu0 0.0
  %1351 = vmatpush1.msra.mxu0 0.0
  %1352 = vmatprep.mubr.f32.mxu0 0.0
  %1353 = vmatmul.mubr.f32.gmra.mrb[0].mxu0 %v1125
  %v1354 = vpop.f32.mrb[0].mxu0
  %v1355 = vadd.f32 %v1284, %v1354
  %v1356 = vpop.f32.mrb[0].mxu0
  %v1357 = vadd.f32 %v1285, %v1356
  %1358 = vdwg.mxu0
  %1359 = vmatprep.subr.mxu0 %v1156
  %1360 = vmatpush1.msra.mxu0 %v1155
  %1361 = vmatprep.subr.mxu0 %v1160
  %1362 = vmatpush1.msra.mxu0 %v1159
  %1363 = vmatprep.subr.mxu0 %v1164
  %1364 = vmatpush1.msra.mxu0 %v1163
  %1365 = vmatprep.subr.mxu0 %v1168
  %1366 = vmatpush1.msra.mxu0 %v1167
  %1367 = vmatprep.subr.mxu0 %v1172
  %1368 = vmatpush1.msra.mxu0 %v1171
  %1369 = vmatprep.subr.mxu0 %v1176
  %1370 = vmatpush1.msra.mxu0 %v1175
  %1371 = vmatprep.subr.mxu0 %v1180
  %1372 = vmatpush1.msra.mxu0 %v1179
  %1373 = vmatprep.subr.mxu0 %v1184
  %1374 = vmatpush1.msra.mxu0 %v1183
  %1375 = vmatprep.subr.mxu0 %v1188
  %1376 = vmatpush1.msra.mxu0 %v1187
  %1377 = vmatprep.subr.mxu0 %v1192
  %1378 = vmatpush1.msra.mxu0 %v1191
  %1379 = vmatprep.subr.mxu0 %v1196
  %1380 = vmatpush1.msra.mxu0 %v1195
  %1381 = vmatprep.subr.mxu0 %v1200
  %1382 = vmatpush1.msra.mxu0 %v1199
  %1383 = vmatprep.subr.mxu0 %v1204
  %1384 = vmatpush1.msra.mxu0 %v1203
  %1385 = vmatprep.subr.mxu0 %v1208
  %1386 = vmatpush1.msra.mxu0 %v1207
  %1387 = vmatprep.subr.mxu0 %v1212
  %1388 = vmatpush1.msra.mxu0 %v1211
  %1389 = vmatprep.subr.mxu0 %v1216
  %1390 = vmatpush1.msra.mxu0 %v1215
  %1391 = vmatprep.subr.mxu0 0.0
  %1392 = vmatpush1.msra.mxu0 0.0
  %1393 = vmatprep.subr.mxu0 0.0
  %1394 = vmatpush1.msra.mxu0 0.0
  %1395 = vmatprep.subr.mxu0 0.0
  %1396 = vmatpush1.msra.mxu0 0.0
  %1397 = vmatprep.subr.mxu0 0.0
  %1398 = vmatpush1.msra.mxu0 0.0
  %1399 = vmatprep.subr.mxu0 0.0
  %1400 = vmatpush1.msra.mxu0 0.0
  %1401 = vmatprep.subr.mxu0 0.0
  %1402 = vmatpush1.msra.mxu0 0.0
  %1403 = vmatprep.subr.mxu0 0.0
  %1404 = vmatpush1.msra.mxu0 0.0
  %1405 = vmatprep.subr.mxu0 0.0
  %1406 = vmatpush1.msra.mxu0 0.0
  %1407 = vmatprep.subr.mxu0 0.0
  %1408 = vmatpush1.msra.mxu0 0.0
  %1409 = vmatprep.subr.mxu0 0.0
  %1410 = vmatpush1.msra.mxu0 0.0
  %1411 = vmatprep.subr.mxu0 0.0
  %1412 = vmatpush1.msra.mxu0 0.0
  %1413 = vmatprep.subr.mxu0 0.0
  %1414 = vmatpush1.msra.mxu0 0.0
  %1415 = vmatprep.subr.mxu0 0.0
  %1416 = vmatpush1.msra.mxu0 0.0
  %1417 = vmatprep.subr.mxu0 0.0
  %1418 = vmatpush1.msra.mxu0 0.0
  %1419 = vmatprep.subr.mxu0 0.0
  %1420 = vmatpush1.msra.mxu0 0.0
  %1421 = vmatprep.subr.mxu0 0.0
  %1422 = vmatpush1.msra.mxu0 0.0
  %1423 = vmatprep.mubr.f32.mxu0 0.0
  %1424 = vmatmul.mubr.f32.gmra.mrb[0].mxu0 %v1125
  %v1425 = vpop.f32.mrb[0].mxu0
  %v1426 = vadd.f32 %v1286, %v1425
  %v1427 = vpop.f32.mrb[0].mxu0
  %v1428 = vadd.f32 %v1287, %v1427
  %1429 = vdwg.mxu0
  %s1430 = smul.u32 6, 4
  %s1431 = smul.addr %s1430, 8
  %s1432 = scalar_lea.vmem [#allocation3], %s1431
  %v1433 = vld [vmem:[%s1432] sm:$0xff]
  %v1434 = vld [vmem:[%s1432 + $0x8] sm:$0xff]
  %v1435 = vld [vmem:[%s1432 + $0x10] sm:$0xff]
  %v1436 = vld [vmem:[%s1432 + $0x18] sm:$0xff]
  %1437 = vmatprep.subr.mxu0 %v1218
  %1438 = vmatpush1.msra.mxu0 %v1217
  %1439 = vmatprep.subr.mxu0 %v1222
  %1440 = vmatpush1.msra.mxu0 %v1221
  %1441 = vmatprep.subr.mxu0 %v1226
  %1442 = vmatpush1.msra.mxu0 %v1225
  %1443 = vmatprep.subr.mxu0 %v1230
  %1444 = vmatpush1.msra.mxu0 %v1229
  %1445 = vmatprep.subr.mxu0 %v1234
  %1446 = vmatpush1.msra.mxu0 %v1233
  %1447 = vmatprep.subr.mxu0 %v1238
  %1448 = vmatpush1.msra.mxu0 %v1237
  %1449 = vmatprep.subr.mxu0 %v1242
  %1450 = vmatpush1.msra.mxu0 %v1241
  %1451 = vmatprep.subr.mxu0 %v1246
  %1452 = vmatpush1.msra.mxu0 %v1245
  %1453 = vmatprep.subr.mxu0 %v1250
  %1454 = vmatpush1.msra.mxu0 %v1249
  %1455 = vmatprep.subr.mxu0 %v1254
  %1456 = vmatpush1.msra.mxu0 %v1253
  %1457 = vmatprep.subr.mxu0 %v1258
  %1458 = vmatpush1.msra.mxu0 %v1257
  %1459 = vmatprep.subr.mxu0 %v1262
  %1460 = vmatpush1.msra.mxu0 %v1261
  %1461 = vmatprep.subr.mxu0 %v1266
  %1462 = vmatpush1.msra.mxu0 %v1265
  %1463 = vmatprep.subr.mxu0 %v1270
  %1464 = vmatpush1.msra.mxu0 %v1269
  %1465 = vmatprep.subr.mxu0 %v1274
  %1466 = vmatpush1.msra.mxu0 %v1273
  %1467 = vmatprep.subr.mxu0 %v1278
  %1468 = vmatpush1.msra.mxu0 %v1277
  %1469 = vmatprep.subr.mxu0 0.0
  %1470 = vmatpush1.msra.mxu0 0.0
  %1471 = vmatprep.subr.mxu0 0.0
  %1472 = vmatpush1.msra.mxu0 0.0
  %1473 = vmatprep.subr.mxu0 0.0
  %1474 = vmatpush1.msra.mxu0 0.0
  %1475 = vmatprep.subr.mxu0 0.0
  %1476 = vmatpush1.msra.mxu0 0.0
  %1477 = vmatprep.subr.mxu0 0.0
  %1478 = vmatpush1.msra.mxu0 0.0
  %1479 = vmatprep.subr.mxu0 0.0
  %1480 = vmatpush1.msra.mxu0 0.0
  %1481 = vmatprep.subr.mxu0 0.0
  %1482 = vmatpush1.msra.mxu0 0.0
  %1483 = vmatprep.subr.mxu0 0.0
  %1484 = vmatpush1.msra.mxu0 0.0
  %1485 = vmatprep.subr.mxu0 0.0
  %1486 = vmatpush1.msra.mxu0 0.0
  %1487 = vmatprep.subr.mxu0 0.0
  %1488 = vmatpush1.msra.mxu0 0.0
  %1489 = vmatprep.subr.mxu0 0.0
  %1490 = vmatpush1.msra.mxu0 0.0
  %1491 = vmatprep.subr.mxu0 0.0
  %1492 = vmatpush1.msra.mxu0 0.0
  %1493 = vmatprep.subr.mxu0 0.0
  %1494 = vmatpush1.msra.mxu0 0.0
  %1495 = vmatprep.subr.mxu0 0.0
  %1496 = vmatpush1.msra.mxu0 0.0
  %1497 = vmatprep.subr.mxu0 0.0
  %1498 = vmatpush1.msra.mxu0 0.0
  %1499 = vmatprep.subr.mxu0 0.0
  %1500 = vmatpush1.msra.mxu0 0.0
  %1501 = vmatprep.mubr.f32.mxu0 0.0
  %1502 = vmatmul.mubr.f32.gmra.mrb[0].mxu0 %v1149
  %v1503 = vpop.f32.mrb[0].mxu0
  %v1504 = vadd.f32 %v1433, %v1503
  %v1505 = vpop.f32.mrb[0].mxu0
  %v1506 = vadd.f32 %v1434, %v1505
  %1507 = vdwg.mxu0
  %1508 = vmatprep.subr.mxu0 %v1220
  %1509 = vmatpush1.msra.mxu0 %v1219
  %1510 = vmatprep.subr.mxu0 %v1224
  %1511 = vmatpush1.msra.mxu0 %v1223
  %1512 = vmatprep.subr.mxu0 %v1228
  %1513 = vmatpush1.msra.mxu0 %v1227
  %1514 = vmatprep.subr.mxu0 %v1232
  %1515 = vmatpush1.msra.mxu0 %v1231
  %1516 = vmatprep.subr.mxu0 %v1236
  %1517 = vmatpush1.msra.mxu0 %v1235
  %1518 = vmatprep.subr.mxu0 %v1240
  %1519 = vmatpush1.msra.mxu0 %v1239
  %1520 = vmatprep.subr.mxu0 %v1244
  %1521 = vmatpush1.msra.mxu0 %v1243
  %1522 = vmatprep.subr.mxu0 %v1248
  %1523 = vmatpush1.msra.mxu0 %v1247
  %1524 = vmatprep.subr.mxu0 %v1252
  %1525 = vmatpush1.msra.mxu0 %v1251
  %1526 = vmatprep.subr.mxu0 %v1256
  %1527 = vmatpush1.msra.mxu0 %v1255
  %1528 = vmatprep.subr.mxu0 %v1260
  %1529 = vmatpush1.msra.mxu0 %v1259
  %1530 = vmatprep.subr.mxu0 %v1264
  %1531 = vmatpush1.msra.mxu0 %v1263
  %1532 = vmatprep.subr.mxu0 %v1268
  %1533 = vmatpush1.msra.mxu0 %v1267
  %1534 = vmatprep.subr.mxu0 %v1272
  %1535 = vmatpush1.msra.mxu0 %v1271
  %1536 = vmatprep.subr.mxu0 %v1276
  %1537 = vmatpush1.msra.mxu0 %v1275
  %1538 = vmatprep.subr.mxu0 %v1280
  %1539 = vmatpush1.msra.mxu0 %v1279
  %1540 = vmatprep.subr.mxu0 0.0
  %1541 = vmatpush1.msra.mxu0 0.0
  %1542 = vmatprep.subr.mxu0 0.0
  %1543 = vmatpush1.msra.mxu0 0.0
  %1544 = vmatprep.subr.mxu0 0.0
  %1545 = vmatpush1.msra.mxu0 0.0
  %1546 = vmatprep.subr.mxu0 0.0
  %1547 = vmatpush1.msra.mxu0 0.0
  %1548 = vmatprep.subr.mxu0 0.0
  %1549 = vmatpush1.msra.mxu0 0.0
  %1550 = vmatprep.subr.mxu0 0.0
  %1551 = vmatpush1.msra.mxu0 0.0
  %1552 = vmatprep.subr.mxu0 0.0
  %1553 = vmatpush1.msra.mxu0 0.0
  %1554 = vmatprep.subr.mxu0 0.0
  %1555 = vmatpush1.msra.mxu0 0.0
  %1556 = vmatprep.subr.mxu0 0.0
  %1557 = vmatpush1.msra.mxu0 0.0
  %1558 = vmatprep.subr.mxu0 0.0
  %1559 = vmatpush1.msra.mxu0 0.0
  %1560 = vmatprep.subr.mxu0 0.0
  %1561 = vmatpush1.msra.mxu0 0.0
  %1562 = vmatprep.subr.mxu0 0.0
  %1563 = vmatpush1.msra.mxu0 0.0
  %1564 = vmatprep.subr.mxu0 0.0
  %1565 = vmatpush1.msra.mxu0 0.0
  %1566 = vmatprep.subr.mxu0 0.0
  %1567 = vmatpush1.msra.mxu0 0.0
  %1568 = vmatprep.subr.mxu0 0.0
  %1569 = vmatpush1.msra.mxu0 0.0
  %1570 = vmatprep.subr.mxu0 0.0
  %1571 = vmatpush1.msra.mxu0 0.0
  %1572 = vmatprep.mubr.f32.mxu0 0.0
  %1573 = vmatmul.mubr.f32.gmra.mrb[0].mxu0 %v1149
  %v1574 = vpop.f32.mrb[0].mxu0
  %v1575 = vadd.f32 %v1435, %v1574
  %v1576 = vpop.f32.mrb[0].mxu0
  %v1577 = vadd.f32 %v1436, %v1576
  %1578 = vdwg.mxu0
  %v1579 = vxor.u32 %v1355, 2147483648
  %v1580 = vmul.f32 %v1579, 1.442695
  %v1581 = vpow.pop %v1580
  %v1582 = vadd.f32 %v1581, 1.0
  %v1583 = vrcp.pop %v1582
  %v1584 = vmul.f32 1.0, %v1583
  %v1585 = vxor.u32 %v1357, 2147483648
  %v1586 = vmul.f32 %v1585, 1.442695
  %v1587 = vpow.pop %v1586
  %v1588 = vadd.f32 %v1587, 1.0
  %v1589 = vrcp.pop %v1588
  %v1590 = vmul.f32 1.0, %v1589
  %v1591 = vtanh.pop %v1426
  %v1592 = vxor.u32 %v1428, 2147483648
  %v1593 = vmul.f32 %v1592, 1.442695
  %v1594 = vpow.pop %v1593
  %v1595 = vadd.f32 %v1594, 1.0
  %v1596 = vrcp.pop %v1595
  %v1597 = vmul.f32 1.0, %v1596
  %v1598 = vmul.f32 %v1590, %v1123
  %v1599 = vmul.f32 %v1584, %v1591
  %v1600 = vadd.f32 %v1598, %v1599
  %v1601 = vtanh.pop %v1600
  %v1602 = vmul.f32 %v1597, %v1601
  %v1603 = vxor.u32 %v1504, 2147483648
  %v1604 = vmul.f32 %v1603, 1.442695
  %v1605 = vpow.pop %v1604
  %v1606 = vadd.f32 %v1605, 1.0
  %v1607 = vrcp.pop %v1606
  %v1608 = vmul.f32 1.0, %v1607
  %v1609 = vxor.u32 %v1506, 2147483648
  %v1610 = vmul.f32 %v1609, 1.442695
  %v1611 = vpow.pop %v1610
  %v1612 = vadd.f32 %v1611, 1.0
  %v1613 = vrcp.pop %v1612
  %v1614 = vmul.f32 1.0, %v1613
  %v1615 = vtanh.pop %v1575
  %v1616 = vxor.u32 %v1577, 2147483648
  %v1617 = vmul.f32 %v1616, 1.442695
  %v1618 = vpow.pop %v1617
  %v1619 = vadd.f32 %v1618, 1.0
  %v1620 = vrcp.pop %v1619
  %v1621 = vmul.f32 1.0, %v1620
  %v1622 = vmul.f32 %v1614, %v1147
  %v1623 = vmul.f32 %v1608, %v1615
  %v1624 = vadd.f32 %v1622, %v1623
  %v1625 = vtanh.pop %v1624
  %v1626 = vmul.f32 %v1621, %v1625
  %s1627 = scalar_lea.vmem [#allocation4], 8
  %1628 = vst [vmem:[%s1627] sm:$0xff] %v1602
  %s1629 = scalar_lea.vmem [#allocation5], 48
  %1630 = vst [vmem:[%s1629] sm:$0xff] %v1626
  %v1631 = vld [vmem:[%s3] sm:$0xff]
  %v1632 = vld [vmem:[%s3 + $0x8] sm:$0xff]
  %v1633 = vld [vmem:[%s3 + $0x10] sm:$0xff]
  %v1634 = vld [vmem:[%s3 + $0x18] sm:$0xff]
  %v1635 = vld [vmem:[%s3 + $0x20] sm:$0xff]
  %v1636 = vld [vmem:[%s3 + $0x28] sm:$0xff]
  %v1637 = vld [vmem:[%s3 + $0x30] sm:$0xff]
  %v1638 = vld [vmem:[%s3 + $0x38] sm:$0xff]
  %v1639 = vld [vmem:[%s3 + $0x40] sm:$0xff]
  %v1640 = vld [vmem:[%s3 + $0x48] sm:$0xff]
  %v1641 = vld [vmem:[%s3 + $0x50] sm:$0xff]
  %v1642 = vld [vmem:[%s3 + $0x58] sm:$0xff]
  %v1643 = vld [vmem:[%s3 + $0x60] sm:$0xff]
  %v1644 = vld [vmem:[%s3 + $0x68] sm:$0xff]
  %v1645 = vld [vmem:[%s3 + $0x70] sm:$0xff]
  %v1646 = vld [vmem:[%s3 + $0x78] sm:$0xff]
  %v1647 = vld [vmem:[%s3 + $0x80] sm:$0xff]
  %v1648 = vld [vmem:[%s3 + $0x88] sm:$0xff]
  %v1649 = vld [vmem:[%s3 + $0x90] sm:$0xff]
  %v1650 = vld [vmem:[%s3 + $0x98] sm:$0xff]
  %v1651 = vld [vmem:[%s3 + $0xa0] sm:$0xff]
  %v1652 = vld [vmem:[%s3 + $0xa8] sm:$0xff]
  %v1653 = vld [vmem:[%s3 + $0xb0] sm:$0xff]
  %v1654 = vld [vmem:[%s3 + $0xb8] sm:$0xff]
  %v1655 = vld [vmem:[%s3 + $0xc0] sm:$0xff]
  %v1656 = vld [vmem:[%s3 + $0xc8] sm:$0xff]
  %v1657 = vld [vmem:[%s3 + $0xd0] sm:$0xff]
  %v1658 = vld [vmem:[%s3 + $0xd8] sm:$0xff]
  %v1659 = vld [vmem:[%s3 + $0xe0] sm:$0xff]
  %v1660 = vld [vmem:[%s3 + $0xe8] sm:$0xff]
  %v1661 = vld [vmem:[%s3 + $0xf0] sm:$0xff]
  %v1662 = vld [vmem:[%s3 + $0xf8] sm:$0xff]
  %v1663 = vld [vmem:[%s3 + $0x100] sm:$0xff]
  %v1664 = vld [vmem:[%s3 + $0x108] sm:$0xff]
  %v1665 = vld [vmem:[%s3 + $0x110] sm:$0xff]
  %v1666 = vld [vmem:[%s3 + $0x118] sm:$0xff]
  %v1667 = vld [vmem:[%s3 + $0x120] sm:$0xff]
  %v1668 = vld [vmem:[%s3 + $0x128] sm:$0xff]
  %v1669 = vld [vmem:[%s3 + $0x130] sm:$0xff]
  %v1670 = vld [vmem:[%s3 + $0x138] sm:$0xff]
  %v1671 = vld [vmem:[%s3 + $0x140] sm:$0xff]
  %v1672 = vld [vmem:[%s3 + $0x148] sm:$0xff]
  %v1673 = vld [vmem:[%s3 + $0x150] sm:$0xff]
  %v1674 = vld [vmem:[%s3 + $0x158] sm:$0xff]
  %v1675 = vld [vmem:[%s3 + $0x160] sm:$0xff]
  %v1676 = vld [vmem:[%s3 + $0x168] sm:$0xff]
  %v1677 = vld [vmem:[%s3 + $0x170] sm:$0xff]
  %v1678 = vld [vmem:[%s3 + $0x178] sm:$0xff]
  %v1679 = vld [vmem:[%s3 + $0x180] sm:$0xff]
  %v1680 = vld [vmem:[%s3 + $0x188] sm:$0xff]
  %v1681 = vld [vmem:[%s3 + $0x190] sm:$0xff]
  %v1682 = vld [vmem:[%s3 + $0x198] sm:$0xff]
  %v1683 = vld [vmem:[%s3 + $0x1a0] sm:$0xff]
  %v1684 = vld [vmem:[%s3 + $0x1a8] sm:$0xff]
  %v1685 = vld [vmem:[%s3 + $0x1b0] sm:$0xff]
  %v1686 = vld [vmem:[%s3 + $0x1b8] sm:$0xff]
  %v1687 = vld [vmem:[%s3 + $0x1c0] sm:$0xff]
  %v1688 = vld [vmem:[%s3 + $0x1c8] sm:$0xff]
  %v1689 = vld [vmem:[%s3 + $0x1d0] sm:$0xff]
  %v1690 = vld [vmem:[%s3 + $0x1d8] sm:$0xff]
  %v1691 = vld [vmem:[%s3 + $0x1e0] sm:$0xff]
  %v1692 = vld [vmem:[%s3 + $0x1e8] sm:$0xff]
  %v1693 = vld [vmem:[%s3 + $0x1f0] sm:$0xff]
  %v1694 = vld [vmem:[%s3 + $0x1f8] sm:$0xff]
  %v1695 = vld [vmem:[%s4] sm:$0xff]
  %v1696 = vld [vmem:[%s4 + $0x8] sm:$0xff]
  %v1697 = vld [vmem:[%s4 + $0x10] sm:$0xff]
  %v1698 = vld [vmem:[%s4 + $0x18] sm:$0xff]
  %v1699 = vld [vmem:[%s4 + $0x20] sm:$0xff]
  %v1700 = vld [vmem:[%s4 + $0x28] sm:$0xff]
  %v1701 = vld [vmem:[%s4 + $0x30] sm:$0xff]
  %v1702 = vld [vmem:[%s4 + $0x38] sm:$0xff]
  %v1703 = vld [vmem:[%s4 + $0x40] sm:$0xff]
  %v1704 = vld [vmem:[%s4 + $0x48] sm:$0xff]
  %v1705 = vld [vmem:[%s4 + $0x50] sm:$0xff]
  %v1706 = vld [vmem:[%s4 + $0x58] sm:$0xff]
  %v1707 = vld [vmem:[%s4 + $0x60] sm:$0xff]
  %v1708 = vld [vmem:[%s4 + $0x68] sm:$0xff]
  %v1709 = vld [vmem:[%s4 + $0x70] sm:$0xff]
  %v1710 = vld [vmem:[%s4 + $0x78] sm:$0xff]
  %v1711 = vld [vmem:[%s4 + $0x80] sm:$0xff]
  %v1712 = vld [vmem:[%s4 + $0x88] sm:$0xff]
  %v1713 = vld [vmem:[%s4 + $0x90] sm:$0xff]
  %v1714 = vld [vmem:[%s4 + $0x98] sm:$0xff]
  %v1715 = vld [vmem:[%s4 + $0xa0] sm:$0xff]
  %v1716 = vld [vmem:[%s4 + $0xa8] sm:$0xff]
  %v1717 = vld [vmem:[%s4 + $0xb0] sm:$0xff]
  %v1718 = vld [vmem:[%s4 + $0xb8] sm:$0xff]
  %v1719 = vld [vmem:[%s4 + $0xc0] sm:$0xff]
  %v1720 = vld [vmem:[%s4 + $0xc8] sm:$0xff]
  %v1721 = vld [vmem:[%s4 + $0xd0] sm:$0xff]
  %v1722 = vld [vmem:[%s4 + $0xd8] sm:$0xff]
  %v1723 = vld [vmem:[%s4 + $0xe0] sm:$0xff]
  %v1724 = vld [vmem:[%s4 + $0xe8] sm:$0xff]
  %v1725 = vld [vmem:[%s4 + $0xf0] sm:$0xff]
  %v1726 = vld [vmem:[%s4 + $0xf8] sm:$0xff]
  %v1727 = vld [vmem:[%s4 + $0x100] sm:$0xff]
  %v1728 = vld [vmem:[%s4 + $0x108] sm:$0xff]
  %v1729 = vld [vmem:[%s4 + $0x110] sm:$0xff]
  %v1730 = vld [vmem:[%s4 + $0x118] sm:$0xff]
  %v1731 = vld [vmem:[%s4 + $0x120] sm:$0xff]
  %v1732 = vld [vmem:[%s4 + $0x128] sm:$0xff]
  %v1733 = vld [vmem:[%s4 + $0x130] sm:$0xff]
  %v1734 = vld [vmem:[%s4 + $0x138] sm:$0xff]
  %v1735 = vld [vmem:[%s4 + $0x140] sm:$0xff]
  %v1736 = vld [vmem:[%s4 + $0x148] sm:$0xff]
  %v1737 = vld [vmem:[%s4 + $0x150] sm:$0xff]
  %v1738 = vld [vmem:[%s4 + $0x158] sm:$0xff]
  %v1739 = vld [vmem:[%s4 + $0x160] sm:$0xff]
  %v1740 = vld [vmem:[%s4 + $0x168] sm:$0xff]
  %v1741 = vld [vmem:[%s4 + $0x170] sm:$0xff]
  %v1742 = vld [vmem:[%s4 + $0x178] sm:$0xff]
  %v1743 = vld [vmem:[%s4 + $0x180] sm:$0xff]
  %v1744 = vld [vmem:[%s4 + $0x188] sm:$0xff]
  %v1745 = vld [vmem:[%s4 + $0x190] sm:$0xff]
  %v1746 = vld [vmem:[%s4 + $0x198] sm:$0xff]
  %v1747 = vld [vmem:[%s4 + $0x1a0] sm:$0xff]
  %v1748 = vld [vmem:[%s4 + $0x1a8] sm:$0xff]
  %v1749 = vld [vmem:[%s4 + $0x1b0] sm:$0xff]
  %v1750 = vld [vmem:[%s4 + $0x1b8] sm:$0xff]
  %v1751 = vld [vmem:[%s4 + $0x1c0] sm:$0xff]
  %v1752 = vld [vmem:[%s4 + $0x1c8] sm:$0xff]
  %v1753 = vld [vmem:[%s4 + $0x1d0] sm:$0xff]
  %v1754 = vld [vmem:[%s4 + $0x1d8] sm:$0xff]
  %v1755 = vld [vmem:[%s4 + $0x1e0] sm:$0xff]
  %v1756 = vld [vmem:[%s4 + $0x1e8] sm:$0xff]
  %v1757 = vld [vmem:[%s4 + $0x1f0] sm:$0xff]
  %v1758 = vld [vmem:[%s4 + $0x1f8] sm:$0xff]
  %s1759 = smul.u32 2, 4
  %s1760 = smul.addr %s1759, 8
  %s1761 = scalar_lea.vmem [#allocation2], %s1760
  %v1762 = vld [vmem:[%s1761] sm:$0xff]
  %v1763 = vld [vmem:[%s1761 + $0x8] sm:$0xff]
  %v1764 = vld [vmem:[%s1761 + $0x10] sm:$0xff]
  %v1765 = vld [vmem:[%s1761 + $0x18] sm:$0xff]
  %1766 = vmatprep.subr.mxu0 %v1632
  %1767 = vmatpush1.msra.mxu0 %v1631
  %1768 = vmatprep.subr.mxu0 %v1636
  %1769 = vmatpush1.msra.mxu0 %v1635
  %1770 = vmatprep.subr.mxu0 %v1640
  %1771 = vmatpush1.msra.mxu0 %v1639
  %1772 = vmatprep.subr.mxu0 %v1644
  %1773 = vmatpush1.msra.mxu0 %v1643
  %1774 = vmatprep.subr.mxu0 %v1648
  %1775 = vmatpush1.msra.mxu0 %v1647
  %1776 = vmatprep.subr.mxu0 %v1652
  %1777 = vmatpush1.msra.mxu0 %v1651
  %1778 = vmatprep.subr.mxu0 %v1656
  %1779 = vmatpush1.msra.mxu0 %v1655
  %1780 = vmatprep.subr.mxu0 %v1660
  %1781 = vmatpush1.msra.mxu0 %v1659
  %1782 = vmatprep.subr.mxu0 %v1664
  %1783 = vmatpush1.msra.mxu0 %v1663
  %1784 = vmatprep.subr.mxu0 %v1668
  %1785 = vmatpush1.msra.mxu0 %v1667
  %1786 = vmatprep.subr.mxu0 %v1672
  %1787 = vmatpush1.msra.mxu0 %v1671
  %1788 = vmatprep.subr.mxu0 %v1676
  %1789 = vmatpush1.msra.mxu0 %v1675
  %1790 = vmatprep.subr.mxu0 %v1680
  %1791 = vmatpush1.msra.mxu0 %v1679
  %1792 = vmatprep.subr.mxu0 %v1684
  %1793 = vmatpush1.msra.mxu0 %v1683
  %1794 = vmatprep.subr.mxu0 %v1688
  %1795 = vmatpush1.msra.mxu0 %v1687
  %1796 = vmatprep.subr.mxu0 %v1692
  %1797 = vmatpush1.msra.mxu0 %v1691
  %1798 = vmatprep.subr.mxu0 0.0
  %1799 = vmatpush1.msra.mxu0 0.0
  %1800 = vmatprep.subr.mxu0 0.0
  %1801 = vmatpush1.msra.mxu0 0.0
  %1802 = vmatprep.subr.mxu0 0.0
  %1803 = vmatpush1.msra.mxu0 0.0
  %1804 = vmatprep.subr.mxu0 0.0
  %1805 = vmatpush1.msra.mxu0 0.0
  %1806 = vmatprep.subr.mxu0 0.0
  %1807 = vmatpush1.msra.mxu0 0.0
  %1808 = vmatprep.subr.mxu0 0.0
  %1809 = vmatpush1.msra.mxu0 0.0
  %1810 = vmatprep.subr.mxu0 0.0
  %1811 = vmatpush1.msra.mxu0 0.0
  %1812 = vmatprep.subr.mxu0 0.0
  %1813 = vmatpush1.msra.mxu0 0.0
  %1814 = vmatprep.subr.mxu0 0.0
  %1815 = vmatpush1.msra.mxu0 0.0
  %1816 = vmatprep.subr.mxu0 0.0
  %1817 = vmatpush1.msra.mxu0 0.0
  %1818 = vmatprep.subr.mxu0 0.0
  %1819 = vmatpush1.msra.mxu0 0.0
  %1820 = vmatprep.subr.mxu0 0.0
  %1821 = vmatpush1.msra.mxu0 0.0
  %1822 = vmatprep.subr.mxu0 0.0
  %1823 = vmatpush1.msra.mxu0 0.0
  %1824 = vmatprep.subr.mxu0 0.0
  %1825 = vmatpush1.msra.mxu0 0.0
  %1826 = vmatprep.subr.mxu0 0.0
  %1827 = vmatpush1.msra.mxu0 0.0
  %1828 = vmatprep.subr.mxu0 0.0
  %1829 = vmatpush1.msra.mxu0 0.0
  %1830 = vmatprep.mubr.f32.mxu0 0.0
  %1831 = vmatmul.mubr.f32.gmra.mrb[0].mxu0 %v1602
  %v1832 = vpop.f32.mrb[0].mxu0
  %v1833 = vadd.f32 %v1762, %v1832
  %v1834 = vpop.f32.mrb[0].mxu0
  %v1835 = vadd.f32 %v1763, %v1834
  %1836 = vdwg.mxu0
  %1837 = vmatprep.subr.mxu0 %v1634
  %1838 = vmatpush1.msra.mxu0 %v1633
  %1839 = vmatprep.subr.mxu0 %v1638
  %1840 = vmatpush1.msra.mxu0 %v1637
  %1841 = vmatprep.subr.mxu0 %v1642
  %1842 = vmatpush1.msra.mxu0 %v1641
  %1843 = vmatprep.subr.mxu0 %v1646
  %1844 = vmatpush1.msra.mxu0 %v1645
  %1845 = vmatprep.subr.mxu0 %v1650
  %1846 = vmatpush1.msra.mxu0 %v1649
  %1847 = vmatprep.subr.mxu0 %v1654
  %1848 = vmatpush1.msra.mxu0 %v1653
  %1849 = vmatprep.subr.mxu0 %v1658
  %1850 = vmatpush1.msra.mxu0 %v1657
  %1851 = vmatprep.subr.mxu0 %v1662
  %1852 = vmatpush1.msra.mxu0 %v1661
  %1853 = vmatprep.subr.mxu0 %v1666
  %1854 = vmatpush1.msra.mxu0 %v1665
  %1855 = vmatprep.subr.mxu0 %v1670
  %1856 = vmatpush1.msra.mxu0 %v1669
  %1857 = vmatprep.subr.mxu0 %v1674
  %1858 = vmatpush1.msra.mxu0 %v1673
  %1859 = vmatprep.subr.mxu0 %v1678
  %1860 = vmatpush1.msra.mxu0 %v1677
  %1861 = vmatprep.subr.mxu0 %v1682
  %1862 = vmatpush1.msra.mxu0 %v1681
  %1863 = vmatprep.subr.mxu0 %v1686
  %1864 = vmatpush1.msra.mxu0 %v1685
  %1865 = vmatprep.subr.mxu0 %v1690
  %1866 = vmatpush1.msra.mxu0 %v1689
  %1867 = vmatprep.subr.mxu0 %v1694
  %1868 = vmatpush1.msra.mxu0 %v1693
  %1869 = vmatprep.subr.mxu0 0.0
  %1870 = vmatpush1.msra.mxu0 0.0
  %1871 = vmatprep.subr.mxu0 0.0
  %1872 = vmatpush1.msra.mxu0 0.0
  %1873 = vmatprep.subr.mxu0 0.0
  %1874 = vmatpush1.msra.mxu0 0.0
  %1875 = vmatprep.subr.mxu0 0.0
  %1876 = vmatpush1.msra.mxu0 0.0
  %1877 = vmatprep.subr.mxu0 0.0
  %1878 = vmatpush1.msra.mxu0 0.0
  %1879 = vmatprep.subr.mxu0 0.0
  %1880 = vmatpush1.msra.mxu0 0.0
  %1881 = vmatprep.subr.mxu0 0.0
  %1882 = vmatpush1.msra.mxu0 0.0
  %1883 = vmatprep.subr.mxu0 0.0
  %1884 = vmatpush1.msra.mxu0 0.0
  %1885 = vmatprep.subr.mxu0 0.0
  %1886 = vmatpush1.msra.mxu0 0.0
  %1887 = vmatprep.subr.mxu0 0.0
  %1888 = vmatpush1.msra.mxu0 0.0
  %1889 = vmatprep.subr.mxu0 0.0
  %1890 = vmatpush1.msra.mxu0 0.0
  %1891 = vmatprep.subr.mxu0 0.0
  %1892 = vmatpush1.msra.mxu0 0.0
  %1893 = vmatprep.subr.mxu0 0.0
  %1894 = vmatpush1.msra.mxu0 0.0
  %1895 = vmatprep.subr.mxu0 0.0
  %1896 = vmatpush1.msra.mxu0 0.0
  %1897 = vmatprep.subr.mxu0 0.0
  %1898 = vmatpush1.msra.mxu0 0.0
  %1899 = vmatprep.subr.mxu0 0.0
  %1900 = vmatpush1.msra.mxu0 0.0
  %1901 = vmatprep.mubr.f32.mxu0 0.0
  %1902 = vmatmul.mubr.f32.gmra.mrb[0].mxu0 %v1602
  %v1903 = vpop.f32.mrb[0].mxu0
  %v1904 = vadd.f32 %v1764, %v1903
  %v1905 = vpop.f32.mrb[0].mxu0
  %v1906 = vadd.f32 %v1765, %v1905
  %1907 = vdwg.mxu0
  %s1908 = smul.u32 5, 4
  %s1909 = smul.addr %s1908, 8
  %s1910 = scalar_lea.vmem [#allocation3], %s1909
  %v1911 = vld [vmem:[%s1910] sm:$0xff]
  %v1912 = vld [vmem:[%s1910 + $0x8] sm:$0xff]
  %v1913 = vld [vmem:[%s1910 + $0x10] sm:$0xff]
  %v1914 = vld [vmem:[%s1910 + $0x18] sm:$0xff]
  %1915 = vmatprep.subr.mxu0 %v1696
  %1916 = vmatpush1.msra.mxu0 %v1695
  %1917 = vmatprep.subr.mxu0 %v1700
  %1918 = vmatpush1.msra.mxu0 %v1699
  %1919 = vmatprep.subr.mxu0 %v1704
  %1920 = vmatpush1.msra.mxu0 %v1703
  %1921 = vmatprep.subr.mxu0 %v1708
  %1922 = vmatpush1.msra.mxu0 %v1707
  %1923 = vmatprep.subr.mxu0 %v1712
  %1924 = vmatpush1.msra.mxu0 %v1711
  %1925 = vmatprep.subr.mxu0 %v1716
  %1926 = vmatpush1.msra.mxu0 %v1715
  %1927 = vmatprep.subr.mxu0 %v1720
  %1928 = vmatpush1.msra.mxu0 %v1719
  %1929 = vmatprep.subr.mxu0 %v1724
  %1930 = vmatpush1.msra.mxu0 %v1723
  %1931 = vmatprep.subr.mxu0 %v1728
  %1932 = vmatpush1.msra.mxu0 %v1727
  %1933 = vmatprep.subr.mxu0 %v1732
  %1934 = vmatpush1.msra.mxu0 %v1731
  %1935 = vmatprep.subr.mxu0 %v1736
  %1936 = vmatpush1.msra.mxu0 %v1735
  %1937 = vmatprep.subr.mxu0 %v1740
  %1938 = vmatpush1.msra.mxu0 %v1739
  %1939 = vmatprep.subr.mxu0 %v1744
  %1940 = vmatpush1.msra.mxu0 %v1743
  %1941 = vmatprep.subr.mxu0 %v1748
  %1942 = vmatpush1.msra.mxu0 %v1747
  %1943 = vmatprep.subr.mxu0 %v1752
  %1944 = vmatpush1.msra.mxu0 %v1751
  %1945 = vmatprep.subr.mxu0 %v1756
  %1946 = vmatpush1.msra.mxu0 %v1755
  %1947 = vmatprep.subr.mxu0 0.0
  %1948 = vmatpush1.msra.mxu0 0.0
  %1949 = vmatprep.subr.mxu0 0.0
  %1950 = vmatpush1.msra.mxu0 0.0
  %1951 = vmatprep.subr.mxu0 0.0
  %1952 = vmatpush1.msra.mxu0 0.0
  %1953 = vmatprep.subr.mxu0 0.0
  %1954 = vmatpush1.msra.mxu0 0.0
  %1955 = vmatprep.subr.mxu0 0.0
  %1956 = vmatpush1.msra.mxu0 0.0
  %1957 = vmatprep.subr.mxu0 0.0
  %1958 = vmatpush1.msra.mxu0 0.0
  %1959 = vmatprep.subr.mxu0 0.0
  %1960 = vmatpush1.msra.mxu0 0.0
  %1961 = vmatprep.subr.mxu0 0.0
  %1962 = vmatpush1.msra.mxu0 0.0
  %1963 = vmatprep.subr.mxu0 0.0
  %1964 = vmatpush1.msra.mxu0 0.0
  %1965 = vmatprep.subr.mxu0 0.0
  %1966 = vmatpush1.msra.mxu0 0.0
  %1967 = vmatprep.subr.mxu0 0.0
  %1968 = vmatpush1.msra.mxu0 0.0
  %1969 = vmatprep.subr.mxu0 0.0
  %1970 = vmatpush1.msra.mxu0 0.0
  %1971 = vmatprep.subr.mxu0 0.0
  %1972 = vmatpush1.msra.mxu0 0.0
  %1973 = vmatprep.subr.mxu0 0.0
  %1974 = vmatpush1.msra.mxu0 0.0
  %1975 = vmatprep.subr.mxu0 0.0
  %1976 = vmatpush1.msra.mxu0 0.0
  %1977 = vmatprep.subr.mxu0 0.0
  %1978 = vmatpush1.msra.mxu0 0.0
  %1979 = vmatprep.mubr.f32.mxu0 0.0
  %1980 = vmatmul.mubr.f32.gmra.mrb[0].mxu0 %v1626
  %v1981 = vpop.f32.mrb[0].mxu0
  %v1982 = vadd.f32 %v1911, %v1981
  %v1983 = vpop.f32.mrb[0].mxu0
  %v1984 = vadd.f32 %v1912, %v1983
  %1985 = vdwg.mxu0
  %1986 = vmatprep.subr.mxu0 %v1698
  %1987 = vmatpush1.msra.mxu0 %v1697
  %1988 = vmatprep.subr.mxu0 %v1702
  %1989 = vmatpush1.msra.mxu0 %v1701
  %1990 = vmatprep.subr.mxu0 %v1706
  %1991 = vmatpush1.msra.mxu0 %v1705
  %1992 = vmatprep.subr.mxu0 %v1710
  %1993 = vmatpush1.msra.mxu0 %v1709
  %1994 = vmatprep.subr.mxu0 %v1714
  %1995 = vmatpush1.msra.mxu0 %v1713
  %1996 = vmatprep.subr.mxu0 %v1718
  %1997 = vmatpush1.msra.mxu0 %v1717
  %1998 = vmatprep.subr.mxu0 %v1722
  %1999 = vmatpush1.msra.mxu0 %v1721
  %2000 = vmatprep.subr.mxu0 %v1726
  %2001 = vmatpush1.msra.mxu0 %v1725
  %2002 = vmatprep.subr.mxu0 %v1730
  %2003 = vmatpush1.msra.mxu0 %v1729
  %2004 = vmatprep.subr.mxu0 %v1734
  %2005 = vmatpush1.msra.mxu0 %v1733
  %2006 = vmatprep.subr.mxu0 %v1738
  %2007 = vmatpush1.msra.mxu0 %v1737
  %2008 = vmatprep.subr.mxu0 %v1742
  %2009 = vmatpush1.msra.mxu0 %v1741
  %2010 = vmatprep.subr.mxu0 %v1746
  %2011 = vmatpush1.msra.mxu0 %v1745
  %2012 = vmatprep.subr.mxu0 %v1750
  %2013 = vmatpush1.msra.mxu0 %v1749
  %2014 = vmatprep.subr.mxu0 %v1754
  %2015 = vmatpush1.msra.mxu0 %v1753
  %2016 = vmatprep.subr.mxu0 %v1758
  %2017 = vmatpush1.msra.mxu0 %v1757
  %2018 = vmatprep.subr.mxu0 0.0
  %2019 = vmatpush1.msra.mxu0 0.0
  %2020 = vmatprep.subr.mxu0 0.0
  %2021 = vmatpush1.msra.mxu0 0.0
  %2022 = vmatprep.subr.mxu0 0.0
  %2023 = vmatpush1.msra.mxu0 0.0
  %2024 = vmatprep.subr.mxu0 0.0
  %2025 = vmatpush1.msra.mxu0 0.0
  %2026 = vmatprep.subr.mxu0 0.0
  %2027 = vmatpush1.msra.mxu0 0.0
  %2028 = vmatprep.subr.mxu0 0.0
  %2029 = vmatpush1.msra.mxu0 0.0
  %2030 = vmatprep.subr.mxu0 0.0
  %2031 = vmatpush1.msra.mxu0 0.0
  %2032 = vmatprep.subr.mxu0 0.0
  %2033 = vmatpush1.msra.mxu0 0.0
  %2034 = vmatprep.subr.mxu0 0.0
  %2035 = vmatpush1.msra.mxu0 0.0
  %2036 = vmatprep.subr.mxu0 0.0
  %2037 = vmatpush1.msra.mxu0 0.0
  %2038 = vmatprep.subr.mxu0 0.0
  %2039 = vmatpush1.msra.mxu0 0.0
  %2040 = vmatprep.subr.mxu0 0.0
  %2041 = vmatpush1.msra.mxu0 0.0
  %2042 = vmatprep.subr.mxu0 0.0
  %2043 = vmatpush1.msra.mxu0 0.0
  %2044 = vmatprep.subr.mxu0 0.0
  %2045 = vmatpush1.msra.mxu0 0.0
  %2046 = vmatprep.subr.mxu0 0.0
  %2047 = vmatpush1.msra.mxu0 0.0
  %2048 = vmatprep.subr.mxu0 0.0
  %2049 = vmatpush1.msra.mxu0 0.0
  %2050 = vmatprep.mubr.f32.mxu0 0.0
  %2051 = vmatmul.mubr.f32.gmra.mrb[0].mxu0 %v1626
  %v2052 = vpop.f32.mrb[0].mxu0
  %v2053 = vadd.f32 %v1913, %v2052
  %v2054 = vpop.f32.mrb[0].mxu0
  %v2055 = vadd.f32 %v1914, %v2054
  %2056 = vdwg.mxu0
  %v2057 = vxor.u32 %v1833, 2147483648
  %v2058 = vmul.f32 %v2057, 1.442695
  %v2059 = vpow.pop %v2058
  %v2060 = vadd.f32 %v2059, 1.0
  %v2061 = vrcp.pop %v2060
  %v2062 = vmul.f32 1.0, %v2061
  %v2063 = vxor.u32 %v1835, 2147483648
  %v2064 = vmul.f32 %v2063, 1.442695
  %v2065 = vpow.pop %v2064
  %v2066 = vadd.f32 %v2065, 1.0
  %v2067 = vrcp.pop %v2066
  %v2068 = vmul.f32 1.0, %v2067
  %v2069 = vtanh.pop %v1904
  %v2070 = vxor.u32 %v1906, 2147483648
  %v2071 = vmul.f32 %v2070, 1.442695
  %v2072 = vpow.pop %v2071
  %v2073 = vadd.f32 %v2072, 1.0
  %v2074 = vrcp.pop %v2073
  %v2075 = vmul.f32 1.0, %v2074
  %v2076 = vmul.f32 %v2068, %v1600
  %v2077 = vmul.f32 %v2062, %v2069
  %v2078 = vadd.f32 %v2076, %v2077
  %v2079 = vtanh.pop %v2078
  %v2080 = vmul.f32 %v2075, %v2079
  %v2081 = vxor.u32 %v1982, 2147483648
  %v2082 = vmul.f32 %v2081, 1.442695
  %v2083 = vpow.pop %v2082
  %v2084 = vadd.f32 %v2083, 1.0
  %v2085 = vrcp.pop %v2084
  %v2086 = vmul.f32 1.0, %v2085
  %v2087 = vxor.u32 %v1984, 2147483648
  %v2088 = vmul.f32 %v2087, 1.442695
  %v2089 = vpow.pop %v2088
  %v2090 = vadd.f32 %v2089, 1.0
  %v2091 = vrcp.pop %v2090
  %v2092 = vmul.f32 1.0, %v2091
  %v2093 = vtanh.pop %v2053
  %v2094 = vxor.u32 %v2055, 2147483648
  %v2095 = vmul.f32 %v2094, 1.442695
  %v2096 = vpow.pop %v2095
  %v2097 = vadd.f32 %v2096, 1.0
  %v2098 = vrcp.pop %v2097
  %v2099 = vmul.f32 1.0, %v2098
  %v2100 = vmul.f32 %v2092, %v1624
  %v2101 = vmul.f32 %v2086, %v2093
  %v2102 = vadd.f32 %v2100, %v2101
  %v2103 = vtanh.pop %v2102
  %v2104 = vmul.f32 %v2099, %v2103
  %s2105 = scalar_lea.vmem [#allocation4], 16
  %2106 = vst [vmem:[%s2105] sm:$0xff] %v2080
  %s2107 = scalar_lea.vmem [#allocation5], 40
  %2108 = vst [vmem:[%s2107] sm:$0xff] %v2104
  %v2109 = vld [vmem:[%s3] sm:$0xff]
  %v2110 = vld [vmem:[%s3 + $0x8] sm:$0xff]
  %v2111 = vld [vmem:[%s3 + $0x10] sm:$0xff]
  %v2112 = vld [vmem:[%s3 + $0x18] sm:$0xff]
  %v2113 = vld [vmem:[%s3 + $0x20] sm:$0xff]
  %v2114 = vld [vmem:[%s3 + $0x28] sm:$0xff]
  %v2115 = vld [vmem:[%s3 + $0x30] sm:$0xff]
  %v2116 = vld [vmem:[%s3 + $0x38] sm:$0xff]
  %v2117 = vld [vmem:[%s3 + $0x40] sm:$0xff]
  %v2118 = vld [vmem:[%s3 + $0x48] sm:$0xff]
  %v2119 = vld [vmem:[%s3 + $0x50] sm:$0xff]
  %v2120 = vld [vmem:[%s3 + $0x58] sm:$0xff]
  %v2121 = vld [vmem:[%s3 + $0x60] sm:$0xff]
  %v2122 = vld [vmem:[%s3 + $0x68] sm:$0xff]
  %v2123 = vld [vmem:[%s3 + $0x70] sm:$0xff]
  %v2124 = vld [vmem:[%s3 + $0x78] sm:$0xff]
  %v2125 = vld [vmem:[%s3 + $0x80] sm:$0xff]
  %v2126 = vld [vmem:[%s3 + $0x88] sm:$0xff]
  %v2127 = vld [vmem:[%s3 + $0x90] sm:$0xff]
  %v2128 = vld [vmem:[%s3 + $0x98] sm:$0xff]
  %v2129 = vld [vmem:[%s3 + $0xa0] sm:$0xff]
  %v2130 = vld [vmem:[%s3 + $0xa8] sm:$0xff]
  %v2131 = vld [vmem:[%s3 + $0xb0] sm:$0xff]
  %v2132 = vld [vmem:[%s3 + $0xb8] sm:$0xff]
  %v2133 = vld [vmem:[%s3 + $0xc0] sm:$0xff]
  %v2134 = vld [vmem:[%s3 + $0xc8] sm:$0xff]
  %v2135 = vld [vmem:[%s3 + $0xd0] sm:$0xff]
  %v2136 = vld [vmem:[%s3 + $0xd8] sm:$0xff]
  %v2137 = vld [vmem:[%s3 + $0xe0] sm:$0xff]
  %v2138 = vld [vmem:[%s3 + $0xe8] sm:$0xff]
  %v2139 = vld [vmem:[%s3 + $0xf0] sm:$0xff]
  %v2140 = vld [vmem:[%s3 + $0xf8] sm:$0xff]
  %v2141 = vld [vmem:[%s3 + $0x100] sm:$0xff]
  %v2142 = vld [vmem:[%s3 + $0x108] sm:$0xff]
  %v2143 = vld [vmem:[%s3 + $0x110] sm:$0xff]
  %v2144 = vld [vmem:[%s3 + $0x118] sm:$0xff]
  %v2145 = vld [vmem:[%s3 + $0x120] sm:$0xff]
  %v2146 = vld [vmem:[%s3 + $0x128] sm:$0xff]
  %v2147 = vld [vmem:[%s3 + $0x130] sm:$0xff]
  %v2148 = vld [vmem:[%s3 + $0x138] sm:$0xff]
  %v2149 = vld [vmem:[%s3 + $0x140] sm:$0xff]
  %v2150 = vld [vmem:[%s3 + $0x148] sm:$0xff]
  %v2151 = vld [vmem:[%s3 + $0x150] sm:$0xff]
  %v2152 = vld [vmem:[%s3 + $0x158] sm:$0xff]
  %v2153 = vld [vmem:[%s3 + $0x160] sm:$0xff]
  %v2154 = vld [vmem:[%s3 + $0x168] sm:$0xff]
  %v2155 = vld [vmem:[%s3 + $0x170] sm:$0xff]
  %v2156 = vld [vmem:[%s3 + $0x178] sm:$0xff]
  %v2157 = vld [vmem:[%s3 + $0x180] sm:$0xff]
  %v2158 = vld [vmem:[%s3 + $0x188] sm:$0xff]
  %v2159 = vld [vmem:[%s3 + $0x190] sm:$0xff]
  %v2160 = vld [vmem:[%s3 + $0x198] sm:$0xff]
  %v2161 = vld [vmem:[%s3 + $0x1a0] sm:$0xff]
  %v2162 = vld [vmem:[%s3 + $0x1a8] sm:$0xff]
  %v2163 = vld [vmem:[%s3 + $0x1b0] sm:$0xff]
  %v2164 = vld [vmem:[%s3 + $0x1b8] sm:$0xff]
  %v2165 = vld [vmem:[%s3 + $0x1c0] sm:$0xff]
  %v2166 = vld [vmem:[%s3 + $0x1c8] sm:$0xff]
  %v2167 = vld [vmem:[%s3 + $0x1d0] sm:$0xff]
  %v2168 = vld [vmem:[%s3 + $0x1d8] sm:$0xff]
  %v2169 = vld [vmem:[%s3 + $0x1e0] sm:$0xff]
  %v2170 = vld [vmem:[%s3 + $0x1e8] sm:$0xff]
  %v2171 = vld [vmem:[%s3 + $0x1f0] sm:$0xff]
  %v2172 = vld [vmem:[%s3 + $0x1f8] sm:$0xff]
  %v2173 = vld [vmem:[%s4] sm:$0xff]
  %v2174 = vld [vmem:[%s4 + $0x8] sm:$0xff]
  %v2175 = vld [vmem:[%s4 + $0x10] sm:$0xff]
  %v2176 = vld [vmem:[%s4 + $0x18] sm:$0xff]
  %v2177 = vld [vmem:[%s4 + $0x20] sm:$0xff]
  %v2178 = vld [vmem:[%s4 + $0x28] sm:$0xff]
  %v2179 = vld [vmem:[%s4 + $0x30] sm:$0xff]
  %v2180 = vld [vmem:[%s4 + $0x38] sm:$0xff]
  %v2181 = vld [vmem:[%s4 + $0x40] sm:$0xff]
  %v2182 = vld [vmem:[%s4 + $0x48] sm:$0xff]
  %v2183 = vld [vmem:[%s4 + $0x50] sm:$0xff]
  %v2184 = vld [vmem:[%s4 + $0x58] sm:$0xff]
  %v2185 = vld [vmem:[%s4 + $0x60] sm:$0xff]
  %v2186 = vld [vmem:[%s4 + $0x68] sm:$0xff]
  %v2187 = vld [vmem:[%s4 + $0x70] sm:$0xff]
  %v2188 = vld [vmem:[%s4 + $0x78] sm:$0xff]
  %v2189 = vld [vmem:[%s4 + $0x80] sm:$0xff]
  %v2190 = vld [vmem:[%s4 + $0x88] sm:$0xff]
  %v2191 = vld [vmem:[%s4 + $0x90] sm:$0xff]
  %v2192 = vld [vmem:[%s4 + $0x98] sm:$0xff]
  %v2193 = vld [vmem:[%s4 + $0xa0] sm:$0xff]
  %v2194 = vld [vmem:[%s4 + $0xa8] sm:$0xff]
  %v2195 = vld [vmem:[%s4 + $0xb0] sm:$0xff]
  %v2196 = vld [vmem:[%s4 + $0xb8] sm:$0xff]
  %v2197 = vld [vmem:[%s4 + $0xc0] sm:$0xff]
  %v2198 = vld [vmem:[%s4 + $0xc8] sm:$0xff]
  %v2199 = vld [vmem:[%s4 + $0xd0] sm:$0xff]
  %v2200 = vld [vmem:[%s4 + $0xd8] sm:$0xff]
  %v2201 = vld [vmem:[%s4 + $0xe0] sm:$0xff]
  %v2202 = vld [vmem:[%s4 + $0xe8] sm:$0xff]
  %v2203 = vld [vmem:[%s4 + $0xf0] sm:$0xff]
  %v2204 = vld [vmem:[%s4 + $0xf8] sm:$0xff]
  %v2205 = vld [vmem:[%s4 + $0x100] sm:$0xff]
  %v2206 = vld [vmem:[%s4 + $0x108] sm:$0xff]
  %v2207 = vld [vmem:[%s4 + $0x110] sm:$0xff]
  %v2208 = vld [vmem:[%s4 + $0x118] sm:$0xff]
  %v2209 = vld [vmem:[%s4 + $0x120] sm:$0xff]
  %v2210 = vld [vmem:[%s4 + $0x128] sm:$0xff]
  %v2211 = vld [vmem:[%s4 + $0x130] sm:$0xff]
  %v2212 = vld [vmem:[%s4 + $0x138] sm:$0xff]
  %v2213 = vld [vmem:[%s4 + $0x140] sm:$0xff]
  %v2214 = vld [vmem:[%s4 + $0x148] sm:$0xff]
  %v2215 = vld [vmem:[%s4 + $0x150] sm:$0xff]
  %v2216 = vld [vmem:[%s4 + $0x158] sm:$0xff]
  %v2217 = vld [vmem:[%s4 + $0x160] sm:$0xff]
  %v2218 = vld [vmem:[%s4 + $0x168] sm:$0xff]
  %v2219 = vld [vmem:[%s4 + $0x170] sm:$0xff]
  %v2220 = vld [vmem:[%s4 + $0x178] sm:$0xff]
  %v2221 = vld [vmem:[%s4 + $0x180] sm:$0xff]
  %v2222 = vld [vmem:[%s4 + $0x188] sm:$0xff]
  %v2223 = vld [vmem:[%s4 + $0x190] sm:$0xff]
  %v2224 = vld [vmem:[%s4 + $0x198] sm:$0xff]
  %v2225 = vld [vmem:[%s4 + $0x1a0] sm:$0xff]
  %v2226 = vld [vmem:[%s4 + $0x1a8] sm:$0xff]
  %v2227 = vld [vmem:[%s4 + $0x1b0] sm:$0xff]
  %v2228 = vld [vmem:[%s4 + $0x1b8] sm:$0xff]
  %v2229 = vld [vmem:[%s4 + $0x1c0] sm:$0xff]
  %v2230 = vld [vmem:[%s4 + $0x1c8] sm:$0xff]
  %v2231 = vld [vmem:[%s4 + $0x1d0] sm:$0xff]
  %v2232 = vld [vmem:[%s4 + $0x1d8] sm:$0xff]
  %v2233 = vld [vmem:[%s4 + $0x1e0] sm:$0xff]
  %v2234 = vld [vmem:[%s4 + $0x1e8] sm:$0xff]
  %v2235 = vld [vmem:[%s4 + $0x1f0] sm:$0xff]
  %v2236 = vld [vmem:[%s4 + $0x1f8] sm:$0xff]
  %s2237 = smul.u32 3, 4
  %s2238 = smul.addr %s2237, 8
  %s2239 = scalar_lea.vmem [#allocation2], %s2238
  %v2240 = vld [vmem:[%s2239] sm:$0xff]
  %v2241 = vld [vmem:[%s2239 + $0x8] sm:$0xff]
  %v2242 = vld [vmem:[%s2239 + $0x10] sm:$0xff]
  %v2243 = vld [vmem:[%s2239 + $0x18] sm:$0xff]
  %2244 = vmatprep.subr.mxu0 %v2110
  %2245 = vmatpush1.msra.mxu0 %v2109
  %2246 = vmatprep.subr.mxu0 %v2114
  %2247 = vmatpush1.msra.mxu0 %v2113
  %2248 = vmatprep.subr.mxu0 %v2118
  %2249 = vmatpush1.msra.mxu0 %v2117
  %2250 = vmatprep.subr.mxu0 %v2122
  %2251 = vmatpush1.msra.mxu0 %v2121
  %2252 = vmatprep.subr.mxu0 %v2126
  %2253 = vmatpush1.msra.mxu0 %v2125
  %2254 = vmatprep.subr.mxu0 %v2130
  %2255 = vmatpush1.msra.mxu0 %v2129
  %2256 = vmatprep.subr.mxu0 %v2134
  %2257 = vmatpush1.msra.mxu0 %v2133
  %2258 = vmatprep.subr.mxu0 %v2138
  %2259 = vmatpush1.msra.mxu0 %v2137
  %2260 = vmatprep.subr.mxu0 %v2142
  %2261 = vmatpush1.msra.mxu0 %v2141
  %2262 = vmatprep.subr.mxu0 %v2146
  %2263 = vmatpush1.msra.mxu0 %v2145
  %2264 = vmatprep.subr.mxu0 %v2150
  %2265 = vmatpush1.msra.mxu0 %v2149
  %2266 = vmatprep.subr.mxu0 %v2154
  %2267 = vmatpush1.msra.mxu0 %v2153
  %2268 = vmatprep.subr.mxu0 %v2158
  %2269 = vmatpush1.msra.mxu0 %v2157
  %2270 = vmatprep.subr.mxu0 %v2162
  %2271 = vmatpush1.msra.mxu0 %v2161
  %2272 = vmatprep.subr.mxu0 %v2166
  %2273 = vmatpush1.msra.mxu0 %v2165
  %2274 = vmatprep.subr.mxu0 %v2170
  %2275 = vmatpush1.msra.mxu0 %v2169
  %2276 = vmatprep.subr.mxu0 0.0
  %2277 = vmatpush1.msra.mxu0 0.0
  %2278 = vmatprep.subr.mxu0 0.0
  %2279 = vmatpush1.msra.mxu0 0.0
  %2280 = vmatprep.subr.mxu0 0.0
  %2281 = vmatpush1.msra.mxu0 0.0
  %2282 = vmatprep.subr.mxu0 0.0
  %2283 = vmatpush1.msra.mxu0 0.0
  %2284 = vmatprep.subr.mxu0 0.0
  %2285 = vmatpush1.msra.mxu0 0.0
  %2286 = vmatprep.subr.mxu0 0.0
  %2287 = vmatpush1.msra.mxu0 0.0
  %2288 = vmatprep.subr.mxu0 0.0
  %2289 = vmatpush1.msra.mxu0 0.0
  %2290 = vmatprep.subr.mxu0 0.0
  %2291 = vmatpush1.msra.mxu0 0.0
  %2292 = vmatprep.subr.mxu0 0.0
  %2293 = vmatpush1.msra.mxu0 0.0
  %2294 = vmatprep.subr.mxu0 0.0
  %2295 = vmatpush1.msra.mxu0 0.0
  %2296 = vmatprep.subr.mxu0 0.0
  %2297 = vmatpush1.msra.mxu0 0.0
  %2298 = vmatprep.subr.mxu0 0.0
  %2299 = vmatpush1.msra.mxu0 0.0
  %2300 = vmatprep.subr.mxu0 0.0
  %2301 = vmatpush1.msra.mxu0 0.0
  %2302 = vmatprep.subr.mxu0 0.0
  %2303 = vmatpush1.msra.mxu0 0.0
  %2304 = vmatprep.subr.mxu0 0.0
  %2305 = vmatpush1.msra.mxu0 0.0
  %2306 = vmatprep.subr.mxu0 0.0
  %2307 = vmatpush1.msra.mxu0 0.0
  %2308 = vmatprep.mubr.f32.mxu0 0.0
  %2309 = vmatmul.mubr.f32.gmra.mrb[0].mxu0 %v2080
  %v2310 = vpop.f32.mrb[0].mxu0
  %v2311 = vadd.f32 %v2240, %v2310
  %v2312 = vpop.f32.mrb[0].mxu0
  %v2313 = vadd.f32 %v2241, %v2312
  %2314 = vdwg.mxu0
  %2315 = vmatprep.subr.mxu0 %v2112
  %2316 = vmatpush1.msra.mxu0 %v2111
  %2317 = vmatprep.subr.mxu0 %v2116
  %2318 = vmatpush1.msra.mxu0 %v2115
  %2319 = vmatprep.subr.mxu0 %v2120
  %2320 = vmatpush1.msra.mxu0 %v2119
  %2321 = vmatprep.subr.mxu0 %v2124
  %2322 = vmatpush1.msra.mxu0 %v2123
  %2323 = vmatprep.subr.mxu0 %v2128
  %2324 = vmatpush1.msra.mxu0 %v2127
  %2325 = vmatprep.subr.mxu0 %v2132
  %2326 = vmatpush1.msra.mxu0 %v2131
  %2327 = vmatprep.subr.mxu0 %v2136
  %2328 = vmatpush1.msra.mxu0 %v2135
  %2329 = vmatprep.subr.mxu0 %v2140
  %2330 = vmatpush1.msra.mxu0 %v2139
  %2331 = vmatprep.subr.mxu0 %v2144
  %2332 = vmatpush1.msra.mxu0 %v2143
  %2333 = vmatprep.subr.mxu0 %v2148
  %2334 = vmatpush1.msra.mxu0 %v2147
  %2335 = vmatprep.subr.mxu0 %v2152
  %2336 = vmatpush1.msra.mxu0 %v2151
  %2337 = vmatprep.subr.mxu0 %v2156
  %2338 = vmatpush1.msra.mxu0 %v2155
  %2339 = vmatprep.subr.mxu0 %v2160
  %2340 = vmatpush1.msra.mxu0 %v2159
  %2341 = vmatprep.subr.mxu0 %v2164
  %2342 = vmatpush1.msra.mxu0 %v2163
  %2343 = vmatprep.subr.mxu0 %v2168
  %2344 = vmatpush1.msra.mxu0 %v2167
  %2345 = vmatprep.subr.mxu0 %v2172
  %2346 = vmatpush1.msra.mxu0 %v2171
  %2347 = vmatprep.subr.mxu0 0.0
  %2348 = vmatpush1.msra.mxu0 0.0
  %2349 = vmatprep.subr.mxu0 0.0
  %2350 = vmatpush1.msra.mxu0 0.0
  %2351 = vmatprep.subr.mxu0 0.0
  %2352 = vmatpush1.msra.mxu0 0.0
  %2353 = vmatprep.subr.mxu0 0.0
  %2354 = vmatpush1.msra.mxu0 0.0
  %2355 = vmatprep.subr.mxu0 0.0
  %2356 = vmatpush1.msra.mxu0 0.0
  %2357 = vmatprep.subr.mxu0 0.0
  %2358 = vmatpush1.msra.mxu0 0.0
  %2359 = vmatprep.subr.mxu0 0.0
  %2360 = vmatpush1.msra.mxu0 0.0
  %2361 = vmatprep.subr.mxu0 0.0
  %2362 = vmatpush1.msra.mxu0 0.0
  %2363 = vmatprep.subr.mxu0 0.0
  %2364 = vmatpush1.msra.mxu0 0.0
  %2365 = vmatprep.subr.mxu0 0.0
  %2366 = vmatpush1.msra.mxu0 0.0
  %2367 = vmatprep.subr.mxu0 0.0
  %2368 = vmatpush1.msra.mxu0 0.0
  %2369 = vmatprep.subr.mxu0 0.0
  %2370 = vmatpush1.msra.mxu0 0.0
  %2371 = vmatprep.subr.mxu0 0.0
  %2372 = vmatpush1.msra.mxu0 0.0
  %2373 = vmatprep.subr.mxu0 0.0
  %2374 = vmatpush1.msra.mxu0 0.0
  %2375 = vmatprep.subr.mxu0 0.0
  %2376 = vmatpush1.msra.mxu0 0.0
  %2377 = vmatprep.subr.mxu0 0.0
  %2378 = vmatpush1.msra.mxu0 0.0
  %2379 = vmatprep.mubr.f32.mxu0 0.0
  %2380 = vmatmul.mubr.f32.gmra.mrb[0].mxu0 %v2080
  %v2381 = vpop.f32.mrb[0].mxu0
  %v2382 = vadd.f32 %v2242, %v2381
  %v2383 = vpop.f32.mrb[0].mxu0
  %v2384 = vadd.f32 %v2243, %v2383
  %2385 = vdwg.mxu0
  %s2386 = smul.u32 4, 4
  %s2387 = smul.addr %s2386, 8
  %s2388 = scalar_lea.vmem [#allocation3], %s2387
  %v2389 = vld [vmem:[%s2388] sm:$0xff]
  %v2390 = vld [vmem:[%s2388 + $0x8] sm:$0xff]
  %v2391 = vld [vmem:[%s2388 + $0x10] sm:$0xff]
  %v2392 = vld [vmem:[%s2388 + $0x18] sm:$0xff]
  %2393 = vmatprep.subr.mxu0 %v2174
  %2394 = vmatpush1.msra.mxu0 %v2173
  %2395 = vmatprep.subr.mxu0 %v2178
  %2396 = vmatpush1.msra.mxu0 %v2177
  %2397 = vmatprep.subr.mxu0 %v2182
  %2398 = vmatpush1.msra.mxu0 %v2181
  %2399 = vmatprep.subr.mxu0 %v2186
  %2400 = vmatpush1.msra.mxu0 %v2185
  %2401 = vmatprep.subr.mxu0 %v2190
  %2402 = vmatpush1.msra.mxu0 %v2189
  %2403 = vmatprep.subr.mxu0 %v2194
  %2404 = vmatpush1.msra.mxu0 %v2193
  %2405 = vmatprep.subr.mxu0 %v2198
  %2406 = vmatpush1.msra.mxu0 %v2197
  %2407 = vmatprep.subr.mxu0 %v2202
  %2408 = vmatpush1.msra.mxu0 %v2201
  %2409 = vmatprep.subr.mxu0 %v2206
  %2410 = vmatpush1.msra.mxu0 %v2205
  %2411 = vmatprep.subr.mxu0 %v2210
  %2412 = vmatpush1.msra.mxu0 %v2209
  %2413 = vmatprep.subr.mxu0 %v2214
  %2414 = vmatpush1.msra.mxu0 %v2213
  %2415 = vmatprep.subr.mxu0 %v2218
  %2416 = vmatpush1.msra.mxu0 %v2217
  %2417 = vmatprep.subr.mxu0 %v2222
  %2418 = vmatpush1.msra.mxu0 %v2221
  %2419 = vmatprep.subr.mxu0 %v2226
  %2420 = vmatpush1.msra.mxu0 %v2225
  %2421 = vmatprep.subr.mxu0 %v2230
  %2422 = vmatpush1.msra.mxu0 %v2229
  %2423 = vmatprep.subr.mxu0 %v2234
  %2424 = vmatpush1.msra.mxu0 %v2233
  %2425 = vmatprep.subr.mxu0 0.0
  %2426 = vmatpush1.msra.mxu0 0.0
  %2427 = vmatprep.subr.mxu0 0.0
  %2428 = vmatpush1.msra.mxu0 0.0
  %2429 = vmatprep.subr.mxu0 0.0
  %2430 = vmatpush1.msra.mxu0 0.0
  %2431 = vmatprep.subr.mxu0 0.0
  %2432 = vmatpush1.msra.mxu0 0.0
  %2433 = vmatprep.subr.mxu0 0.0
  %2434 = vmatpush1.msra.mxu0 0.0
  %2435 = vmatprep.subr.mxu0 0.0
  %2436 = vmatpush1.msra.mxu0 0.0
  %2437 = vmatprep.subr.mxu0 0.0
  %2438 = vmatpush1.msra.mxu0 0.0
  %2439 = vmatprep.subr.mxu0 0.0
  %2440 = vmatpush1.msra.mxu0 0.0
  %2441 = vmatprep.subr.mxu0 0.0
  %2442 = vmatpush1.msra.mxu0 0.0
  %2443 = vmatprep.subr.mxu0 0.0
  %2444 = vmatpush1.msra.mxu0 0.0
  %2445 = vmatprep.subr.mxu0 0.0
  %2446 = vmatpush1.msra.mxu0 0.0
  %2447 = vmatprep.subr.mxu0 0.0
  %2448 = vmatpush1.msra.mxu0 0.0
  %2449 = vmatprep.subr.mxu0 0.0
  %2450 = vmatpush1.msra.mxu0 0.0
  %2451 = vmatprep.subr.mxu0 0.0
  %2452 = vmatpush1.msra.mxu0 0.0
  %2453 = vmatprep.subr.mxu0 0.0
  %2454 = vmatpush1.msra.mxu0 0.0
  %2455 = vmatprep.subr.mxu0 0.0
  %2456 = vmatpush1.msra.mxu0 0.0
  %2457 = vmatprep.mubr.f32.mxu0 0.0
  %2458 = vmatmul.mubr.f32.gmra.mrb[0].mxu0 %v2104
  %v2459 = vpop.f32.mrb[0].mxu0
  %v2460 = vadd.f32 %v2389, %v2459
  %v2461 = vpop.f32.mrb[0].mxu0
  %v2462 = vadd.f32 %v2390, %v2461
  %2463 = vdwg.mxu0
  %2464 = vmatprep.subr.mxu0 %v2176
  %2465 = vmatpush1.msra.mxu0 %v2175
  %2466 = vmatprep.subr.mxu0 %v2180
  %2467 = vmatpush1.msra.mxu0 %v2179
  %2468 = vmatprep.subr.mxu0 %v2184
  %2469 = vmatpush1.msra.mxu0 %v2183
  %2470 = vmatprep.subr.mxu0 %v2188
  %2471 = vmatpush1.msra.mxu0 %v2187
  %2472 = vmatprep.subr.mxu0 %v2192
  %2473 = vmatpush1.msra.mxu0 %v2191
  %2474 = vmatprep.subr.mxu0 %v2196
  %2475 = vmatpush1.msra.mxu0 %v2195
  %2476 = vmatprep.subr.mxu0 %v2200
  %2477 = vmatpush1.msra.mxu0 %v2199
  %2478 = vmatprep.subr.mxu0 %v2204
  %2479 = vmatpush1.msra.mxu0 %v2203
  %2480 = vmatprep.subr.mxu0 %v2208
  %2481 = vmatpush1.msra.mxu0 %v2207
  %2482 = vmatprep.subr.mxu0 %v2212
  %2483 = vmatpush1.msra.mxu0 %v2211
  %2484 = vmatprep.subr.mxu0 %v2216
  %2485 = vmatpush1.msra.mxu0 %v2215
  %2486 = vmatprep.subr.mxu0 %v2220
  %2487 = vmatpush1.msra.mxu0 %v2219
  %2488 = vmatprep.subr.mxu0 %v2224
  %2489 = vmatpush1.msra.mxu0 %v2223
  %2490 = vmatprep.subr.mxu0 %v2228
  %2491 = vmatpush1.msra.mxu0 %v2227
  %2492 = vmatprep.subr.mxu0 %v2232
  %2493 = vmatpush1.msra.mxu0 %v2231
  %2494 = vmatprep.subr.mxu0 %v2236
  %2495 = vmatpush1.msra.mxu0 %v2235
  %2496 = vmatprep.subr.mxu0 0.0
  %2497 = vmatpush1.msra.mxu0 0.0
  %2498 = vmatprep.subr.mxu0 0.0
  %2499 = vmatpush1.msra.mxu0 0.0
  %2500 = vmatprep.subr.mxu0 0.0
  %2501 = vmatpush1.msra.mxu0 0.0
  %2502 = vmatprep.subr.mxu0 0.0
  %2503 = vmatpush1.msra.mxu0 0.0
  %2504 = vmatprep.subr.mxu0 0.0
  %2505 = vmatpush1.msra.mxu0 0.0
  %2506 = vmatprep.subr.mxu0 0.0
  %2507 = vmatpush1.msra.mxu0 0.0
  %2508 = vmatprep.subr.mxu0 0.0
  %2509 = vmatpush1.msra.mxu0 0.0
  %2510 = vmatprep.subr.mxu0 0.0
  %2511 = vmatpush1.msra.mxu0 0.0
  %2512 = vmatprep.subr.mxu0 0.0
  %2513 = vmatpush1.msra.mxu0 0.0
  %2514 = vmatprep.subr.mxu0 0.0
  %2515 = vmatpush1.msra.mxu0 0.0
  %2516 = vmatprep.subr.mxu0 0.0
  %2517 = vmatpush1.msra.mxu0 0.0
  %2518 = vmatprep.subr.mxu0 0.0
  %2519 = vmatpush1.msra.mxu0 0.0
  %2520 = vmatprep.subr.mxu0 0.0
  %2521 = vmatpush1.msra.mxu0 0.0
  %2522 = vmatprep.subr.mxu0 0.0
  %2523 = vmatpush1.msra.mxu0 0.0
  %2524 = vmatprep.subr.mxu0 0.0
  %2525 = vmatpush1.msra.mxu0 0.0
  %2526 = vmatprep.subr.mxu0 0.0
  %2527 = vmatpush1.msra.mxu0 0.0
  %2528 = vmatprep.mubr.f32.mxu0 0.0
  %2529 = vmatmul.mubr.f32.gmra.mrb[0].mxu0 %v2104
  %v2530 = vpop.f32.mrb[0].mxu0
  %v2531 = vadd.f32 %v2391, %v2530
  %v2532 = vpop.f32.mrb[0].mxu0
  %v2533 = vadd.f32 %v2392, %v2532
  %2534 = vdwg.mxu0
  %v2535 = vxor.u32 %v2311, 2147483648
  %v2536 = vmul.f32 %v2535, 1.442695
  %v2537 = vpow.pop %v2536
  %v2538 = vadd.f32 %v2537, 1.0
  %v2539 = vrcp.pop %v2538
  %v2540 = vmul.f32 1.0, %v2539
  %v2541 = vxor.u32 %v2313, 2147483648
  %v2542 = vmul.f32 %v2541, 1.442695
  %v2543 = vpow.pop %v2542
  %v2544 = vadd.f32 %v2543, 1.0
  %v2545 = vrcp.pop %v2544
  %v2546 = vmul.f32 1.0, %v2545
  %v2547 = vtanh.pop %v2382
  %v2548 = vxor.u32 %v2384, 2147483648
  %v2549 = vmul.f32 %v2548, 1.442695
  %v2550 = vpow.pop %v2549
  %v2551 = vadd.f32 %v2550, 1.0
  %v2552 = vrcp.pop %v2551
  %v2553 = vmul.f32 1.0, %v2552
  %v2554 = vmul.f32 %v2546, %v2078
  %v2555 = vmul.f32 %v2540, %v2547
  %v2556 = vadd.f32 %v2554, %v2555
  %v2557 = vtanh.pop %v2556
  %v2558 = vmul.f32 %v2553, %v2557
  %v2559 = vxor.u32 %v2460, 2147483648
  %v2560 = vmul.f32 %v2559, 1.442695
  %v2561 = vpow.pop %v2560
  %v2562 = vadd.f32 %v2561, 1.0
  %v2563 = vrcp.pop %v2562
  %v2564 = vmul.f32 1.0, %v2563
  %v2565 = vxor.u32 %v2462, 2147483648
  %v2566 = vmul.f32 %v2565, 1.442695
  %v2567 = vpow.pop %v2566
  %v2568 = vadd.f32 %v2567, 1.0
  %v2569 = vrcp.pop %v2568
  %v2570 = vmul.f32 1.0, %v2569
  %v2571 = vtanh.pop %v2531
  %v2572 = vxor.u32 %v2533, 2147483648
  %v2573 = vmul.f32 %v2572, 1.442695
  %v2574 = vpow.pop %v2573
  %v2575 = vadd.f32 %v2574, 1.0
  %v2576 = vrcp.pop %v2575
  %v2577 = vmul.f32 1.0, %v2576
  %v2578 = vmul.f32 %v2570, %v2102
  %v2579 = vmul.f32 %v2564, %v2571
  %v2580 = vadd.f32 %v2578, %v2579
  %v2581 = vtanh.pop %v2580
  %v2582 = vmul.f32 %v2577, %v2581
  %s2583 = scalar_lea.vmem [#allocation4], 24
  %2584 = vst [vmem:[%s2583] sm:$0xff] %v2558
  %s2585 = scalar_lea.vmem [#allocation5], 32
  %2586 = vst [vmem:[%s2585] sm:$0xff] %v2582
  %v2587 = vld [vmem:[%s3] sm:$0xff]
  %v2588 = vld [vmem:[%s3 + $0x8] sm:$0xff]
  %v2589 = vld [vmem:[%s3 + $0x10] sm:$0xff]
  %v2590 = vld [vmem:[%s3 + $0x18] sm:$0xff]
  %v2591 = vld [vmem:[%s3 + $0x20] sm:$0xff]
  %v2592 = vld [vmem:[%s3 + $0x28] sm:$0xff]
  %v2593 = vld [vmem:[%s3 + $0x30] sm:$0xff]
  %v2594 = vld [vmem:[%s3 + $0x38] sm:$0xff]
  %v2595 = vld [vmem:[%s3 + $0x40] sm:$0xff]
  %v2596 = vld [vmem:[%s3 + $0x48] sm:$0xff]
  %v2597 = vld [vmem:[%s3 + $0x50] sm:$0xff]
  %v2598 = vld [vmem:[%s3 + $0x58] sm:$0xff]
  %v2599 = vld [vmem:[%s3 + $0x60] sm:$0xff]
  %v2600 = vld [vmem:[%s3 + $0x68] sm:$0xff]
  %v2601 = vld [vmem:[%s3 + $0x70] sm:$0xff]
  %v2602 = vld [vmem:[%s3 + $0x78] sm:$0xff]
  %v2603 = vld [vmem:[%s3 + $0x80] sm:$0xff]
  %v2604 = vld [vmem:[%s3 + $0x88] sm:$0xff]
  %v2605 = vld [vmem:[%s3 + $0x90] sm:$0xff]
  %v2606 = vld [vmem:[%s3 + $0x98] sm:$0xff]
  %v2607 = vld [vmem:[%s3 + $0xa0] sm:$0xff]
  %v2608 = vld [vmem:[%s3 + $0xa8] sm:$0xff]
  %v2609 = vld [vmem:[%s3 + $0xb0] sm:$0xff]
  %v2610 = vld [vmem:[%s3 + $0xb8] sm:$0xff]
  %v2611 = vld [vmem:[%s3 + $0xc0] sm:$0xff]
  %v2612 = vld [vmem:[%s3 + $0xc8] sm:$0xff]
  %v2613 = vld [vmem:[%s3 + $0xd0] sm:$0xff]
  %v2614 = vld [vmem:[%s3 + $0xd8] sm:$0xff]
  %v2615 = vld [vmem:[%s3 + $0xe0] sm:$0xff]
  %v2616 = vld [vmem:[%s3 + $0xe8] sm:$0xff]
  %v2617 = vld [vmem:[%s3 + $0xf0] sm:$0xff]
  %v2618 = vld [vmem:[%s3 + $0xf8] sm:$0xff]
  %v2619 = vld [vmem:[%s3 + $0x100] sm:$0xff]
  %v2620 = vld [vmem:[%s3 + $0x108] sm:$0xff]
  %v2621 = vld [vmem:[%s3 + $0x110] sm:$0xff]
  %v2622 = vld [vmem:[%s3 + $0x118] sm:$0xff]
  %v2623 = vld [vmem:[%s3 + $0x120] sm:$0xff]
  %v2624 = vld [vmem:[%s3 + $0x128] sm:$0xff]
  %v2625 = vld [vmem:[%s3 + $0x130] sm:$0xff]
  %v2626 = vld [vmem:[%s3 + $0x138] sm:$0xff]
  %v2627 = vld [vmem:[%s3 + $0x140] sm:$0xff]
  %v2628 = vld [vmem:[%s3 + $0x148] sm:$0xff]
  %v2629 = vld [vmem:[%s3 + $0x150] sm:$0xff]
  %v2630 = vld [vmem:[%s3 + $0x158] sm:$0xff]
  %v2631 = vld [vmem:[%s3 + $0x160] sm:$0xff]
  %v2632 = vld [vmem:[%s3 + $0x168] sm:$0xff]
  %v2633 = vld [vmem:[%s3 + $0x170] sm:$0xff]
  %v2634 = vld [vmem:[%s3 + $0x178] sm:$0xff]
  %v2635 = vld [vmem:[%s3 + $0x180] sm:$0xff]
  %v2636 = vld [vmem:[%s3 + $0x188] sm:$0xff]
  %v2637 = vld [vmem:[%s3 + $0x190] sm:$0xff]
  %v2638 = vld [vmem:[%s3 + $0x198] sm:$0xff]
  %v2639 = vld [vmem:[%s3 + $0x1a0] sm:$0xff]
  %v2640 = vld [vmem:[%s3 + $0x1a8] sm:$0xff]
  %v2641 = vld [vmem:[%s3 + $0x1b0] sm:$0xff]
  %v2642 = vld [vmem:[%s3 + $0x1b8] sm:$0xff]
  %v2643 = vld [vmem:[%s3 + $0x1c0] sm:$0xff]
  %v2644 = vld [vmem:[%s3 + $0x1c8] sm:$0xff]
  %v2645 = vld [vmem:[%s3 + $0x1d0] sm:$0xff]
  %v2646 = vld [vmem:[%s3 + $0x1d8] sm:$0xff]
  %v2647 = vld [vmem:[%s3 + $0x1e0] sm:$0xff]
  %v2648 = vld [vmem:[%s3 + $0x1e8] sm:$0xff]
  %v2649 = vld [vmem:[%s3 + $0x1f0] sm:$0xff]
  %v2650 = vld [vmem:[%s3 + $0x1f8] sm:$0xff]
  %v2651 = vld [vmem:[%s4] sm:$0xff]
  %v2652 = vld [vmem:[%s4 + $0x8] sm:$0xff]
  %v2653 = vld [vmem:[%s4 + $0x10] sm:$0xff]
  %v2654 = vld [vmem:[%s4 + $0x18] sm:$0xff]
  %v2655 = vld [vmem:[%s4 + $0x20] sm:$0xff]
  %v2656 = vld [vmem:[%s4 + $0x28] sm:$0xff]
  %v2657 = vld [vmem:[%s4 + $0x30] sm:$0xff]
  %v2658 = vld [vmem:[%s4 + $0x38] sm:$0xff]
  %v2659 = vld [vmem:[%s4 + $0x40] sm:$0xff]
  %v2660 = vld [vmem:[%s4 + $0x48] sm:$0xff]
  %v2661 = vld [vmem:[%s4 + $0x50] sm:$0xff]
  %v2662 = vld [vmem:[%s4 + $0x58] sm:$0xff]
  %v2663 = vld [vmem:[%s4 + $0x60] sm:$0xff]
  %v2664 = vld [vmem:[%s4 + $0x68] sm:$0xff]
  %v2665 = vld [vmem:[%s4 + $0x70] sm:$0xff]
  %v2666 = vld [vmem:[%s4 + $0x78] sm:$0xff]
  %v2667 = vld [vmem:[%s4 + $0x80] sm:$0xff]
  %v2668 = vld [vmem:[%s4 + $0x88] sm:$0xff]
  %v2669 = vld [vmem:[%s4 + $0x90] sm:$0xff]
  %v2670 = vld [vmem:[%s4 + $0x98] sm:$0xff]
  %v2671 = vld [vmem:[%s4 + $0xa0] sm:$0xff]
  %v2672 = vld [vmem:[%s4 + $0xa8] sm:$0xff]
  %v2673 = vld [vmem:[%s4 + $0xb0] sm:$0xff]
  %v2674 = vld [vmem:[%s4 + $0xb8] sm:$0xff]
  %v2675 = vld [vmem:[%s4 + $0xc0] sm:$0xff]
  %v2676 = vld [vmem:[%s4 + $0xc8] sm:$0xff]
  %v2677 = vld [vmem:[%s4 + $0xd0] sm:$0xff]
  %v2678 = vld [vmem:[%s4 + $0xd8] sm:$0xff]
  %v2679 = vld [vmem:[%s4 + $0xe0] sm:$0xff]
  %v2680 = vld [vmem:[%s4 + $0xe8] sm:$0xff]
  %v2681 = vld [vmem:[%s4 + $0xf0] sm:$0xff]
  %v2682 = vld [vmem:[%s4 + $0xf8] sm:$0xff]
  %v2683 = vld [vmem:[%s4 + $0x100] sm:$0xff]
  %v2684 = vld [vmem:[%s4 + $0x108] sm:$0xff]
  %v2685 = vld [vmem:[%s4 + $0x110] sm:$0xff]
  %v2686 = vld [vmem:[%s4 + $0x118] sm:$0xff]
  %v2687 = vld [vmem:[%s4 + $0x120] sm:$0xff]
  %v2688 = vld [vmem:[%s4 + $0x128] sm:$0xff]
  %v2689 = vld [vmem:[%s4 + $0x130] sm:$0xff]
  %v2690 = vld [vmem:[%s4 + $0x138] sm:$0xff]
  %v2691 = vld [vmem:[%s4 + $0x140] sm:$0xff]
  %v2692 = vld [vmem:[%s4 + $0x148] sm:$0xff]
  %v2693 = vld [vmem:[%s4 + $0x150] sm:$0xff]
  %v2694 = vld [vmem:[%s4 + $0x158] sm:$0xff]
  %v2695 = vld [vmem:[%s4 + $0x160] sm:$0xff]
  %v2696 = vld [vmem:[%s4 + $0x168] sm:$0xff]
  %v2697 = vld [vmem:[%s4 + $0x170] sm:$0xff]
  %v2698 = vld [vmem:[%s4 + $0x178] sm:$0xff]
  %v2699 = vld [vmem:[%s4 + $0x180] sm:$0xff]
  %v2700 = vld [vmem:[%s4 + $0x188] sm:$0xff]
  %v2701 = vld [vmem:[%s4 + $0x190] sm:$0xff]
  %v2702 = vld [vmem:[%s4 + $0x198] sm:$0xff]
  %v2703 = vld [vmem:[%s4 + $0x1a0] sm:$0xff]
  %v2704 = vld [vmem:[%s4 + $0x1a8] sm:$0xff]
  %v2705 = vld [vmem:[%s4 + $0x1b0] sm:$0xff]
  %v2706 = vld [vmem:[%s4 + $0x1b8] sm:$0xff]
  %v2707 = vld [vmem:[%s4 + $0x1c0] sm:$0xff]
  %v2708 = vld [vmem:[%s4 + $0x1c8] sm:$0xff]
  %v2709 = vld [vmem:[%s4 + $0x1d0] sm:$0xff]
  %v2710 = vld [vmem:[%s4 + $0x1d8] sm:$0xff]
  %v2711 = vld [vmem:[%s4 + $0x1e0] sm:$0xff]
  %v2712 = vld [vmem:[%s4 + $0x1e8] sm:$0xff]
  %v2713 = vld [vmem:[%s4 + $0x1f0] sm:$0xff]
  %v2714 = vld [vmem:[%s4 + $0x1f8] sm:$0xff]
  %s2715 = smul.addr %s2386, 8
  %s2716 = scalar_lea.vmem [#allocation2], %s2715
  %v2717 = vld [vmem:[%s2716] sm:$0xff]
  %v2718 = vld [vmem:[%s2716 + $0x8] sm:$0xff]
  %v2719 = vld [vmem:[%s2716 + $0x10] sm:$0xff]
  %v2720 = vld [vmem:[%s2716 + $0x18] sm:$0xff]
  %2721 = vmatprep.subr.mxu0 %v2588
  %2722 = vmatpush1.msra.mxu0 %v2587
  %2723 = vmatprep.subr.mxu0 %v2592
  %2724 = vmatpush1.msra.mxu0 %v2591
  %2725 = vmatprep.subr.mxu0 %v2596
  %2726 = vmatpush1.msra.mxu0 %v2595
  %2727 = vmatprep.subr.mxu0 %v2600
  %2728 = vmatpush1.msra.mxu0 %v2599
  %2729 = vmatprep.subr.mxu0 %v2604
  %2730 = vmatpush1.msra.mxu0 %v2603
  %2731 = vmatprep.subr.mxu0 %v2608
  %2732 = vmatpush1.msra.mxu0 %v2607
  %2733 = vmatprep.subr.mxu0 %v2612
  %2734 = vmatpush1.msra.mxu0 %v2611
  %2735 = vmatprep.subr.mxu0 %v2616
  %2736 = vmatpush1.msra.mxu0 %v2615
  %2737 = vmatprep.subr.mxu0 %v2620
  %2738 = vmatpush1.msra.mxu0 %v2619
  %2739 = vmatprep.subr.mxu0 %v2624
  %2740 = vmatpush1.msra.mxu0 %v2623
  %2741 = vmatprep.subr.mxu0 %v2628
  %2742 = vmatpush1.msra.mxu0 %v2627
  %2743 = vmatprep.subr.mxu0 %v2632
  %2744 = vmatpush1.msra.mxu0 %v2631
  %2745 = vmatprep.subr.mxu0 %v2636
  %2746 = vmatpush1.msra.mxu0 %v2635
  %2747 = vmatprep.subr.mxu0 %v2640
  %2748 = vmatpush1.msra.mxu0 %v2639
  %2749 = vmatprep.subr.mxu0 %v2644
  %2750 = vmatpush1.msra.mxu0 %v2643
  %2751 = vmatprep.subr.mxu0 %v2648
  %2752 = vmatpush1.msra.mxu0 %v2647
  %2753 = vmatprep.subr.mxu0 0.0
  %2754 = vmatpush1.msra.mxu0 0.0
  %2755 = vmatprep.subr.mxu0 0.0
  %2756 = vmatpush1.msra.mxu0 0.0
  %2757 = vmatprep.subr.mxu0 0.0
  %2758 = vmatpush1.msra.mxu0 0.0
  %2759 = vmatprep.subr.mxu0 0.0
  %2760 = vmatpush1.msra.mxu0 0.0
  %2761 = vmatprep.subr.mxu0 0.0
  %2762 = vmatpush1.msra.mxu0 0.0
  %2763 = vmatprep.subr.mxu0 0.0
  %2764 = vmatpush1.msra.mxu0 0.0
  %2765 = vmatprep.subr.mxu0 0.0
  %2766 = vmatpush1.msra.mxu0 0.0
  %2767 = vmatprep.subr.mxu0 0.0
  %2768 = vmatpush1.msra.mxu0 0.0
  %2769 = vmatprep.subr.mxu0 0.0
  %2770 = vmatpush1.msra.mxu0 0.0
  %2771 = vmatprep.subr.mxu0 0.0
  %2772 = vmatpush1.msra.mxu0 0.0
  %2773 = vmatprep.subr.mxu0 0.0
  %2774 = vmatpush1.msra.mxu0 0.0
  %2775 = vmatprep.subr.mxu0 0.0
  %2776 = vmatpush1.msra.mxu0 0.0
  %2777 = vmatprep.subr.mxu0 0.0
  %2778 = vmatpush1.msra.mxu0 0.0
  %2779 = vmatprep.subr.mxu0 0.0
  %2780 = vmatpush1.msra.mxu0 0.0
  %2781 = vmatprep.subr.mxu0 0.0
  %2782 = vmatpush1.msra.mxu0 0.0
  %2783 = vmatprep.subr.mxu0 0.0
  %2784 = vmatpush1.msra.mxu0 0.0
  %2785 = vmatprep.mubr.f32.mxu0 0.0
  %2786 = vmatmul.mubr.f32.gmra.mrb[0].mxu0 %v2558
  %v2787 = vpop.f32.mrb[0].mxu0
  %v2788 = vadd.f32 %v2717, %v2787
  %v2789 = vpop.f32.mrb[0].mxu0
  %v2790 = vadd.f32 %v2718, %v2789
  %2791 = vdwg.mxu0
  %2792 = vmatprep.subr.mxu0 %v2590
  %2793 = vmatpush1.msra.mxu0 %v2589
  %2794 = vmatprep.subr.mxu0 %v2594
  %2795 = vmatpush1.msra.mxu0 %v2593
  %2796 = vmatprep.subr.mxu0 %v2598
  %2797 = vmatpush1.msra.mxu0 %v2597
  %2798 = vmatprep.subr.mxu0 %v2602
  %2799 = vmatpush1.msra.mxu0 %v2601
  %2800 = vmatprep.subr.mxu0 %v2606
  %2801 = vmatpush1.msra.mxu0 %v2605
  %2802 = vmatprep.subr.mxu0 %v2610
  %2803 = vmatpush1.msra.mxu0 %v2609
  %2804 = vmatprep.subr.mxu0 %v2614
  %2805 = vmatpush1.msra.mxu0 %v2613
  %2806 = vmatprep.subr.mxu0 %v2618
  %2807 = vmatpush1.msra.mxu0 %v2617
  %2808 = vmatprep.subr.mxu0 %v2622
  %2809 = vmatpush1.msra.mxu0 %v2621
  %2810 = vmatprep.subr.mxu0 %v2626
  %2811 = vmatpush1.msra.mxu0 %v2625
  %2812 = vmatprep.subr.mxu0 %v2630
  %2813 = vmatpush1.msra.mxu0 %v2629
  %2814 = vmatprep.subr.mxu0 %v2634
  %2815 = vmatpush1.msra.mxu0 %v2633
  %2816 = vmatprep.subr.mxu0 %v2638
  %2817 = vmatpush1.msra.mxu0 %v2637
  %2818 = vmatprep.subr.mxu0 %v2642
  %2819 = vmatpush1.msra.mxu0 %v2641
  %2820 = vmatprep.subr.mxu0 %v2646
  %2821 = vmatpush1.msra.mxu0 %v2645
  %2822 = vmatprep.subr.mxu0 %v2650
  %2823 = vmatpush1.msra.mxu0 %v2649
  %2824 = vmatprep.subr.mxu0 0.0
  %2825 = vmatpush1.msra.mxu0 0.0
  %2826 = vmatprep.subr.mxu0 0.0
  %2827 = vmatpush1.msra.mxu0 0.0
  %2828 = vmatprep.subr.mxu0 0.0
  %2829 = vmatpush1.msra.mxu0 0.0
  %2830 = vmatprep.subr.mxu0 0.0
  %2831 = vmatpush1.msra.mxu0 0.0
  %2832 = vmatprep.subr.mxu0 0.0
  %2833 = vmatpush1.msra.mxu0 0.0
  %2834 = vmatprep.subr.mxu0 0.0
  %2835 = vmatpush1.msra.mxu0 0.0
  %2836 = vmatprep.subr.mxu0 0.0
  %2837 = vmatpush1.msra.mxu0 0.0
  %2838 = vmatprep.subr.mxu0 0.0
  %2839 = vmatpush1.msra.mxu0 0.0
  %2840 = vmatprep.subr.mxu0 0.0
  %2841 = vmatpush1.msra.mxu0 0.0
  %2842 = vmatprep.subr.mxu0 0.0
  %2843 = vmatpush1.msra.mxu0 0.0
  %2844 = vmatprep.subr.mxu0 0.0
  %2845 = vmatpush1.msra.mxu0 0.0
  %2846 = vmatprep.subr.mxu0 0.0
  %2847 = vmatpush1.msra.mxu0 0.0
  %2848 = vmatprep.subr.mxu0 0.0
  %2849 = vmatpush1.msra.mxu0 0.0
  %2850 = vmatprep.subr.mxu0 0.0
  %2851 = vmatpush1.msra.mxu0 0.0
  %2852 = vmatprep.subr.mxu0 0.0
  %2853 = vmatpush1.msra.mxu0 0.0
  %2854 = vmatprep.subr.mxu0 0.0
  %2855 = vmatpush1.msra.mxu0 0.0
  %2856 = vmatprep.mubr.f32.mxu0 0.0
  %2857 = vmatmul.mubr.f32.gmra.mrb[0].mxu0 %v2558
  %v2858 = vpop.f32.mrb[0].mxu0
  %v2859 = vadd.f32 %v2719, %v2858
  %v2860 = vpop.f32.mrb[0].mxu0
  %v2861 = vadd.f32 %v2720, %v2860
  %2862 = vdwg.mxu0
  %s2863 = smul.addr %s2237, 8
  %s2864 = scalar_lea.vmem [#allocation3], %s2863
  %v2865 = vld [vmem:[%s2864] sm:$0xff]
  %v2866 = vld [vmem:[%s2864 + $0x8] sm:$0xff]
  %v2867 = vld [vmem:[%s2864 + $0x10] sm:$0xff]
  %v2868 = vld [vmem:[%s2864 + $0x18] sm:$0xff]
  %2869 = vmatprep.subr.mxu0 %v2652
  %2870 = vmatpush1.msra.mxu0 %v2651
  %2871 = vmatprep.subr.mxu0 %v2656
  %2872 = vmatpush1.msra.mxu0 %v2655
  %2873 = vmatprep.subr.mxu0 %v2660
  %2874 = vmatpush1.msra.mxu0 %v2659
  %2875 = vmatprep.subr.mxu0 %v2664
  %2876 = vmatpush1.msra.mxu0 %v2663
  %2877 = vmatprep.subr.mxu0 %v2668
  %2878 = vmatpush1.msra.mxu0 %v2667
  %2879 = vmatprep.subr.mxu0 %v2672
  %2880 = vmatpush1.msra.mxu0 %v2671
  %2881 = vmatprep.subr.mxu0 %v2676
  %2882 = vmatpush1.msra.mxu0 %v2675
  %2883 = vmatprep.subr.mxu0 %v2680
  %2884 = vmatpush1.msra.mxu0 %v2679
  %2885 = vmatprep.subr.mxu0 %v2684
  %2886 = vmatpush1.msra.mxu0 %v2683
  %2887 = vmatprep.subr.mxu0 %v2688
  %2888 = vmatpush1.msra.mxu0 %v2687
  %2889 = vmatprep.subr.mxu0 %v2692
  %2890 = vmatpush1.msra.mxu0 %v2691
  %2891 = vmatprep.subr.mxu0 %v2696
  %2892 = vmatpush1.msra.mxu0 %v2695
  %2893 = vmatprep.subr.mxu0 %v2700
  %2894 = vmatpush1.msra.mxu0 %v2699
  %2895 = vmatprep.subr.mxu0 %v2704
  %2896 = vmatpush1.msra.mxu0 %v2703
  %2897 = vmatprep.subr.mxu0 %v2708
  %2898 = vmatpush1.msra.mxu0 %v2707
  %2899 = vmatprep.subr.mxu0 %v2712
  %2900 = vmatpush1.msra.mxu0 %v2711
  %2901 = vmatprep.subr.mxu0 0.0
  %2902 = vmatpush1.msra.mxu0 0.0
  %2903 = vmatprep.subr.mxu0 0.0
  %2904 = vmatpush1.msra.mxu0 0.0
  %2905 = vmatprep.subr.mxu0 0.0
  %2906 = vmatpush1.msra.mxu0 0.0
  %2907 = vmatprep.subr.mxu0 0.0
  %2908 = vmatpush1.msra.mxu0 0.0
  %2909 = vmatprep.subr.mxu0 0.0
  %2910 = vmatpush1.msra.mxu0 0.0
  %2911 = vmatprep.subr.mxu0 0.0
  %2912 = vmatpush1.msra.mxu0 0.0
  %2913 = vmatprep.subr.mxu0 0.0
  %2914 = vmatpush1.msra.mxu0 0.0
  %2915 = vmatprep.subr.mxu0 0.0
  %2916 = vmatpush1.msra.mxu0 0.0
  %2917 = vmatprep.subr.mxu0 0.0
  %2918 = vmatpush1.msra.mxu0 0.0
  %2919 = vmatprep.subr.mxu0 0.0
  %2920 = vmatpush1.msra.mxu0 0.0
  %2921 = vmatprep.subr.mxu0 0.0
  %2922 = vmatpush1.msra.mxu0 0.0
  %2923 = vmatprep.subr.mxu0 0.0
  %2924 = vmatpush1.msra.mxu0 0.0
  %2925 = vmatprep.subr.mxu0 0.0
  %2926 = vmatpush1.msra.mxu0 0.0
  %2927 = vmatprep.subr.mxu0 0.0
  %2928 = vmatpush1.msra.mxu0 0.0
  %2929 = vmatprep.subr.mxu0 0.0
  %2930 = vmatpush1.msra.mxu0 0.0
  %2931 = vmatprep.subr.mxu0 0.0
  %2932 = vmatpush1.msra.mxu0 0.0
  %2933 = vmatprep.mubr.f32.mxu0 0.0
  %2934 = vmatmul.mubr.f32.gmra.mrb[0].mxu0 %v2582
  %v2935 = vpop.f32.mrb[0].mxu0
  %v2936 = vadd.f32 %v2865, %v2935
  %v2937 = vpop.f32.mrb[0].mxu0
  %v2938 = vadd.f32 %v2866, %v2937
  %2939 = vdwg.mxu0
  %2940 = vmatprep.subr.mxu0 %v2654
  %2941 = vmatpush1.msra.mxu0 %v2653
  %2942 = vmatprep.subr.mxu0 %v2658
  %2943 = vmatpush1.msra.mxu0 %v2657
  %2944 = vmatprep.subr.mxu0 %v2662
  %2945 = vmatpush1.msra.mxu0 %v2661
  %2946 = vmatprep.subr.mxu0 %v2666
  %2947 = vmatpush1.msra.mxu0 %v2665
  %2948 = vmatprep.subr.mxu0 %v2670
  %2949 = vmatpush1.msra.mxu0 %v2669
  %2950 = vmatprep.subr.mxu0 %v2674
  %2951 = vmatpush1.msra.mxu0 %v2673
  %2952 = vmatprep.subr.mxu0 %v2678
  %2953 = vmatpush1.msra.mxu0 %v2677
  %2954 = vmatprep.subr.mxu0 %v2682
  %2955 = vmatpush1.msra.mxu0 %v2681
  %2956 = vmatprep.subr.mxu0 %v2686
  %2957 = vmatpush1.msra.mxu0 %v2685
  %2958 = vmatprep.subr.mxu0 %v2690
  %2959 = vmatpush1.msra.mxu0 %v2689
  %2960 = vmatprep.subr.mxu0 %v2694
  %2961 = vmatpush1.msra.mxu0 %v2693
  %2962 = vmatprep.subr.mxu0 %v2698
  %2963 = vmatpush1.msra.mxu0 %v2697
  %2964 = vmatprep.subr.mxu0 %v2702
  %2965 = vmatpush1.msra.mxu0 %v2701
  %2966 = vmatprep.subr.mxu0 %v2706
  %2967 = vmatpush1.msra.mxu0 %v2705
  %2968 = vmatprep.subr.mxu0 %v2710
  %2969 = vmatpush1.msra.mxu0 %v2709
  %2970 = vmatprep.subr.mxu0 %v2714
  %2971 = vmatpush1.msra.mxu0 %v2713
  %2972 = vmatprep.subr.mxu0 0.0
  %2973 = vmatpush1.msra.mxu0 0.0
  %2974 = vmatprep.subr.mxu0 0.0
  %2975 = vmatpush1.msra.mxu0 0.0
  %2976 = vmatprep.subr.mxu0 0.0
  %2977 = vmatpush1.msra.mxu0 0.0
  %2978 = vmatprep.subr.mxu0 0.0
  %2979 = vmatpush1.msra.mxu0 0.0
  %2980 = vmatprep.subr.mxu0 0.0
  %2981 = vmatpush1.msra.mxu0 0.0
  %2982 = vmatprep.subr.mxu0 0.0
  %2983 = vmatpush1.msra.mxu0 0.0
  %2984 = vmatprep.subr.mxu0 0.0
  %2985 = vmatpush1.msra.mxu0 0.0
  %2986 = vmatprep.subr.mxu0 0.0
  %2987 = vmatpush1.msra.mxu0 0.0
  %2988 = vmatprep.subr.mxu0 0.0
  %2989 = vmatpush1.msra.mxu0 0.0
  %2990 = vmatprep.subr.mxu0 0.0
  %2991 = vmatpush1.msra.mxu0 0.0
  %2992 = vmatprep.subr.mxu0 0.0
  %2993 = vmatpush1.msra.mxu0 0.0
  %2994 = vmatprep.subr.mxu0 0.0
  %2995 = vmatpush1.msra.mxu0 0.0
  %2996 = vmatprep.subr.mxu0 0.0
  %2997 = vmatpush1.msra.mxu0 0.0
  %2998 = vmatprep.subr.mxu0 0.0
  %2999 = vmatpush1.msra.mxu0 0.0
  %3000 = vmatprep.subr.mxu0 0.0
  %3001 = vmatpush1.msra.mxu0 0.0
  %3002 = vmatprep.subr.mxu0 0.0
  %3003 = vmatpush1.msra.mxu0 0.0
  %3004 = vmatprep.mubr.f32.mxu0 0.0
  %3005 = vmatmul.mubr.f32.gmra.mrb[0].mxu0 %v2582
  %v3006 = vpop.f32.mrb[0].mxu0
  %v3007 = vadd.f32 %v2867, %v3006
  %v3008 = vpop.f32.mrb[0].mxu0
  %v3009 = vadd.f32 %v2868, %v3008
  %3010 = vdwg.mxu0
  %v3011 = vxor.u32 %v2788, 2147483648
  %v3012 = vmul.f32 %v3011, 1.442695
  %v3013 = vpow.pop %v3012
  %v3014 = vadd.f32 %v3013, 1.0
  %v3015 = vrcp.pop %v3014
  %v3016 = vmul.f32 1.0, %v3015
  %v3017 = vxor.u32 %v2790, 2147483648
  %v3018 = vmul.f32 %v3017, 1.442695
  %v3019 = vpow.pop %v3018
  %v3020 = vadd.f32 %v3019, 1.0
  %v3021 = vrcp.pop %v3020
  %v3022 = vmul.f32 1.0, %v3021
  %v3023 = vtanh.pop %v2859
  %v3024 = vxor.u32 %v2861, 2147483648
  %v3025 = vmul.f32 %v3024, 1.442695
  %v3026 = vpow.pop %v3025
  %v3027 = vadd.f32 %v3026, 1.0
  %v3028 = vrcp.pop %v3027
  %v3029 = vmul.f32 1.0, %v3028
  %v3030 = vmul.f32 %v3022, %v2556
  %v3031 = vmul.f32 %v3016, %v3023
  %v3032 = vadd.f32 %v3030, %v3031
  %v3033 = vtanh.pop %v3032
  %v3034 = vmul.f32 %v3029, %v3033
  %v3035 = vxor.u32 %v2936, 2147483648
  %v3036 = vmul.f32 %v3035, 1.442695
  %v3037 = vpow.pop %v3036
  %v3038 = vadd.f32 %v3037, 1.0
  %v3039 = vrcp.pop %v3038
  %v3040 = vmul.f32 1.0, %v3039
  %v3041 = vxor.u32 %v2938, 2147483648
  %v3042 = vmul.f32 %v3041, 1.442695
  %v3043 = vpow.pop %v3042
  %v3044 = vadd.f32 %v3043, 1.0
  %v3045 = vrcp.pop %v3044
  %v3046 = vmul.f32 1.0, %v3045
  %v3047 = vtanh.pop %v3007
  %v3048 = vxor.u32 %v3009, 2147483648
  %v3049 = vmul.f32 %v3048, 1.442695
  %v3050 = vpow.pop %v3049
  %v3051 = vadd.f32 %v3050, 1.0
  %v3052 = vrcp.pop %v3051
  %v3053 = vmul.f32 1.0, %v3052
  %v3054 = vmul.f32 %v3046, %v2580
  %v3055 = vmul.f32 %v3040, %v3047
  %v3056 = vadd.f32 %v3054, %v3055
  %v3057 = vtanh.pop %v3056
  %v3058 = vmul.f32 %v3053, %v3057
  %s3059 = scalar_lea.vmem [#allocation4], 32
  %3060 = vst [vmem:[%s3059] sm:$0xff] %v3034
  %s3061 = scalar_lea.vmem [#allocation5], 24
  %3062 = vst [vmem:[%s3061] sm:$0xff] %v3058
  %v3063 = vld [vmem:[%s3] sm:$0xff]
  %v3064 = vld [vmem:[%s3 + $0x8] sm:$0xff]
  %v3065 = vld [vmem:[%s3 + $0x10] sm:$0xff]
  %v3066 = vld [vmem:[%s3 + $0x18] sm:$0xff]
  %v3067 = vld [vmem:[%s3 + $0x20] sm:$0xff]
  %v3068 = vld [vmem:[%s3 + $0x28] sm:$0xff]
  %v3069 = vld [vmem:[%s3 + $0x30] sm:$0xff]
  %v3070 = vld [vmem:[%s3 + $0x38] sm:$0xff]
  %v3071 = vld [vmem:[%s3 + $0x40] sm:$0xff]
  %v3072 = vld [vmem:[%s3 + $0x48] sm:$0xff]
  %v3073 = vld [vmem:[%s3 + $0x50] sm:$0xff]
  %v3074 = vld [vmem:[%s3 + $0x58] sm:$0xff]
  %v3075 = vld [vmem:[%s3 + $0x60] sm:$0xff]
  %v3076 = vld [vmem:[%s3 + $0x68] sm:$0xff]
  %v3077 = vld [vmem:[%s3 + $0x70] sm:$0xff]
  %v3078 = vld [vmem:[%s3 + $0x78] sm:$0xff]
  %v3079 = vld [vmem:[%s3 + $0x80] sm:$0xff]
  %v3080 = vld [vmem:[%s3 + $0x88] sm:$0xff]
  %v3081 = vld [vmem:[%s3 + $0x90] sm:$0xff]
  %v3082 = vld [vmem:[%s3 + $0x98] sm:$0xff]
  %v3083 = vld [vmem:[%s3 + $0xa0] sm:$0xff]
  %v3084 = vld [vmem:[%s3 + $0xa8] sm:$0xff]
  %v3085 = vld [vmem:[%s3 + $0xb0] sm:$0xff]
  %v3086 = vld [vmem:[%s3 + $0xb8] sm:$0xff]
  %v3087 = vld [vmem:[%s3 + $0xc0] sm:$0xff]
  %v3088 = vld [vmem:[%s3 + $0xc8] sm:$0xff]
  %v3089 = vld [vmem:[%s3 + $0xd0] sm:$0xff]
  %v3090 = vld [vmem:[%s3 + $0xd8] sm:$0xff]
  %v3091 = vld [vmem:[%s3 + $0xe0] sm:$0xff]
  %v3092 = vld [vmem:[%s3 + $0xe8] sm:$0xff]
  %v3093 = vld [vmem:[%s3 + $0xf0] sm:$0xff]
  %v3094 = vld [vmem:[%s3 + $0xf8] sm:$0xff]
  %v3095 = vld [vmem:[%s3 + $0x100] sm:$0xff]
  %v3096 = vld [vmem:[%s3 + $0x108] sm:$0xff]
  %v3097 = vld [vmem:[%s3 + $0x110] sm:$0xff]
  %v3098 = vld [vmem:[%s3 + $0x118] sm:$0xff]
  %v3099 = vld [vmem:[%s3 + $0x120] sm:$0xff]
  %v3100 = vld [vmem:[%s3 + $0x128] sm:$0xff]
  %v3101 = vld [vmem:[%s3 + $0x130] sm:$0xff]
  %v3102 = vld [vmem:[%s3 + $0x138] sm:$0xff]
  %v3103 = vld [vmem:[%s3 + $0x140] sm:$0xff]
  %v3104 = vld [vmem:[%s3 + $0x148] sm:$0xff]
  %v3105 = vld [vmem:[%s3 + $0x150] sm:$0xff]
  %v3106 = vld [vmem:[%s3 + $0x158] sm:$0xff]
  %v3107 = vld [vmem:[%s3 + $0x160] sm:$0xff]
  %v3108 = vld [vmem:[%s3 + $0x168] sm:$0xff]
  %v3109 = vld [vmem:[%s3 + $0x170] sm:$0xff]
  %v3110 = vld [vmem:[%s3 + $0x178] sm:$0xff]
  %v3111 = vld [vmem:[%s3 + $0x180] sm:$0xff]
  %v3112 = vld [vmem:[%s3 + $0x188] sm:$0xff]
  %v3113 = vld [vmem:[%s3 + $0x190] sm:$0xff]
  %v3114 = vld [vmem:[%s3 + $0x198] sm:$0xff]
  %v3115 = vld [vmem:[%s3 + $0x1a0] sm:$0xff]
  %v3116 = vld [vmem:[%s3 + $0x1a8] sm:$0xff]
  %v3117 = vld [vmem:[%s3 + $0x1b0] sm:$0xff]
  %v3118 = vld [vmem:[%s3 + $0x1b8] sm:$0xff]
  %v3119 = vld [vmem:[%s3 + $0x1c0] sm:$0xff]
  %v3120 = vld [vmem:[%s3 + $0x1c8] sm:$0xff]
  %v3121 = vld [vmem:[%s3 + $0x1d0] sm:$0xff]
  %v3122 = vld [vmem:[%s3 + $0x1d8] sm:$0xff]
  %v3123 = vld [vmem:[%s3 + $0x1e0] sm:$0xff]
  %v3124 = vld [vmem:[%s3 + $0x1e8] sm:$0xff]
  %v3125 = vld [vmem:[%s3 + $0x1f0] sm:$0xff]
  %v3126 = vld [vmem:[%s3 + $0x1f8] sm:$0xff]
  %v3127 = vld [vmem:[%s4] sm:$0xff]
  %v3128 = vld [vmem:[%s4 + $0x8] sm:$0xff]
  %v3129 = vld [vmem:[%s4 + $0x10] sm:$0xff]
  %v3130 = vld [vmem:[%s4 + $0x18] sm:$0xff]
  %v3131 = vld [vmem:[%s4 + $0x20] sm:$0xff]
  %v3132 = vld [vmem:[%s4 + $0x28] sm:$0xff]
  %v3133 = vld [vmem:[%s4 + $0x30] sm:$0xff]
  %v3134 = vld [vmem:[%s4 + $0x38] sm:$0xff]
  %v3135 = vld [vmem:[%s4 + $0x40] sm:$0xff]
  %v3136 = vld [vmem:[%s4 + $0x48] sm:$0xff]
  %v3137 = vld [vmem:[%s4 + $0x50] sm:$0xff]
  %v3138 = vld [vmem:[%s4 + $0x58] sm:$0xff]
  %v3139 = vld [vmem:[%s4 + $0x60] sm:$0xff]
  %v3140 = vld [vmem:[%s4 + $0x68] sm:$0xff]
  %v3141 = vld [vmem:[%s4 + $0x70] sm:$0xff]
  %v3142 = vld [vmem:[%s4 + $0x78] sm:$0xff]
  %v3143 = vld [vmem:[%s4 + $0x80] sm:$0xff]
  %v3144 = vld [vmem:[%s4 + $0x88] sm:$0xff]
  %v3145 = vld [vmem:[%s4 + $0x90] sm:$0xff]
  %v3146 = vld [vmem:[%s4 + $0x98] sm:$0xff]
  %v3147 = vld [vmem:[%s4 + $0xa0] sm:$0xff]
  %v3148 = vld [vmem:[%s4 + $0xa8] sm:$0xff]
  %v3149 = vld [vmem:[%s4 + $0xb0] sm:$0xff]
  %v3150 = vld [vmem:[%s4 + $0xb8] sm:$0xff]
  %v3151 = vld [vmem:[%s4 + $0xc0] sm:$0xff]
  %v3152 = vld [vmem:[%s4 + $0xc8] sm:$0xff]
  %v3153 = vld [vmem:[%s4 + $0xd0] sm:$0xff]
  %v3154 = vld [vmem:[%s4 + $0xd8] sm:$0xff]
  %v3155 = vld [vmem:[%s4 + $0xe0] sm:$0xff]
  %v3156 = vld [vmem:[%s4 + $0xe8] sm:$0xff]
  %v3157 = vld [vmem:[%s4 + $0xf0] sm:$0xff]
  %v3158 = vld [vmem:[%s4 + $0xf8] sm:$0xff]
  %v3159 = vld [vmem:[%s4 + $0x100] sm:$0xff]
  %v3160 = vld [vmem:[%s4 + $0x108] sm:$0xff]
  %v3161 = vld [vmem:[%s4 + $0x110] sm:$0xff]
  %v3162 = vld [vmem:[%s4 + $0x118] sm:$0xff]
  %v3163 = vld [vmem:[%s4 + $0x120] sm:$0xff]
  %v3164 = vld [vmem:[%s4 + $0x128] sm:$0xff]
  %v3165 = vld [vmem:[%s4 + $0x130] sm:$0xff]
  %v3166 = vld [vmem:[%s4 + $0x138] sm:$0xff]
  %v3167 = vld [vmem:[%s4 + $0x140] sm:$0xff]
  %v3168 = vld [vmem:[%s4 + $0x148] sm:$0xff]
  %v3169 = vld [vmem:[%s4 + $0x150] sm:$0xff]
  %v3170 = vld [vmem:[%s4 + $0x158] sm:$0xff]
  %v3171 = vld [vmem:[%s4 + $0x160] sm:$0xff]
  %v3172 = vld [vmem:[%s4 + $0x168] sm:$0xff]
  %v3173 = vld [vmem:[%s4 + $0x170] sm:$0xff]
  %v3174 = vld [vmem:[%s4 + $0x178] sm:$0xff]
  %v3175 = vld [vmem:[%s4 + $0x180] sm:$0xff]
  %v3176 = vld [vmem:[%s4 + $0x188] sm:$0xff]
  %v3177 = vld [vmem:[%s4 + $0x190] sm:$0xff]
  %v3178 = vld [vmem:[%s4 + $0x198] sm:$0xff]
  %v3179 = vld [vmem:[%s4 + $0x1a0] sm:$0xff]
  %v3180 = vld [vmem:[%s4 + $0x1a8] sm:$0xff]
  %v3181 = vld [vmem:[%s4 + $0x1b0] sm:$0xff]
  %v3182 = vld [vmem:[%s4 + $0x1b8] sm:$0xff]
  %v3183 = vld [vmem:[%s4 + $0x1c0] sm:$0xff]
  %v3184 = vld [vmem:[%s4 + $0x1c8] sm:$0xff]
  %v3185 = vld [vmem:[%s4 + $0x1d0] sm:$0xff]
  %v3186 = vld [vmem:[%s4 + $0x1d8] sm:$0xff]
  %v3187 = vld [vmem:[%s4 + $0x1e0] sm:$0xff]
  %v3188 = vld [vmem:[%s4 + $0x1e8] sm:$0xff]
  %v3189 = vld [vmem:[%s4 + $0x1f0] sm:$0xff]
  %v3190 = vld [vmem:[%s4 + $0x1f8] sm:$0xff]
  %s3191 = smul.addr %s1908, 8
  %s3192 = scalar_lea.vmem [#allocation2], %s3191
  %v3193 = vld [vmem:[%s3192] sm:$0xff]
  %v3194 = vld [vmem:[%s3192 + $0x8] sm:$0xff]
  %v3195 = vld [vmem:[%s3192 + $0x10] sm:$0xff]
  %v3196 = vld [vmem:[%s3192 + $0x18] sm:$0xff]
  %3197 = vmatprep.subr.mxu0 %v3064
  %3198 = vmatpush1.msra.mxu0 %v3063
  %3199 = vmatprep.subr.mxu0 %v3068
  %3200 = vmatpush1.msra.mxu0 %v3067
  %3201 = vmatprep.subr.mxu0 %v3072
  %3202 = vmatpush1.msra.mxu0 %v3071
  %3203 = vmatprep.subr.mxu0 %v3076
  %3204 = vmatpush1.msra.mxu0 %v3075
  %3205 = vmatprep.subr.mxu0 %v3080
  %3206 = vmatpush1.msra.mxu0 %v3079
  %3207 = vmatprep.subr.mxu0 %v3084
  %3208 = vmatpush1.msra.mxu0 %v3083
  %3209 = vmatprep.subr.mxu0 %v3088
  %3210 = vmatpush1.msra.mxu0 %v3087
  %3211 = vmatprep.subr.mxu0 %v3092
  %3212 = vmatpush1.msra.mxu0 %v3091
  %3213 = vmatprep.subr.mxu0 %v3096
  %3214 = vmatpush1.msra.mxu0 %v3095
  %3215 = vmatprep.subr.mxu0 %v3100
  %3216 = vmatpush1.msra.mxu0 %v3099
  %3217 = vmatprep.subr.mxu0 %v3104
  %3218 = vmatpush1.msra.mxu0 %v3103
  %3219 = vmatprep.subr.mxu0 %v3108
  %3220 = vmatpush1.msra.mxu0 %v3107
  %3221 = vmatprep.subr.mxu0 %v3112
  %3222 = vmatpush1.msra.mxu0 %v3111
  %3223 = vmatprep.subr.mxu0 %v3116
  %3224 = vmatpush1.msra.mxu0 %v3115
  %3225 = vmatprep.subr.mxu0 %v3120
  %3226 = vmatpush1.msra.mxu0 %v3119
  %3227 = vmatprep.subr.mxu0 %v3124
  %3228 = vmatpush1.msra.mxu0 %v3123
  %3229 = vmatprep.subr.mxu0 0.0
  %3230 = vmatpush1.msra.mxu0 0.0
  %3231 = vmatprep.subr.mxu0 0.0
  %3232 = vmatpush1.msra.mxu0 0.0
  %3233 = vmatprep.subr.mxu0 0.0
  %3234 = vmatpush1.msra.mxu0 0.0
  %3235 = vmatprep.subr.mxu0 0.0
  %3236 = vmatpush1.msra.mxu0 0.0
  %3237 = vmatprep.subr.mxu0 0.0
  %3238 = vmatpush1.msra.mxu0 0.0
  %3239 = vmatprep.subr.mxu0 0.0
  %3240 = vmatpush1.msra.mxu0 0.0
  %3241 = vmatprep.subr.mxu0 0.0
  %3242 = vmatpush1.msra.mxu0 0.0
  %3243 = vmatprep.subr.mxu0 0.0
  %3244 = vmatpush1.msra.mxu0 0.0
  %3245 = vmatprep.subr.mxu0 0.0
  %3246 = vmatpush1.msra.mxu0 0.0
  %3247 = vmatprep.subr.mxu0 0.0
  %3248 = vmatpush1.msra.mxu0 0.0
  %3249 = vmatprep.subr.mxu0 0.0
  %3250 = vmatpush1.msra.mxu0 0.0
  %3251 = vmatprep.subr.mxu0 0.0
  %3252 = vmatpush1.msra.mxu0 0.0
  %3253 = vmatprep.subr.mxu0 0.0
  %3254 = vmatpush1.msra.mxu0 0.0
  %3255 = vmatprep.subr.mxu0 0.0
  %3256 = vmatpush1.msra.mxu0 0.0
  %3257 = vmatprep.subr.mxu0 0.0
  %3258 = vmatpush1.msra.mxu0 0.0
  %3259 = vmatprep.subr.mxu0 0.0
  %3260 = vmatpush1.msra.mxu0 0.0
  %3261 = vmatprep.mubr.f32.mxu0 0.0
  %3262 = vmatmul.mubr.f32.gmra.mrb[0].mxu0 %v3034
  %v3263 = vpop.f32.mrb[0].mxu0
  %v3264 = vadd.f32 %v3193, %v3263
  %v3265 = vpop.f32.mrb[0].mxu0
  %v3266 = vadd.f32 %v3194, %v3265
  %3267 = vdwg.mxu0
  %3268 = vmatprep.subr.mxu0 %v3066
  %3269 = vmatpush1.msra.mxu0 %v3065
  %3270 = vmatprep.subr.mxu0 %v3070
  %3271 = vmatpush1.msra.mxu0 %v3069
  %3272 = vmatprep.subr.mxu0 %v3074
  %3273 = vmatpush1.msra.mxu0 %v3073
  %3274 = vmatprep.subr.mxu0 %v3078
  %3275 = vmatpush1.msra.mxu0 %v3077
  %3276 = vmatprep.subr.mxu0 %v3082
  %3277 = vmatpush1.msra.mxu0 %v3081
  %3278 = vmatprep.subr.mxu0 %v3086
  %3279 = vmatpush1.msra.mxu0 %v3085
  %3280 = vmatprep.subr.mxu0 %v3090
  %3281 = vmatpush1.msra.mxu0 %v3089
  %3282 = vmatprep.subr.mxu0 %v3094
  %3283 = vmatpush1.msra.mxu0 %v3093
  %3284 = vmatprep.subr.mxu0 %v3098
  %3285 = vmatpush1.msra.mxu0 %v3097
  %3286 = vmatprep.subr.mxu0 %v3102
  %3287 = vmatpush1.msra.mxu0 %v3101
  %3288 = vmatprep.subr.mxu0 %v3106
  %3289 = vmatpush1.msra.mxu0 %v3105
  %3290 = vmatprep.subr.mxu0 %v3110
  %3291 = vmatpush1.msra.mxu0 %v3109
  %3292 = vmatprep.subr.mxu0 %v3114
  %3293 = vmatpush1.msra.mxu0 %v3113
  %3294 = vmatprep.subr.mxu0 %v3118
  %3295 = vmatpush1.msra.mxu0 %v3117
  %3296 = vmatprep.subr.mxu0 %v3122
  %3297 = vmatpush1.msra.mxu0 %v3121
  %3298 = vmatprep.subr.mxu0 %v3126
  %3299 = vmatpush1.msra.mxu0 %v3125
  %3300 = vmatprep.subr.mxu0 0.0
  %3301 = vmatpush1.msra.mxu0 0.0
  %3302 = vmatprep.subr.mxu0 0.0
  %3303 = vmatpush1.msra.mxu0 0.0
  %3304 = vmatprep.subr.mxu0 0.0
  %3305 = vmatpush1.msra.mxu0 0.0
  %3306 = vmatprep.subr.mxu0 0.0
  %3307 = vmatpush1.msra.mxu0 0.0
  %3308 = vmatprep.subr.mxu0 0.0
  %3309 = vmatpush1.msra.mxu0 0.0
  %3310 = vmatprep.subr.mxu0 0.0
  %3311 = vmatpush1.msra.mxu0 0.0
  %3312 = vmatprep.subr.mxu0 0.0
  %3313 = vmatpush1.msra.mxu0 0.0
  %3314 = vmatprep.subr.mxu0 0.0
  %3315 = vmatpush1.msra.mxu0 0.0
  %3316 = vmatprep.subr.mxu0 0.0
  %3317 = vmatpush1.msra.mxu0 0.0
  %3318 = vmatprep.subr.mxu0 0.0
  %3319 = vmatpush1.msra.mxu0 0.0
  %3320 = vmatprep.subr.mxu0 0.0
  %3321 = vmatpush1.msra.mxu0 0.0
  %3322 = vmatprep.subr.mxu0 0.0
  %3323 = vmatpush1.msra.mxu0 0.0
  %3324 = vmatprep.subr.mxu0 0.0
  %3325 = vmatpush1.msra.mxu0 0.0
  %3326 = vmatprep.subr.mxu0 0.0
  %3327 = vmatpush1.msra.mxu0 0.0
  %3328 = vmatprep.subr.mxu0 0.0
  %3329 = vmatpush1.msra.mxu0 0.0
  %3330 = vmatprep.subr.mxu0 0.0
  %3331 = vmatpush1.msra.mxu0 0.0
  %3332 = vmatprep.mubr.f32.mxu0 0.0
  %3333 = vmatmul.mubr.f32.gmra.mrb[0].mxu0 %v3034
  %v3334 = vpop.f32.mrb[0].mxu0
  %v3335 = vadd.f32 %v3195, %v3334
  %v3336 = vpop.f32.mrb[0].mxu0
  %v3337 = vadd.f32 %v3196, %v3336
  %3338 = vdwg.mxu0
  %s3339 = smul.addr %s1759, 8
  %s3340 = scalar_lea.vmem [#allocation3], %s3339
  %v3341 = vld [vmem:[%s3340] sm:$0xff]
  %v3342 = vld [vmem:[%s3340 + $0x8] sm:$0xff]
  %v3343 = vld [vmem:[%s3340 + $0x10] sm:$0xff]
  %v3344 = vld [vmem:[%s3340 + $0x18] sm:$0xff]
  %3345 = vmatprep.subr.mxu0 %v3128
  %3346 = vmatpush1.msra.mxu0 %v3127
  %3347 = vmatprep.subr.mxu0 %v3132
  %3348 = vmatpush1.msra.mxu0 %v3131
  %3349 = vmatprep.subr.mxu0 %v3136
  %3350 = vmatpush1.msra.mxu0 %v3135
  %3351 = vmatprep.subr.mxu0 %v3140
  %3352 = vmatpush1.msra.mxu0 %v3139
  %3353 = vmatprep.subr.mxu0 %v3144
  %3354 = vmatpush1.msra.mxu0 %v3143
  %3355 = vmatprep.subr.mxu0 %v3148
  %3356 = vmatpush1.msra.mxu0 %v3147
  %3357 = vmatprep.subr.mxu0 %v3152
  %3358 = vmatpush1.msra.mxu0 %v3151
  %3359 = vmatprep.subr.mxu0 %v3156
  %3360 = vmatpush1.msra.mxu0 %v3155
  %3361 = vmatprep.subr.mxu0 %v3160
  %3362 = vmatpush1.msra.mxu0 %v3159
  %3363 = vmatprep.subr.mxu0 %v3164
  %3364 = vmatpush1.msra.mxu0 %v3163
  %3365 = vmatprep.subr.mxu0 %v3168
  %3366 = vmatpush1.msra.mxu0 %v3167
  %3367 = vmatprep.subr.mxu0 %v3172
  %3368 = vmatpush1.msra.mxu0 %v3171
  %3369 = vmatprep.subr.mxu0 %v3176
  %3370 = vmatpush1.msra.mxu0 %v3175
  %3371 = vmatprep.subr.mxu0 %v3180
  %3372 = vmatpush1.msra.mxu0 %v3179
  %3373 = vmatprep.subr.mxu0 %v3184
  %3374 = vmatpush1.msra.mxu0 %v3183
  %3375 = vmatprep.subr.mxu0 %v3188
  %3376 = vmatpush1.msra.mxu0 %v3187
  %3377 = vmatprep.subr.mxu0 0.0
  %3378 = vmatpush1.msra.mxu0 0.0
  %3379 = vmatprep.subr.mxu0 0.0
  %3380 = vmatpush1.msra.mxu0 0.0
  %3381 = vmatprep.subr.mxu0 0.0
  %3382 = vmatpush1.msra.mxu0 0.0
  %3383 = vmatprep.subr.mxu0 0.0
  %3384 = vmatpush1.msra.mxu0 0.0
  %3385 = vmatprep.subr.mxu0 0.0
  %3386 = vmatpush1.msra.mxu0 0.0
  %3387 = vmatprep.subr.mxu0 0.0
  %3388 = vmatpush1.msra.mxu0 0.0
  %3389 = vmatprep.subr.mxu0 0.0
  %3390 = vmatpush1.msra.mxu0 0.0
  %3391 = vmatprep.subr.mxu0 0.0
  %3392 = vmatpush1.msra.mxu0 0.0
  %3393 = vmatprep.subr.mxu0 0.0
  %3394 = vmatpush1.msra.mxu0 0.0
  %3395 = vmatprep.subr.mxu0 0.0
  %3396 = vmatpush1.msra.mxu0 0.0
  %3397 = vmatprep.subr.mxu0 0.0
  %3398 = vmatpush1.msra.mxu0 0.0
  %3399 = vmatprep.subr.mxu0 0.0
  %3400 = vmatpush1.msra.mxu0 0.0
  %3401 = vmatprep.subr.mxu0 0.0
  %3402 = vmatpush1.msra.mxu0 0.0
  %3403 = vmatprep.subr.mxu0 0.0
  %3404 = vmatpush1.msra.mxu0 0.0
  %3405 = vmatprep.subr.mxu0 0.0
  %3406 = vmatpush1.msra.mxu0 0.0
  %3407 = vmatprep.subr.mxu0 0.0
  %3408 = vmatpush1.msra.mxu0 0.0
  %3409 = vmatprep.mubr.f32.mxu0 0.0
  %3410 = vmatmul.mubr.f32.gmra.mrb[0].mxu0 %v3058
  %v3411 = vpop.f32.mrb[0].mxu0
  %v3412 = vadd.f32 %v3341, %v3411
  %v3413 = vpop.f32.mrb[0].mxu0
  %v3414 = vadd.f32 %v3342, %v3413
  %3415 = vdwg.mxu0
  %3416 = vmatprep.subr.mxu0 %v3130
  %3417 = vmatpush1.msra.mxu0 %v3129
  %3418 = vmatprep.subr.mxu0 %v3134
  %3419 = vmatpush1.msra.mxu0 %v3133
  %3420 = vmatprep.subr.mxu0 %v3138
  %3421 = vmatpush1.msra.mxu0 %v3137
  %3422 = vmatprep.subr.mxu0 %v3142
  %3423 = vmatpush1.msra.mxu0 %v3141
  %3424 = vmatprep.subr.mxu0 %v3146
  %3425 = vmatpush1.msra.mxu0 %v3145
  %3426 = vmatprep.subr.mxu0 %v3150
  %3427 = vmatpush1.msra.mxu0 %v3149
  %3428 = vmatprep.subr.mxu0 %v3154
  %3429 = vmatpush1.msra.mxu0 %v3153
  %3430 = vmatprep.subr.mxu0 %v3158
  %3431 = vmatpush1.msra.mxu0 %v3157
  %3432 = vmatprep.subr.mxu0 %v3162
  %3433 = vmatpush1.msra.mxu0 %v3161
  %3434 = vmatprep.subr.mxu0 %v3166
  %3435 = vmatpush1.msra.mxu0 %v3165
  %3436 = vmatprep.subr.mxu0 %v3170
  %3437 = vmatpush1.msra.mxu0 %v3169
  %3438 = vmatprep.subr.mxu0 %v3174
  %3439 = vmatpush1.msra.mxu0 %v3173
  %3440 = vmatprep.subr.mxu0 %v3178
  %3441 = vmatpush1.msra.mxu0 %v3177
  %3442 = vmatprep.subr.mxu0 %v3182
  %3443 = vmatpush1.msra.mxu0 %v3181
  %3444 = vmatprep.subr.mxu0 %v3186
  %3445 = vmatpush1.msra.mxu0 %v3185
  %3446 = vmatprep.subr.mxu0 %v3190
  %3447 = vmatpush1.msra.mxu0 %v3189
  %3448 = vmatprep.subr.mxu0 0.0
  %3449 = vmatpush1.msra.mxu0 0.0
  %3450 = vmatprep.subr.mxu0 0.0
  %3451 = vmatpush1.msra.mxu0 0.0
  %3452 = vmatprep.subr.mxu0 0.0
  %3453 = vmatpush1.msra.mxu0 0.0
  %3454 = vmatprep.subr.mxu0 0.0
  %3455 = vmatpush1.msra.mxu0 0.0
  %3456 = vmatprep.subr.mxu0 0.0
  %3457 = vmatpush1.msra.mxu0 0.0
  %3458 = vmatprep.subr.mxu0 0.0
  %3459 = vmatpush1.msra.mxu0 0.0
  %3460 = vmatprep.subr.mxu0 0.0
  %3461 = vmatpush1.msra.mxu0 0.0
  %3462 = vmatprep.subr.mxu0 0.0
  %3463 = vmatpush1.msra.mxu0 0.0
  %3464 = vmatprep.subr.mxu0 0.0
  %3465 = vmatpush1.msra.mxu0 0.0
  %3466 = vmatprep.subr.mxu0 0.0
  %3467 = vmatpush1.msra.mxu0 0.0
  %3468 = vmatprep.subr.mxu0 0.0
  %3469 = vmatpush1.msra.mxu0 0.0
  %3470 = vmatprep.subr.mxu0 0.0
  %3471 = vmatpush1.msra.mxu0 0.0
  %3472 = vmatprep.subr.mxu0 0.0
  %3473 = vmatpush1.msra.mxu0 0.0
  %3474 = vmatprep.subr.mxu0 0.0
  %3475 = vmatpush1.msra.mxu0 0.0
  %3476 = vmatprep.subr.mxu0 0.0
  %3477 = vmatpush1.msra.mxu0 0.0
  %3478 = vmatprep.subr.mxu0 0.0
  %3479 = vmatpush1.msra.mxu0 0.0
  %3480 = vmatprep.mubr.f32.mxu0 0.0
  %3481 = vmatmul.mubr.f32.gmra.mrb[0].mxu0 %v3058
  %v3482 = vpop.f32.mrb[0].mxu0
  %v3483 = vadd.f32 %v3343, %v3482
  %v3484 = vpop.f32.mrb[0].mxu0
  %v3485 = vadd.f32 %v3344, %v3484
  %3486 = vdwg.mxu0
  %v3487 = vxor.u32 %v3264, 2147483648
  %v3488 = vmul.f32 %v3487, 1.442695
  %v3489 = vpow.pop %v3488
  %v3490 = vadd.f32 %v3489, 1.0
  %v3491 = vrcp.pop %v3490
  %v3492 = vmul.f32 1.0, %v3491
  %v3493 = vxor.u32 %v3266, 2147483648
  %v3494 = vmul.f32 %v3493, 1.442695
  %v3495 = vpow.pop %v3494
  %v3496 = vadd.f32 %v3495, 1.0
  %v3497 = vrcp.pop %v3496
  %v3498 = vmul.f32 1.0, %v3497
  %v3499 = vtanh.pop %v3335
  %v3500 = vxor.u32 %v3337, 2147483648
  %v3501 = vmul.f32 %v3500, 1.442695
  %v3502 = vpow.pop %v3501
  %v3503 = vadd.f32 %v3502, 1.0
  %v3504 = vrcp.pop %v3503
  %v3505 = vmul.f32 1.0, %v3504
  %v3506 = vmul.f32 %v3498, %v3032
  %v3507 = vmul.f32 %v3492, %v3499
  %v3508 = vadd.f32 %v3506, %v3507
  %v3509 = vtanh.pop %v3508
  %v3510 = vmul.f32 %v3505, %v3509
  %v3511 = vxor.u32 %v3412, 2147483648
  %v3512 = vmul.f32 %v3511, 1.442695
  %v3513 = vpow.pop %v3512
  %v3514 = vadd.f32 %v3513, 1.0
  %v3515 = vrcp.pop %v3514
  %v3516 = vmul.f32 1.0, %v3515
  %v3517 = vxor.u32 %v3414, 2147483648
  %v3518 = vmul.f32 %v3517, 1.442695
  %v3519 = vpow.pop %v3518
  %v3520 = vadd.f32 %v3519, 1.0
  %v3521 = vrcp.pop %v3520
  %v3522 = vmul.f32 1.0, %v3521
  %v3523 = vtanh.pop %v3483
  %v3524 = vxor.u32 %v3485, 2147483648
  %v3525 = vmul.f32 %v3524, 1.442695
  %v3526 = vpow.pop %v3525
  %v3527 = vadd.f32 %v3526, 1.0
  %v3528 = vrcp.pop %v3527
  %v3529 = vmul.f32 1.0, %v3528
  %v3530 = vmul.f32 %v3522, %v3056
  %v3531 = vmul.f32 %v3516, %v3523
  %v3532 = vadd.f32 %v3530, %v3531
  %v3533 = vtanh.pop %v3532
  %v3534 = vmul.f32 %v3529, %v3533
  %s3535 = scalar_lea.vmem [#allocation4], 40
  %3536 = vst [vmem:[%s3535] sm:$0xff] %v3510
  %s3537 = scalar_lea.vmem [#allocation5], 16
  %3538 = vst [vmem:[%s3537] sm:$0xff] %v3534
  %v3539 = vld [vmem:[%s3] sm:$0xff]
  %v3540 = vld [vmem:[%s3 + $0x8] sm:$0xff]
  %v3541 = vld [vmem:[%s3 + $0x10] sm:$0xff]
  %v3542 = vld [vmem:[%s3 + $0x18] sm:$0xff]
  %v3543 = vld [vmem:[%s3 + $0x20] sm:$0xff]
  %v3544 = vld [vmem:[%s3 + $0x28] sm:$0xff]
  %v3545 = vld [vmem:[%s3 + $0x30] sm:$0xff]
  %v3546 = vld [vmem:[%s3 + $0x38] sm:$0xff]
  %v3547 = vld [vmem:[%s3 + $0x40] sm:$0xff]
  %v3548 = vld [vmem:[%s3 + $0x48] sm:$0xff]
  %v3549 = vld [vmem:[%s3 + $0x50] sm:$0xff]
  %v3550 = vld [vmem:[%s3 + $0x58] sm:$0xff]
  %v3551 = vld [vmem:[%s3 + $0x60] sm:$0xff]
  %v3552 = vld [vmem:[%s3 + $0x68] sm:$0xff]
  %v3553 = vld [vmem:[%s3 + $0x70] sm:$0xff]
  %v3554 = vld [vmem:[%s3 + $0x78] sm:$0xff]
  %v3555 = vld [vmem:[%s3 + $0x80] sm:$0xff]
  %v3556 = vld [vmem:[%s3 + $0x88] sm:$0xff]
  %v3557 = vld [vmem:[%s3 + $0x90] sm:$0xff]
  %v3558 = vld [vmem:[%s3 + $0x98] sm:$0xff]
  %v3559 = vld [vmem:[%s3 + $0xa0] sm:$0xff]
  %v3560 = vld [vmem:[%s3 + $0xa8] sm:$0xff]
  %v3561 = vld [vmem:[%s3 + $0xb0] sm:$0xff]
  %v3562 = vld [vmem:[%s3 + $0xb8] sm:$0xff]
  %v3563 = vld [vmem:[%s3 + $0xc0] sm:$0xff]
  %v3564 = vld [vmem:[%s3 + $0xc8] sm:$0xff]
  %v3565 = vld [vmem:[%s3 + $0xd0] sm:$0xff]
  %v3566 = vld [vmem:[%s3 + $0xd8] sm:$0xff]
  %v3567 = vld [vmem:[%s3 + $0xe0] sm:$0xff]
  %v3568 = vld [vmem:[%s3 + $0xe8] sm:$0xff]
  %v3569 = vld [vmem:[%s3 + $0xf0] sm:$0xff]
  %v3570 = vld [vmem:[%s3 + $0xf8] sm:$0xff]
  %v3571 = vld [vmem:[%s3 + $0x100] sm:$0xff]
  %v3572 = vld [vmem:[%s3 + $0x108] sm:$0xff]
  %v3573 = vld [vmem:[%s3 + $0x110] sm:$0xff]
  %v3574 = vld [vmem:[%s3 + $0x118] sm:$0xff]
  %v3575 = vld [vmem:[%s3 + $0x120] sm:$0xff]
  %v3576 = vld [vmem:[%s3 + $0x128] sm:$0xff]
  %v3577 = vld [vmem:[%s3 + $0x130] sm:$0xff]
  %v3578 = vld [vmem:[%s3 + $0x138] sm:$0xff]
  %v3579 = vld [vmem:[%s3 + $0x140] sm:$0xff]
  %v3580 = vld [vmem:[%s3 + $0x148] sm:$0xff]
  %v3581 = vld [vmem:[%s3 + $0x150] sm:$0xff]
  %v3582 = vld [vmem:[%s3 + $0x158] sm:$0xff]
  %v3583 = vld [vmem:[%s3 + $0x160] sm:$0xff]
  %v3584 = vld [vmem:[%s3 + $0x168] sm:$0xff]
  %v3585 = vld [vmem:[%s3 + $0x170] sm:$0xff]
  %v3586 = vld [vmem:[%s3 + $0x178] sm:$0xff]
  %v3587 = vld [vmem:[%s3 + $0x180] sm:$0xff]
  %v3588 = vld [vmem:[%s3 + $0x188] sm:$0xff]
  %v3589 = vld [vmem:[%s3 + $0x190] sm:$0xff]
  %v3590 = vld [vmem:[%s3 + $0x198] sm:$0xff]
  %v3591 = vld [vmem:[%s3 + $0x1a0] sm:$0xff]
  %v3592 = vld [vmem:[%s3 + $0x1a8] sm:$0xff]
  %v3593 = vld [vmem:[%s3 + $0x1b0] sm:$0xff]
  %v3594 = vld [vmem:[%s3 + $0x1b8] sm:$0xff]
  %v3595 = vld [vmem:[%s3 + $0x1c0] sm:$0xff]
  %v3596 = vld [vmem:[%s3 + $0x1c8] sm:$0xff]
  %v3597 = vld [vmem:[%s3 + $0x1d0] sm:$0xff]
  %v3598 = vld [vmem:[%s3 + $0x1d8] sm:$0xff]
  %v3599 = vld [vmem:[%s3 + $0x1e0] sm:$0xff]
  %v3600 = vld [vmem:[%s3 + $0x1e8] sm:$0xff]
  %v3601 = vld [vmem:[%s3 + $0x1f0] sm:$0xff]
  %v3602 = vld [vmem:[%s3 + $0x1f8] sm:$0xff]
  %v3603 = vld [vmem:[%s4] sm:$0xff]
  %v3604 = vld [vmem:[%s4 + $0x8] sm:$0xff]
  %v3605 = vld [vmem:[%s4 + $0x10] sm:$0xff]
  %v3606 = vld [vmem:[%s4 + $0x18] sm:$0xff]
  %v3607 = vld [vmem:[%s4 + $0x20] sm:$0xff]
  %v3608 = vld [vmem:[%s4 + $0x28] sm:$0xff]
  %v3609 = vld [vmem:[%s4 + $0x30] sm:$0xff]
  %v3610 = vld [vmem:[%s4 + $0x38] sm:$0xff]
  %v3611 = vld [vmem:[%s4 + $0x40] sm:$0xff]
  %v3612 = vld [vmem:[%s4 + $0x48] sm:$0xff]
  %v3613 = vld [vmem:[%s4 + $0x50] sm:$0xff]
  %v3614 = vld [vmem:[%s4 + $0x58] sm:$0xff]
  %v3615 = vld [vmem:[%s4 + $0x60] sm:$0xff]
  %v3616 = vld [vmem:[%s4 + $0x68] sm:$0xff]
  %v3617 = vld [vmem:[%s4 + $0x70] sm:$0xff]
  %v3618 = vld [vmem:[%s4 + $0x78] sm:$0xff]
  %v3619 = vld [vmem:[%s4 + $0x80] sm:$0xff]
  %v3620 = vld [vmem:[%s4 + $0x88] sm:$0xff]
  %v3621 = vld [vmem:[%s4 + $0x90] sm:$0xff]
  %v3622 = vld [vmem:[%s4 + $0x98] sm:$0xff]
  %v3623 = vld [vmem:[%s4 + $0xa0] sm:$0xff]
  %v3624 = vld [vmem:[%s4 + $0xa8] sm:$0xff]
  %v3625 = vld [vmem:[%s4 + $0xb0] sm:$0xff]
  %v3626 = vld [vmem:[%s4 + $0xb8] sm:$0xff]
  %v3627 = vld [vmem:[%s4 + $0xc0] sm:$0xff]
  %v3628 = vld [vmem:[%s4 + $0xc8] sm:$0xff]
  %v3629 = vld [vmem:[%s4 + $0xd0] sm:$0xff]
  %v3630 = vld [vmem:[%s4 + $0xd8] sm:$0xff]
  %v3631 = vld [vmem:[%s4 + $0xe0] sm:$0xff]
  %v3632 = vld [vmem:[%s4 + $0xe8] sm:$0xff]
  %v3633 = vld [vmem:[%s4 + $0xf0] sm:$0xff]
  %v3634 = vld [vmem:[%s4 + $0xf8] sm:$0xff]
  %v3635 = vld [vmem:[%s4 + $0x100] sm:$0xff]
  %v3636 = vld [vmem:[%s4 + $0x108] sm:$0xff]
  %v3637 = vld [vmem:[%s4 + $0x110] sm:$0xff]
  %v3638 = vld [vmem:[%s4 + $0x118] sm:$0xff]
  %v3639 = vld [vmem:[%s4 + $0x120] sm:$0xff]
  %v3640 = vld [vmem:[%s4 + $0x128] sm:$0xff]
  %v3641 = vld [vmem:[%s4 + $0x130] sm:$0xff]
  %v3642 = vld [vmem:[%s4 + $0x138] sm:$0xff]
  %v3643 = vld [vmem:[%s4 + $0x140] sm:$0xff]
  %v3644 = vld [vmem:[%s4 + $0x148] sm:$0xff]
  %v3645 = vld [vmem:[%s4 + $0x150] sm:$0xff]
  %v3646 = vld [vmem:[%s4 + $0x158] sm:$0xff]
  %v3647 = vld [vmem:[%s4 + $0x160] sm:$0xff]
  %v3648 = vld [vmem:[%s4 + $0x168] sm:$0xff]
  %v3649 = vld [vmem:[%s4 + $0x170] sm:$0xff]
  %v3650 = vld [vmem:[%s4 + $0x178] sm:$0xff]
  %v3651 = vld [vmem:[%s4 + $0x180] sm:$0xff]
  %v3652 = vld [vmem:[%s4 + $0x188] sm:$0xff]
  %v3653 = vld [vmem:[%s4 + $0x190] sm:$0xff]
  %v3654 = vld [vmem:[%s4 + $0x198] sm:$0xff]
  %v3655 = vld [vmem:[%s4 + $0x1a0] sm:$0xff]
  %v3656 = vld [vmem:[%s4 + $0x1a8] sm:$0xff]
  %v3657 = vld [vmem:[%s4 + $0x1b0] sm:$0xff]
  %v3658 = vld [vmem:[%s4 + $0x1b8] sm:$0xff]
  %v3659 = vld [vmem:[%s4 + $0x1c0] sm:$0xff]
  %v3660 = vld [vmem:[%s4 + $0x1c8] sm:$0xff]
  %v3661 = vld [vmem:[%s4 + $0x1d0] sm:$0xff]
  %v3662 = vld [vmem:[%s4 + $0x1d8] sm:$0xff]
  %v3663 = vld [vmem:[%s4 + $0x1e0] sm:$0xff]
  %v3664 = vld [vmem:[%s4 + $0x1e8] sm:$0xff]
  %v3665 = vld [vmem:[%s4 + $0x1f0] sm:$0xff]
  %v3666 = vld [vmem:[%s4 + $0x1f8] sm:$0xff]
  %s3667 = smul.addr %s1430, 8
  %s3668 = scalar_lea.vmem [#allocation2], %s3667
  %v3669 = vld [vmem:[%s3668] sm:$0xff]
  %v3670 = vld [vmem:[%s3668 + $0x8] sm:$0xff]
  %v3671 = vld [vmem:[%s3668 + $0x10] sm:$0xff]
  %v3672 = vld [vmem:[%s3668 + $0x18] sm:$0xff]
  %3673 = vmatprep.subr.mxu0 %v3540
  %3674 = vmatpush1.msra.mxu0 %v3539
  %3675 = vmatprep.subr.mxu0 %v3544
  %3676 = vmatpush1.msra.mxu0 %v3543
  %3677 = vmatprep.subr.mxu0 %v3548
  %3678 = vmatpush1.msra.mxu0 %v3547
  %3679 = vmatprep.subr.mxu0 %v3552
  %3680 = vmatpush1.msra.mxu0 %v3551
  %3681 = vmatprep.subr.mxu0 %v3556
  %3682 = vmatpush1.msra.mxu0 %v3555
  %3683 = vmatprep.subr.mxu0 %v3560
  %3684 = vmatpush1.msra.mxu0 %v3559
  %3685 = vmatprep.subr.mxu0 %v3564
  %3686 = vmatpush1.msra.mxu0 %v3563
  %3687 = vmatprep.subr.mxu0 %v3568
  %3688 = vmatpush1.msra.mxu0 %v3567
  %3689 = vmatprep.subr.mxu0 %v3572
  %3690 = vmatpush1.msra.mxu0 %v3571
  %3691 = vmatprep.subr.mxu0 %v3576
  %3692 = vmatpush1.msra.mxu0 %v3575
  %3693 = vmatprep.subr.mxu0 %v3580
  %3694 = vmatpush1.msra.mxu0 %v3579
  %3695 = vmatprep.subr.mxu0 %v3584
  %3696 = vmatpush1.msra.mxu0 %v3583
  %3697 = vmatprep.subr.mxu0 %v3588
  %3698 = vmatpush1.msra.mxu0 %v3587
  %3699 = vmatprep.subr.mxu0 %v3592
  %3700 = vmatpush1.msra.mxu0 %v3591
  %3701 = vmatprep.subr.mxu0 %v3596
  %3702 = vmatpush1.msra.mxu0 %v3595
  %3703 = vmatprep.subr.mxu0 %v3600
  %3704 = vmatpush1.msra.mxu0 %v3599
  %3705 = vmatprep.subr.mxu0 0.0
  %3706 = vmatpush1.msra.mxu0 0.0
  %3707 = vmatprep.subr.mxu0 0.0
  %3708 = vmatpush1.msra.mxu0 0.0
  %3709 = vmatprep.subr.mxu0 0.0
  %3710 = vmatpush1.msra.mxu0 0.0
  %3711 = vmatprep.subr.mxu0 0.0
  %3712 = vmatpush1.msra.mxu0 0.0
  %3713 = vmatprep.subr.mxu0 0.0
  %3714 = vmatpush1.msra.mxu0 0.0
  %3715 = vmatprep.subr.mxu0 0.0
  %3716 = vmatpush1.msra.mxu0 0.0
  %3717 = vmatprep.subr.mxu0 0.0
  %3718 = vmatpush1.msra.mxu0 0.0
  %3719 = vmatprep.subr.mxu0 0.0
  %3720 = vmatpush1.msra.mxu0 0.0
  %3721 = vmatprep.subr.mxu0 0.0
  %3722 = vmatpush1.msra.mxu0 0.0
  %3723 = vmatprep.subr.mxu0 0.0
  %3724 = vmatpush1.msra.mxu0 0.0
  %3725 = vmatprep.subr.mxu0 0.0
  %3726 = vmatpush1.msra.mxu0 0.0
  %3727 = vmatprep.subr.mxu0 0.0
  %3728 = vmatpush1.msra.mxu0 0.0
  %3729 = vmatprep.subr.mxu0 0.0
  %3730 = vmatpush1.msra.mxu0 0.0
  %3731 = vmatprep.subr.mxu0 0.0
  %3732 = vmatpush1.msra.mxu0 0.0
  %3733 = vmatprep.subr.mxu0 0.0
  %3734 = vmatpush1.msra.mxu0 0.0
  %3735 = vmatprep.subr.mxu0 0.0
  %3736 = vmatpush1.msra.mxu0 0.0
  %3737 = vmatprep.mubr.f32.mxu0 0.0
  %3738 = vmatmul.mubr.f32.gmra.mrb[0].mxu0 %v3510
  %v3739 = vpop.f32.mrb[0].mxu0
  %v3740 = vadd.f32 %v3669, %v3739
  %v3741 = vpop.f32.mrb[0].mxu0
  %v3742 = vadd.f32 %v3670, %v3741
  %3743 = vdwg.mxu0
  %3744 = vmatprep.subr.mxu0 %v3542
  %3745 = vmatpush1.msra.mxu0 %v3541
  %3746 = vmatprep.subr.mxu0 %v3546
  %3747 = vmatpush1.msra.mxu0 %v3545
  %3748 = vmatprep.subr.mxu0 %v3550
  %3749 = vmatpush1.msra.mxu0 %v3549
  %3750 = vmatprep.subr.mxu0 %v3554
  %3751 = vmatpush1.msra.mxu0 %v3553
  %3752 = vmatprep.subr.mxu0 %v3558
  %3753 = vmatpush1.msra.mxu0 %v3557
  %3754 = vmatprep.subr.mxu0 %v3562
  %3755 = vmatpush1.msra.mxu0 %v3561
  %3756 = vmatprep.subr.mxu0 %v3566
  %3757 = vmatpush1.msra.mxu0 %v3565
  %3758 = vmatprep.subr.mxu0 %v3570
  %3759 = vmatpush1.msra.mxu0 %v3569
  %3760 = vmatprep.subr.mxu0 %v3574
  %3761 = vmatpush1.msra.mxu0 %v3573
  %3762 = vmatprep.subr.mxu0 %v3578
  %3763 = vmatpush1.msra.mxu0 %v3577
  %3764 = vmatprep.subr.mxu0 %v3582
  %3765 = vmatpush1.msra.mxu0 %v3581
  %3766 = vmatprep.subr.mxu0 %v3586
  %3767 = vmatpush1.msra.mxu0 %v3585
  %3768 = vmatprep.subr.mxu0 %v3590
  %3769 = vmatpush1.msra.mxu0 %v3589
  %3770 = vmatprep.subr.mxu0 %v3594
  %3771 = vmatpush1.msra.mxu0 %v3593
  %3772 = vmatprep.subr.mxu0 %v3598
  %3773 = vmatpush1.msra.mxu0 %v3597
  %3774 = vmatprep.subr.mxu0 %v3602
  %3775 = vmatpush1.msra.mxu0 %v3601
  %3776 = vmatprep.subr.mxu0 0.0
  %3777 = vmatpush1.msra.mxu0 0.0
  %3778 = vmatprep.subr.mxu0 0.0
  %3779 = vmatpush1.msra.mxu0 0.0
  %3780 = vmatprep.subr.mxu0 0.0
  %3781 = vmatpush1.msra.mxu0 0.0
  %3782 = vmatprep.subr.mxu0 0.0
  %3783 = vmatpush1.msra.mxu0 0.0
  %3784 = vmatprep.subr.mxu0 0.0
  %3785 = vmatpush1.msra.mxu0 0.0
  %3786 = vmatprep.subr.mxu0 0.0
  %3787 = vmatpush1.msra.mxu0 0.0
  %3788 = vmatprep.subr.mxu0 0.0
  %3789 = vmatpush1.msra.mxu0 0.0
  %3790 = vmatprep.subr.mxu0 0.0
  %3791 = vmatpush1.msra.mxu0 0.0
  %3792 = vmatprep.subr.mxu0 0.0
  %3793 = vmatpush1.msra.mxu0 0.0
  %3794 = vmatprep.subr.mxu0 0.0
  %3795 = vmatpush1.msra.mxu0 0.0
  %3796 = vmatprep.subr.mxu0 0.0
  %3797 = vmatpush1.msra.mxu0 0.0
  %3798 = vmatprep.subr.mxu0 0.0
  %3799 = vmatpush1.msra.mxu0 0.0
  %3800 = vmatprep.subr.mxu0 0.0
  %3801 = vmatpush1.msra.mxu0 0.0
  %3802 = vmatprep.subr.mxu0 0.0
  %3803 = vmatpush1.msra.mxu0 0.0
  %3804 = vmatprep.subr.mxu0 0.0
  %3805 = vmatpush1.msra.mxu0 0.0
  %3806 = vmatprep.subr.mxu0 0.0
  %3807 = vmatpush1.msra.mxu0 0.0
  %3808 = vmatprep.mubr.f32.mxu0 0.0
  %3809 = vmatmul.mubr.f32.gmra.mrb[0].mxu0 %v3510
  %v3810 = vpop.f32.mrb[0].mxu0
  %v3811 = vadd.f32 %v3671, %v3810
  %v3812 = vpop.f32.mrb[0].mxu0
  %v3813 = vadd.f32 %v3672, %v3812
  %3814 = vdwg.mxu0
  %s3815 = smul.addr %s1281, 8
  %s3816 = scalar_lea.vmem [#allocation3], %s3815
  %v3817 = vld [vmem:[%s3816] sm:$0xff]
  %v3818 = vld [vmem:[%s3816 + $0x8] sm:$0xff]
  %v3819 = vld [vmem:[%s3816 + $0x10] sm:$0xff]
  %v3820 = vld [vmem:[%s3816 + $0x18] sm:$0xff]
  %3821 = vmatprep.subr.mxu0 %v3604
  %3822 = vmatpush1.msra.mxu0 %v3603
  %3823 = vmatprep.subr.mxu0 %v3608
  %3824 = vmatpush1.msra.mxu0 %v3607
  %3825 = vmatprep.subr.mxu0 %v3612
  %3826 = vmatpush1.msra.mxu0 %v3611
  %3827 = vmatprep.subr.mxu0 %v3616
  %3828 = vmatpush1.msra.mxu0 %v3615
  %3829 = vmatprep.subr.mxu0 %v3620
  %3830 = vmatpush1.msra.mxu0 %v3619
  %3831 = vmatprep.subr.mxu0 %v3624
  %3832 = vmatpush1.msra.mxu0 %v3623
  %3833 = vmatprep.subr.mxu0 %v3628
  %3834 = vmatpush1.msra.mxu0 %v3627
  %3835 = vmatprep.subr.mxu0 %v3632
  %3836 = vmatpush1.msra.mxu0 %v3631
  %3837 = vmatprep.subr.mxu0 %v3636
  %3838 = vmatpush1.msra.mxu0 %v3635
  %3839 = vmatprep.subr.mxu0 %v3640
  %3840 = vmatpush1.msra.mxu0 %v3639
  %3841 = vmatprep.subr.mxu0 %v3644
  %3842 = vmatpush1.msra.mxu0 %v3643
  %3843 = vmatprep.subr.mxu0 %v3648
  %3844 = vmatpush1.msra.mxu0 %v3647
  %3845 = vmatprep.subr.mxu0 %v3652
  %3846 = vmatpush1.msra.mxu0 %v3651
  %3847 = vmatprep.subr.mxu0 %v3656
  %3848 = vmatpush1.msra.mxu0 %v3655
  %3849 = vmatprep.subr.mxu0 %v3660
  %3850 = vmatpush1.msra.mxu0 %v3659
  %3851 = vmatprep.subr.mxu0 %v3664
  %3852 = vmatpush1.msra.mxu0 %v3663
  %3853 = vmatprep.subr.mxu0 0.0
  %3854 = vmatpush1.msra.mxu0 0.0
  %3855 = vmatprep.subr.mxu0 0.0
  %3856 = vmatpush1.msra.mxu0 0.0
  %3857 = vmatprep.subr.mxu0 0.0
  %3858 = vmatpush1.msra.mxu0 0.0
  %3859 = vmatprep.subr.mxu0 0.0
  %3860 = vmatpush1.msra.mxu0 0.0
  %3861 = vmatprep.subr.mxu0 0.0
  %3862 = vmatpush1.msra.mxu0 0.0
  %3863 = vmatprep.subr.mxu0 0.0
  %3864 = vmatpush1.msra.mxu0 0.0
  %3865 = vmatprep.subr.mxu0 0.0
  %3866 = vmatpush1.msra.mxu0 0.0
  %3867 = vmatprep.subr.mxu0 0.0
  %3868 = vmatpush1.msra.mxu0 0.0
  %3869 = vmatprep.subr.mxu0 0.0
  %3870 = vmatpush1.msra.mxu0 0.0
  %3871 = vmatprep.subr.mxu0 0.0
  %3872 = vmatpush1.msra.mxu0 0.0
  %3873 = vmatprep.subr.mxu0 0.0
  %3874 = vmatpush1.msra.mxu0 0.0
  %3875 = vmatprep.subr.mxu0 0.0
  %3876 = vmatpush1.msra.mxu0 0.0
  %3877 = vmatprep.subr.mxu0 0.0
  %3878 = vmatpush1.msra.mxu0 0.0
  %3879 = vmatprep.subr.mxu0 0.0
  %3880 = vmatpush1.msra.mxu0 0.0
  %3881 = vmatprep.subr.mxu0 0.0
  %3882 = vmatpush1.msra.mxu0 0.0
  %3883 = vmatprep.subr.mxu0 0.0
  %3884 = vmatpush1.msra.mxu0 0.0
  %3885 = vmatprep.mubr.f32.mxu0 0.0
  %3886 = vmatmul.mubr.f32.gmra.mrb[0].mxu0 %v3534
  %v3887 = vpop.f32.mrb[0].mxu0
  %v3888 = vadd.f32 %v3817, %v3887
  %v3889 = vpop.f32.mrb[0].mxu0
  %v3890 = vadd.f32 %v3818, %v3889
  %3891 = vdwg.mxu0
  %3892 = vmatprep.subr.mxu0 %v3606
  %3893 = vmatpush1.msra.mxu0 %v3605
  %3894 = vmatprep.subr.mxu0 %v3610
  %3895 = vmatpush1.msra.mxu0 %v3609
  %3896 = vmatprep.subr.mxu0 %v3614
  %3897 = vmatpush1.msra.mxu0 %v3613
  %3898 = vmatprep.subr.mxu0 %v3618
  %3899 = vmatpush1.msra.mxu0 %v3617
  %3900 = vmatprep.subr.mxu0 %v3622
  %3901 = vmatpush1.msra.mxu0 %v3621
  %3902 = vmatprep.subr.mxu0 %v3626
  %3903 = vmatpush1.msra.mxu0 %v3625
  %3904 = vmatprep.subr.mxu0 %v3630
  %3905 = vmatpush1.msra.mxu0 %v3629
  %3906 = vmatprep.subr.mxu0 %v3634
  %3907 = vmatpush1.msra.mxu0 %v3633
  %3908 = vmatprep.subr.mxu0 %v3638
  %3909 = vmatpush1.msra.mxu0 %v3637
  %3910 = vmatprep.subr.mxu0 %v3642
  %3911 = vmatpush1.msra.mxu0 %v3641
  %3912 = vmatprep.subr.mxu0 %v3646
  %3913 = vmatpush1.msra.mxu0 %v3645
  %3914 = vmatprep.subr.mxu0 %v3650
  %3915 = vmatpush1.msra.mxu0 %v3649
  %3916 = vmatprep.subr.mxu0 %v3654
  %3917 = vmatpush1.msra.mxu0 %v3653
  %3918 = vmatprep.subr.mxu0 %v3658
  %3919 = vmatpush1.msra.mxu0 %v3657
  %3920 = vmatprep.subr.mxu0 %v3662
  %3921 = vmatpush1.msra.mxu0 %v3661
  %3922 = vmatprep.subr.mxu0 %v3666
  %3923 = vmatpush1.msra.mxu0 %v3665
  %3924 = vmatprep.subr.mxu0 0.0
  %3925 = vmatpush1.msra.mxu0 0.0
  %3926 = vmatprep.subr.mxu0 0.0
  %3927 = vmatpush1.msra.mxu0 0.0
  %3928 = vmatprep.subr.mxu0 0.0
  %3929 = vmatpush1.msra.mxu0 0.0
  %3930 = vmatprep.subr.mxu0 0.0
  %3931 = vmatpush1.msra.mxu0 0.0
  %3932 = vmatprep.subr.mxu0 0.0
  %3933 = vmatpush1.msra.mxu0 0.0
  %3934 = vmatprep.subr.mxu0 0.0
  %3935 = vmatpush1.msra.mxu0 0.0
  %3936 = vmatprep.subr.mxu0 0.0
  %3937 = vmatpush1.msra.mxu0 0.0
  %3938 = vmatprep.subr.mxu0 0.0
  %3939 = vmatpush1.msra.mxu0 0.0
  %3940 = vmatprep.subr.mxu0 0.0
  %3941 = vmatpush1.msra.mxu0 0.0
  %3942 = vmatprep.subr.mxu0 0.0
  %3943 = vmatpush1.msra.mxu0 0.0
  %3944 = vmatprep.subr.mxu0 0.0
  %3945 = vmatpush1.msra.mxu0 0.0
  %3946 = vmatprep.subr.mxu0 0.0
  %3947 = vmatpush1.msra.mxu0 0.0
  %3948 = vmatprep.subr.mxu0 0.0
  %3949 = vmatpush1.msra.mxu0 0.0
  %3950 = vmatprep.subr.mxu0 0.0
  %3951 = vmatpush1.msra.mxu0 0.0
  %3952 = vmatprep.subr.mxu0 0.0
  %3953 = vmatpush1.msra.mxu0 0.0
  %3954 = vmatprep.subr.mxu0 0.0
  %3955 = vmatpush1.msra.mxu0 0.0
  %3956 = vmatprep.mubr.f32.mxu0 0.0
  %3957 = vmatmul.mubr.f32.gmra.mrb[0].mxu0 %v3534
  %v3958 = vpop.f32.mrb[0].mxu0
  %v3959 = vadd.f32 %v3819, %v3958
  %v3960 = vpop.f32.mrb[0].mxu0
  %v3961 = vadd.f32 %v3820, %v3960
  %3962 = vdwg.mxu0
  %v3963 = vxor.u32 %v3740, 2147483648
  %v3964 = vmul.f32 %v3963, 1.442695
  %v3965 = vpow.pop %v3964
  %v3966 = vadd.f32 %v3965, 1.0
  %v3967 = vrcp.pop %v3966
  %v3968 = vmul.f32 1.0, %v3967
  %v3969 = vxor.u32 %v3742, 2147483648
  %v3970 = vmul.f32 %v3969, 1.442695
  %v3971 = vpow.pop %v3970
  %v3972 = vadd.f32 %v3971, 1.0
  %v3973 = vrcp.pop %v3972
  %v3974 = vmul.f32 1.0, %v3973
  %v3975 = vtanh.pop %v3811
  %v3976 = vxor.u32 %v3813, 2147483648
  %v3977 = vmul.f32 %v3976, 1.442695
  %v3978 = vpow.pop %v3977
  %v3979 = vadd.f32 %v3978, 1.0
  %v3980 = vrcp.pop %v3979
  %v3981 = vmul.f32 1.0, %v3980
  %v3982 = vmul.f32 %v3974, %v3508
  %v3983 = vmul.f32 %v3968, %v3975
  %v3984 = vadd.f32 %v3982, %v3983
  %v3985 = vtanh.pop %v3984
  %v3986 = vmul.f32 %v3981, %v3985
  %v3987 = vxor.u32 %v3888, 2147483648
  %v3988 = vmul.f32 %v3987, 1.442695
  %v3989 = vpow.pop %v3988
  %v3990 = vadd.f32 %v3989, 1.0
  %v3991 = vrcp.pop %v3990
  %v3992 = vmul.f32 1.0, %v3991
  %v3993 = vxor.u32 %v3890, 2147483648
  %v3994 = vmul.f32 %v3993, 1.442695
  %v3995 = vpow.pop %v3994
  %v3996 = vadd.f32 %v3995, 1.0
  %v3997 = vrcp.pop %v3996
  %v3998 = vmul.f32 1.0, %v3997
  %v3999 = vtanh.pop %v3959
  %v4000 = vxor.u32 %v3961, 2147483648
  %v4001 = vmul.f32 %v4000, 1.442695
  %v4002 = vpow.pop %v4001
  %v4003 = vadd.f32 %v4002, 1.0
  %v4004 = vrcp.pop %v4003
  %v4005 = vmul.f32 1.0, %v4004
  %v4006 = vmul.f32 %v3998, %v3532
  %v4007 = vmul.f32 %v3992, %v3999
  %v4008 = vadd.f32 %v4006, %v4007
  %v4009 = vtanh.pop %v4008
  %v4010 = vmul.f32 %v4005, %v4009
  %s4011 = scalar_lea.vmem [#allocation4], 48
  %4012 = vst [vmem:[%s4011] sm:$0xff] %v3986
  %s4013 = scalar_lea.vmem [#allocation5], 8
  %4014 = vst [vmem:[%s4013] sm:$0xff] %v4010
  %v4015 = vld [vmem:[%s3] sm:$0xff]
  %v4016 = vld [vmem:[%s3 + $0x8] sm:$0xff]
  %v4017 = vld [vmem:[%s3 + $0x10] sm:$0xff]
  %v4018 = vld [vmem:[%s3 + $0x18] sm:$0xff]
  %v4019 = vld [vmem:[%s3 + $0x20] sm:$0xff]
  %v4020 = vld [vmem:[%s3 + $0x28] sm:$0xff]
  %v4021 = vld [vmem:[%s3 + $0x30] sm:$0xff]
  %v4022 = vld [vmem:[%s3 + $0x38] sm:$0xff]
  %v4023 = vld [vmem:[%s3 + $0x40] sm:$0xff]
  %v4024 = vld [vmem:[%s3 + $0x48] sm:$0xff]
  %v4025 = vld [vmem:[%s3 + $0x50] sm:$0xff]
  %v4026 = vld [vmem:[%s3 + $0x58] sm:$0xff]
  %v4027 = vld [vmem:[%s3 + $0x60] sm:$0xff]
  %v4028 = vld [vmem:[%s3 + $0x68] sm:$0xff]
  %v4029 = vld [vmem:[%s3 + $0x70] sm:$0xff]
  %v4030 = vld [vmem:[%s3 + $0x78] sm:$0xff]
  %v4031 = vld [vmem:[%s3 + $0x80] sm:$0xff]
  %v4032 = vld [vmem:[%s3 + $0x88] sm:$0xff]
  %v4033 = vld [vmem:[%s3 + $0x90] sm:$0xff]
  %v4034 = vld [vmem:[%s3 + $0x98] sm:$0xff]
  %v4035 = vld [vmem:[%s3 + $0xa0] sm:$0xff]
  %v4036 = vld [vmem:[%s3 + $0xa8] sm:$0xff]
  %v4037 = vld [vmem:[%s3 + $0xb0] sm:$0xff]
  %v4038 = vld [vmem:[%s3 + $0xb8] sm:$0xff]
  %v4039 = vld [vmem:[%s3 + $0xc0] sm:$0xff]
  %v4040 = vld [vmem:[%s3 + $0xc8] sm:$0xff]
  %v4041 = vld [vmem:[%s3 + $0xd0] sm:$0xff]
  %v4042 = vld [vmem:[%s3 + $0xd8] sm:$0xff]
  %v4043 = vld [vmem:[%s3 + $0xe0] sm:$0xff]
  %v4044 = vld [vmem:[%s3 + $0xe8] sm:$0xff]
  %v4045 = vld [vmem:[%s3 + $0xf0] sm:$0xff]
  %v4046 = vld [vmem:[%s3 + $0xf8] sm:$0xff]
  %v4047 = vld [vmem:[%s3 + $0x100] sm:$0xff]
  %v4048 = vld [vmem:[%s3 + $0x108] sm:$0xff]
  %v4049 = vld [vmem:[%s3 + $0x110] sm:$0xff]
  %v4050 = vld [vmem:[%s3 + $0x118] sm:$0xff]
  %v4051 = vld [vmem:[%s3 + $0x120] sm:$0xff]
  %v4052 = vld [vmem:[%s3 + $0x128] sm:$0xff]
  %v4053 = vld [vmem:[%s3 + $0x130] sm:$0xff]
  %v4054 = vld [vmem:[%s3 + $0x138] sm:$0xff]
  %v4055 = vld [vmem:[%s3 + $0x140] sm:$0xff]
  %v4056 = vld [vmem:[%s3 + $0x148] sm:$0xff]
  %v4057 = vld [vmem:[%s3 + $0x150] sm:$0xff]
  %v4058 = vld [vmem:[%s3 + $0x158] sm:$0xff]
  %v4059 = vld [vmem:[%s3 + $0x160] sm:$0xff]
  %v4060 = vld [vmem:[%s3 + $0x168] sm:$0xff]
  %v4061 = vld [vmem:[%s3 + $0x170] sm:$0xff]
  %v4062 = vld [vmem:[%s3 + $0x178] sm:$0xff]
  %v4063 = vld [vmem:[%s3 + $0x180] sm:$0xff]
  %v4064 = vld [vmem:[%s3 + $0x188] sm:$0xff]
  %v4065 = vld [vmem:[%s3 + $0x190] sm:$0xff]
  %v4066 = vld [vmem:[%s3 + $0x198] sm:$0xff]
  %v4067 = vld [vmem:[%s3 + $0x1a0] sm:$0xff]
  %v4068 = vld [vmem:[%s3 + $0x1a8] sm:$0xff]
  %v4069 = vld [vmem:[%s3 + $0x1b0] sm:$0xff]
  %v4070 = vld [vmem:[%s3 + $0x1b8] sm:$0xff]
  %v4071 = vld [vmem:[%s3 + $0x1c0] sm:$0xff]
  %v4072 = vld [vmem:[%s3 + $0x1c8] sm:$0xff]
  %v4073 = vld [vmem:[%s3 + $0x1d0] sm:$0xff]
  %v4074 = vld [vmem:[%s3 + $0x1d8] sm:$0xff]
  %v4075 = vld [vmem:[%s3 + $0x1e0] sm:$0xff]
  %v4076 = vld [vmem:[%s3 + $0x1e8] sm:$0xff]
  %v4077 = vld [vmem:[%s3 + $0x1f0] sm:$0xff]
  %v4078 = vld [vmem:[%s3 + $0x1f8] sm:$0xff]
  %v4079 = vld [vmem:[%s4] sm:$0xff]
  %v4080 = vld [vmem:[%s4 + $0x8] sm:$0xff]
  %v4081 = vld [vmem:[%s4 + $0x10] sm:$0xff]
  %v4082 = vld [vmem:[%s4 + $0x18] sm:$0xff]
  %v4083 = vld [vmem:[%s4 + $0x20] sm:$0xff]
  %v4084 = vld [vmem:[%s4 + $0x28] sm:$0xff]
  %v4085 = vld [vmem:[%s4 + $0x30] sm:$0xff]
  %v4086 = vld [vmem:[%s4 + $0x38] sm:$0xff]
  %v4087 = vld [vmem:[%s4 + $0x40] sm:$0xff]
  %v4088 = vld [vmem:[%s4 + $0x48] sm:$0xff]
  %v4089 = vld [vmem:[%s4 + $0x50] sm:$0xff]
  %v4090 = vld [vmem:[%s4 + $0x58] sm:$0xff]
  %v4091 = vld [vmem:[%s4 + $0x60] sm:$0xff]
  %v4092 = vld [vmem:[%s4 + $0x68] sm:$0xff]
  %v4093 = vld [vmem:[%s4 + $0x70] sm:$0xff]
  %v4094 = vld [vmem:[%s4 + $0x78] sm:$0xff]
  %v4095 = vld [vmem:[%s4 + $0x80] sm:$0xff]
  %v4096 = vld [vmem:[%s4 + $0x88] sm:$0xff]
  %v4097 = vld [vmem:[%s4 + $0x90] sm:$0xff]
  %v4098 = vld [vmem:[%s4 + $0x98] sm:$0xff]
  %v4099 = vld [vmem:[%s4 + $0xa0] sm:$0xff]
  %v4100 = vld [vmem:[%s4 + $0xa8] sm:$0xff]
  %v4101 = vld [vmem:[%s4 + $0xb0] sm:$0xff]
  %v4102 = vld [vmem:[%s4 + $0xb8] sm:$0xff]
  %v4103 = vld [vmem:[%s4 + $0xc0] sm:$0xff]
  %v4104 = vld [vmem:[%s4 + $0xc8] sm:$0xff]
  %v4105 = vld [vmem:[%s4 + $0xd0] sm:$0xff]
  %v4106 = vld [vmem:[%s4 + $0xd8] sm:$0xff]
  %v4107 = vld [vmem:[%s4 + $0xe0] sm:$0xff]
  %v4108 = vld [vmem:[%s4 + $0xe8] sm:$0xff]
  %v4109 = vld [vmem:[%s4 + $0xf0] sm:$0xff]
  %v4110 = vld [vmem:[%s4 + $0xf8] sm:$0xff]
  %v4111 = vld [vmem:[%s4 + $0x100] sm:$0xff]
  %v4112 = vld [vmem:[%s4 + $0x108] sm:$0xff]
  %v4113 = vld [vmem:[%s4 + $0x110] sm:$0xff]
  %v4114 = vld [vmem:[%s4 + $0x118] sm:$0xff]
  %v4115 = vld [vmem:[%s4 + $0x120] sm:$0xff]
  %v4116 = vld [vmem:[%s4 + $0x128] sm:$0xff]
  %v4117 = vld [vmem:[%s4 + $0x130] sm:$0xff]
  %v4118 = vld [vmem:[%s4 + $0x138] sm:$0xff]
  %v4119 = vld [vmem:[%s4 + $0x140] sm:$0xff]
  %v4120 = vld [vmem:[%s4 + $0x148] sm:$0xff]
  %v4121 = vld [vmem:[%s4 + $0x150] sm:$0xff]
  %v4122 = vld [vmem:[%s4 + $0x158] sm:$0xff]
  %v4123 = vld [vmem:[%s4 + $0x160] sm:$0xff]
  %v4124 = vld [vmem:[%s4 + $0x168] sm:$0xff]
  %v4125 = vld [vmem:[%s4 + $0x170] sm:$0xff]
  %v4126 = vld [vmem:[%s4 + $0x178] sm:$0xff]
  %v4127 = vld [vmem:[%s4 + $0x180] sm:$0xff]
  %v4128 = vld [vmem:[%s4 + $0x188] sm:$0xff]
  %v4129 = vld [vmem:[%s4 + $0x190] sm:$0xff]
  %v4130 = vld [vmem:[%s4 + $0x198] sm:$0xff]
  %v4131 = vld [vmem:[%s4 + $0x1a0] sm:$0xff]
  %v4132 = vld [vmem:[%s4 + $0x1a8] sm:$0xff]
  %v4133 = vld [vmem:[%s4 + $0x1b0] sm:$0xff]
  %v4134 = vld [vmem:[%s4 + $0x1b8] sm:$0xff]
  %v4135 = vld [vmem:[%s4 + $0x1c0] sm:$0xff]
  %v4136 = vld [vmem:[%s4 + $0x1c8] sm:$0xff]
  %v4137 = vld [vmem:[%s4 + $0x1d0] sm:$0xff]
  %v4138 = vld [vmem:[%s4 + $0x1d8] sm:$0xff]
  %v4139 = vld [vmem:[%s4 + $0x1e0] sm:$0xff]
  %v4140 = vld [vmem:[%s4 + $0x1e8] sm:$0xff]
  %v4141 = vld [vmem:[%s4 + $0x1f0] sm:$0xff]
  %v4142 = vld [vmem:[%s4 + $0x1f8] sm:$0xff]
  %s4143 = smul.addr %s953, 8
  %s4144 = scalar_lea.vmem [#allocation2], %s4143
  %v4145 = vld [vmem:[%s4144] sm:$0xff]
  %v4146 = vld [vmem:[%s4144 + $0x8] sm:$0xff]
  %v4147 = vld [vmem:[%s4144 + $0x10] sm:$0xff]
  %v4148 = vld [vmem:[%s4144 + $0x18] sm:$0xff]
  %4149 = vmatprep.subr.mxu0 %v4016
  %4150 = vmatpush1.msra.mxu0 %v4015
  %4151 = vmatprep.subr.mxu0 %v4020
  %4152 = vmatpush1.msra.mxu0 %v4019
  %4153 = vmatprep.subr.mxu0 %v4024
  %4154 = vmatpush1.msra.mxu0 %v4023
  %4155 = vmatprep.subr.mxu0 %v4028
  %4156 = vmatpush1.msra.mxu0 %v4027
  %4157 = vmatprep.subr.mxu0 %v4032
  %4158 = vmatpush1.msra.mxu0 %v4031
  %4159 = vmatprep.subr.mxu0 %v4036
  %4160 = vmatpush1.msra.mxu0 %v4035
  %4161 = vmatprep.subr.mxu0 %v4040
  %4162 = vmatpush1.msra.mxu0 %v4039
  %4163 = vmatprep.subr.mxu0 %v4044
  %4164 = vmatpush1.msra.mxu0 %v4043
  %4165 = vmatprep.subr.mxu0 %v4048
  %4166 = vmatpush1.msra.mxu0 %v4047
  %4167 = vmatprep.subr.mxu0 %v4052
  %4168 = vmatpush1.msra.mxu0 %v4051
  %4169 = vmatprep.subr.mxu0 %v4056
  %4170 = vmatpush1.msra.mxu0 %v4055
  %4171 = vmatprep.subr.mxu0 %v4060
  %4172 = vmatpush1.msra.mxu0 %v4059
  %4173 = vmatprep.subr.mxu0 %v4064
  %4174 = vmatpush1.msra.mxu0 %v4063
  %4175 = vmatprep.subr.mxu0 %v4068
  %4176 = vmatpush1.msra.mxu0 %v4067
  %4177 = vmatprep.subr.mxu0 %v4072
  %4178 = vmatpush1.msra.mxu0 %v4071
  %4179 = vmatprep.subr.mxu0 %v4076
  %4180 = vmatpush1.msra.mxu0 %v4075
  %4181 = vmatprep.subr.mxu0 0.0
  %4182 = vmatpush1.msra.mxu0 0.0
  %4183 = vmatprep.subr.mxu0 0.0
  %4184 = vmatpush1.msra.mxu0 0.0
  %4185 = vmatprep.subr.mxu0 0.0
  %4186 = vmatpush1.msra.mxu0 0.0
  %4187 = vmatprep.subr.mxu0 0.0
  %4188 = vmatpush1.msra.mxu0 0.0
  %4189 = vmatprep.subr.mxu0 0.0
  %4190 = vmatpush1.msra.mxu0 0.0
  %4191 = vmatprep.subr.mxu0 0.0
  %4192 = vmatpush1.msra.mxu0 0.0
  %4193 = vmatprep.subr.mxu0 0.0
  %4194 = vmatpush1.msra.mxu0 0.0
  %4195 = vmatprep.subr.mxu0 0.0
  %4196 = vmatpush1.msra.mxu0 0.0
  %4197 = vmatprep.subr.mxu0 0.0
  %4198 = vmatpush1.msra.mxu0 0.0
  %4199 = vmatprep.subr.mxu0 0.0
  %4200 = vmatpush1.msra.mxu0 0.0
  %4201 = vmatprep.subr.mxu0 0.0
  %4202 = vmatpush1.msra.mxu0 0.0
  %4203 = vmatprep.subr.mxu0 0.0
  %4204 = vmatpush1.msra.mxu0 0.0
  %4205 = vmatprep.subr.mxu0 0.0
  %4206 = vmatpush1.msra.mxu0 0.0
  %4207 = vmatprep.subr.mxu0 0.0
  %4208 = vmatpush1.msra.mxu0 0.0
  %4209 = vmatprep.subr.mxu0 0.0
  %4210 = vmatpush1.msra.mxu0 0.0
  %4211 = vmatprep.subr.mxu0 0.0
  %4212 = vmatpush1.msra.mxu0 0.0
  %4213 = vmatprep.mubr.f32.mxu0 0.0
  %4214 = vmatmul.mubr.f32.gmra.mrb[0].mxu0 %v3986
  %v4215 = vpop.f32.mrb[0].mxu0
  %v4216 = vadd.f32 %v4145, %v4215
  %v4217 = vpop.f32.mrb[0].mxu0
  %v4218 = vadd.f32 %v4146, %v4217
  %4219 = vdwg.mxu0
  %4220 = vmatprep.subr.mxu0 %v4018
  %4221 = vmatpush1.msra.mxu0 %v4017
  %4222 = vmatprep.subr.mxu0 %v4022
  %4223 = vmatpush1.msra.mxu0 %v4021
  %4224 = vmatprep.subr.mxu0 %v4026
  %4225 = vmatpush1.msra.mxu0 %v4025
  %4226 = vmatprep.subr.mxu0 %v4030
  %4227 = vmatpush1.msra.mxu0 %v4029
  %4228 = vmatprep.subr.mxu0 %v4034
  %4229 = vmatpush1.msra.mxu0 %v4033
  %4230 = vmatprep.subr.mxu0 %v4038
  %4231 = vmatpush1.msra.mxu0 %v4037
  %4232 = vmatprep.subr.mxu0 %v4042
  %4233 = vmatpush1.msra.mxu0 %v4041
  %4234 = vmatprep.subr.mxu0 %v4046
  %4235 = vmatpush1.msra.mxu0 %v4045
  %4236 = vmatprep.subr.mxu0 %v4050
  %4237 = vmatpush1.msra.mxu0 %v4049
  %4238 = vmatprep.subr.mxu0 %v4054
  %4239 = vmatpush1.msra.mxu0 %v4053
  %4240 = vmatprep.subr.mxu0 %v4058
  %4241 = vmatpush1.msra.mxu0 %v4057
  %4242 = vmatprep.subr.mxu0 %v4062
  %4243 = vmatpush1.msra.mxu0 %v4061
  %4244 = vmatprep.subr.mxu0 %v4066
  %4245 = vmatpush1.msra.mxu0 %v4065
  %4246 = vmatprep.subr.mxu0 %v4070
  %4247 = vmatpush1.msra.mxu0 %v4069
  %4248 = vmatprep.subr.mxu0 %v4074
  %4249 = vmatpush1.msra.mxu0 %v4073
  %4250 = vmatprep.subr.mxu0 %v4078
  %4251 = vmatpush1.msra.mxu0 %v4077
  %4252 = vmatprep.subr.mxu0 0.0
  %4253 = vmatpush1.msra.mxu0 0.0
  %4254 = vmatprep.subr.mxu0 0.0
  %4255 = vmatpush1.msra.mxu0 0.0
  %4256 = vmatprep.subr.mxu0 0.0
  %4257 = vmatpush1.msra.mxu0 0.0
  %4258 = vmatprep.subr.mxu0 0.0
  %4259 = vmatpush1.msra.mxu0 0.0
  %4260 = vmatprep.subr.mxu0 0.0
  %4261 = vmatpush1.msra.mxu0 0.0
  %4262 = vmatprep.subr.mxu0 0.0
  %4263 = vmatpush1.msra.mxu0 0.0
  %4264 = vmatprep.subr.mxu0 0.0
  %4265 = vmatpush1.msra.mxu0 0.0
  %4266 = vmatprep.subr.mxu0 0.0
  %4267 = vmatpush1.msra.mxu0 0.0
  %4268 = vmatprep.subr.mxu0 0.0
  %4269 = vmatpush1.msra.mxu0 0.0
  %4270 = vmatprep.subr.mxu0 0.0
  %4271 = vmatpush1.msra.mxu0 0.0
  %4272 = vmatprep.subr.mxu0 0.0
  %4273 = vmatpush1.msra.mxu0 0.0
  %4274 = vmatprep.subr.mxu0 0.0
  %4275 = vmatpush1.msra.mxu0 0.0
  %4276 = vmatprep.subr.mxu0 0.0
  %4277 = vmatpush1.msra.mxu0 0.0
  %4278 = vmatprep.subr.mxu0 0.0
  %4279 = vmatpush1.msra.mxu0 0.0
  %4280 = vmatprep.subr.mxu0 0.0
  %4281 = vmatpush1.msra.mxu0 0.0
  %4282 = vmatprep.subr.mxu0 0.0
  %4283 = vmatpush1.msra.mxu0 0.0
  %4284 = vmatprep.mubr.f32.mxu0 0.0
  %4285 = vmatmul.mubr.f32.gmra.mrb[0].mxu0 %v3986
  %v4286 = vpop.f32.mrb[0].mxu0
  %v4287 = vadd.f32 %v4147, %v4286
  %v4288 = vpop.f32.mrb[0].mxu0
  %v4289 = vadd.f32 %v4148, %v4288
  %4290 = vdwg.mxu0
  %s4291 = smul.addr %s804, 8
  %s4292 = scalar_lea.vmem [#allocation3], %s4291
  %v4293 = vld [vmem:[%s4292] sm:$0xff]
  %v4294 = vld [vmem:[%s4292 + $0x8] sm:$0xff]
  %v4295 = vld [vmem:[%s4292 + $0x10] sm:$0xff]
  %v4296 = vld [vmem:[%s4292 + $0x18] sm:$0xff]
  %4297 = vmatprep.subr.mxu0 %v4080
  %4298 = vmatpush1.msra.mxu0 %v4079
  %4299 = vmatprep.subr.mxu0 %v4084
  %4300 = vmatpush1.msra.mxu0 %v4083
  %4301 = vmatprep.subr.mxu0 %v4088
  %4302 = vmatpush1.msra.mxu0 %v4087
  %4303 = vmatprep.subr.mxu0 %v4092
  %4304 = vmatpush1.msra.mxu0 %v4091
  %4305 = vmatprep.subr.mxu0 %v4096
  %4306 = vmatpush1.msra.mxu0 %v4095
  %4307 = vmatprep.subr.mxu0 %v4100
  %4308 = vmatpush1.msra.mxu0 %v4099
  %4309 = vmatprep.subr.mxu0 %v4104
  %4310 = vmatpush1.msra.mxu0 %v4103
  %4311 = vmatprep.subr.mxu0 %v4108
  %4312 = vmatpush1.msra.mxu0 %v4107
  %4313 = vmatprep.subr.mxu0 %v4112
  %4314 = vmatpush1.msra.mxu0 %v4111
  %4315 = vmatprep.subr.mxu0 %v4116
  %4316 = vmatpush1.msra.mxu0 %v4115
  %4317 = vmatprep.subr.mxu0 %v4120
  %4318 = vmatpush1.msra.mxu0 %v4119
  %4319 = vmatprep.subr.mxu0 %v4124
  %4320 = vmatpush1.msra.mxu0 %v4123
  %4321 = vmatprep.subr.mxu0 %v4128
  %4322 = vmatpush1.msra.mxu0 %v4127
  %4323 = vmatprep.subr.mxu0 %v4132
  %4324 = vmatpush1.msra.mxu0 %v4131
  %4325 = vmatprep.subr.mxu0 %v4136
  %4326 = vmatpush1.msra.mxu0 %v4135
  %4327 = vmatprep.subr.mxu0 %v4140
  %4328 = vmatpush1.msra.mxu0 %v4139
  %4329 = vmatprep.subr.mxu0 0.0
  %4330 = vmatpush1.msra.mxu0 0.0
  %4331 = vmatprep.subr.mxu0 0.0
  %4332 = vmatpush1.msra.mxu0 0.0
  %4333 = vmatprep.subr.mxu0 0.0
  %4334 = vmatpush1.msra.mxu0 0.0
  %4335 = vmatprep.subr.mxu0 0.0
  %4336 = vmatpush1.msra.mxu0 0.0
  %4337 = vmatprep.subr.mxu0 0.0
  %4338 = vmatpush1.msra.mxu0 0.0
  %4339 = vmatprep.subr.mxu0 0.0
  %4340 = vmatpush1.msra.mxu0 0.0
  %4341 = vmatprep.subr.mxu0 0.0
  %4342 = vmatpush1.msra.mxu0 0.0
  %4343 = vmatprep.subr.mxu0 0.0
  %4344 = vmatpush1.msra.mxu0 0.0
  %4345 = vmatprep.subr.mxu0 0.0
  %4346 = vmatpush1.msra.mxu0 0.0
  %4347 = vmatprep.subr.mxu0 0.0
  %4348 = vmatpush1.msra.mxu0 0.0
  %4349 = vmatprep.subr.mxu0 0.0
  %4350 = vmatpush1.msra.mxu0 0.0
  %4351 = vmatprep.subr.mxu0 0.0
  %4352 = vmatpush1.msra.mxu0 0.0
  %4353 = vmatprep.subr.mxu0 0.0
  %4354 = vmatpush1.msra.mxu0 0.0
  %4355 = vmatprep.subr.mxu0 0.0
  %4356 = vmatpush1.msra.mxu0 0.0
  %4357 = vmatprep.subr.mxu0 0.0
  %4358 = vmatpush1.msra.mxu0 0.0
  %4359 = vmatprep.subr.mxu0 0.0
  %4360 = vmatpush1.msra.mxu0 0.0
  %4361 = vmatprep.mubr.f32.mxu0 0.0
  %4362 = vmatmul.mubr.f32.gmra.mrb[0].mxu0 %v4010
  %v4363 = vpop.f32.mrb[0].mxu0
  %v4364 = vadd.f32 %v4293, %v4363
  %v4365 = vpop.f32.mrb[0].mxu0
  %v4366 = vadd.f32 %v4294, %v4365
  %4367 = vdwg.mxu0
  %4368 = vmatprep.subr.mxu0 %v4082
  %4369 = vmatpush1.msra.mxu0 %v4081
  %4370 = vmatprep.subr.mxu0 %v4086
  %4371 = vmatpush1.msra.mxu0 %v4085
  %4372 = vmatprep.subr.mxu0 %v4090
  %4373 = vmatpush1.msra.mxu0 %v4089
  %4374 = vmatprep.subr.mxu0 %v4094
  %4375 = vmatpush1.msra.mxu0 %v4093
  %4376 = vmatprep.subr.mxu0 %v4098
  %4377 = vmatpush1.msra.mxu0 %v4097
  %4378 = vmatprep.subr.mxu0 %v4102
  %4379 = vmatpush1.msra.mxu0 %v4101
  %4380 = vmatprep.subr.mxu0 %v4106
  %4381 = vmatpush1.msra.mxu0 %v4105
  %4382 = vmatprep.subr.mxu0 %v4110
  %4383 = vmatpush1.msra.mxu0 %v4109
  %4384 = vmatprep.subr.mxu0 %v4114
  %4385 = vmatpush1.msra.mxu0 %v4113
  %4386 = vmatprep.subr.mxu0 %v4118
  %4387 = vmatpush1.msra.mxu0 %v4117
  %4388 = vmatprep.subr.mxu0 %v4122
  %4389 = vmatpush1.msra.mxu0 %v4121
  %4390 = vmatprep.subr.mxu0 %v4126
  %4391 = vmatpush1.msra.mxu0 %v4125
  %4392 = vmatprep.subr.mxu0 %v4130
  %4393 = vmatpush1.msra.mxu0 %v4129
  %4394 = vmatprep.subr.mxu0 %v4134
  %4395 = vmatpush1.msra.mxu0 %v4133
  %4396 = vmatprep.subr.mxu0 %v4138
  %4397 = vmatpush1.msra.mxu0 %v4137
  %4398 = vmatprep.subr.mxu0 %v4142
  %4399 = vmatpush1.msra.mxu0 %v4141
  %4400 = vmatprep.subr.mxu0 0.0
  %4401 = vmatpush1.msra.mxu0 0.0
  %4402 = vmatprep.subr.mxu0 0.0
  %4403 = vmatpush1.msra.mxu0 0.0
  %4404 = vmatprep.subr.mxu0 0.0
  %4405 = vmatpush1.msra.mxu0 0.0
  %4406 = vmatprep.subr.mxu0 0.0
  %4407 = vmatpush1.msra.mxu0 0.0
  %4408 = vmatprep.subr.mxu0 0.0
  %4409 = vmatpush1.msra.mxu0 0.0
  %4410 = vmatprep.subr.mxu0 0.0
  %4411 = vmatpush1.msra.mxu0 0.0
  %4412 = vmatprep.subr.mxu0 0.0
  %4413 = vmatpush1.msra.mxu0 0.0
  %4414 = vmatprep.subr.mxu0 0.0
  %4415 = vmatpush1.msra.mxu0 0.0
  %4416 = vmatprep.subr.mxu0 0.0
  %4417 = vmatpush1.msra.mxu0 0.0
  %4418 = vmatprep.subr.mxu0 0.0
  %4419 = vmatpush1.msra.mxu0 0.0
  %4420 = vmatprep.subr.mxu0 0.0
  %4421 = vmatpush1.msra.mxu0 0.0
  %4422 = vmatprep.subr.mxu0 0.0
  %4423 = vmatpush1.msra.mxu0 0.0
  %4424 = vmatprep.subr.mxu0 0.0
  %4425 = vmatpush1.msra.mxu0 0.0
  %4426 = vmatprep.subr.mxu0 0.0
  %4427 = vmatpush1.msra.mxu0 0.0
  %4428 = vmatprep.subr.mxu0 0.0
  %4429 = vmatpush1.msra.mxu0 0.0
  %4430 = vmatprep.subr.mxu0 0.0
  %4431 = vmatpush1.msra.mxu0 0.0
  %4432 = vmatprep.mubr.f32.mxu0 0.0
  %4433 = vmatmul.mubr.f32.gmra.mrb[0].mxu0 %v4010
  %v4434 = vpop.f32.mrb[0].mxu0
  %v4435 = vadd.f32 %v4295, %v4434
  %v4436 = vpop.f32.mrb[0].mxu0
  %v4437 = vadd.f32 %v4296, %v4436
  %4438 = vdwg.mxu0
  %v4439 = vxor.u32 %v4216, 2147483648
  %v4440 = vmul.f32 %v4439, 1.442695
  %v4441 = vpow.pop %v4440
  %v4442 = vadd.f32 %v4441, 1.0
  %v4443 = vrcp.pop %v4442
  %v4444 = vmul.f32 1.0, %v4443
  %v4445 = vxor.u32 %v4218, 2147483648
  %v4446 = vmul.f32 %v4445, 1.442695
  %v4447 = vpow.pop %v4446
  %v4448 = vadd.f32 %v4447, 1.0
  %v4449 = vrcp.pop %v4448
  %v4450 = vmul.f32 1.0, %v4449
  %v4451 = vtanh.pop %v4287
  %v4452 = vxor.u32 %v4289, 2147483648
  %v4453 = vmul.f32 %v4452, 1.442695
  %v4454 = vpow.pop %v4453
  %v4455 = vadd.f32 %v4454, 1.0
  %v4456 = vrcp.pop %v4455
  %v4457 = vmul.f32 1.0, %v4456
  %v4458 = vmul.f32 %v4450, %v3984
  %v4459 = vmul.f32 %v4444, %v4451
  %v4460 = vadd.f32 %v4458, %v4459
  %v4461 = vtanh.pop %v4460
  %v4462 = vmul.f32 %v4457, %v4461
  %v4463 = vxor.u32 %v4364, 2147483648
  %v4464 = vmul.f32 %v4463, 1.442695
  %v4465 = vpow.pop %v4464
  %v4466 = vadd.f32 %v4465, 1.0
  %v4467 = vrcp.pop %v4466
  %v4468 = vmul.f32 1.0, %v4467
  %v4469 = vxor.u32 %v4366, 2147483648
  %v4470 = vmul.f32 %v4469, 1.442695
  %v4471 = vpow.pop %v4470
  %v4472 = vadd.f32 %v4471, 1.0
  %v4473 = vrcp.pop %v4472
  %v4474 = vmul.f32 1.0, %v4473
  %v4475 = vtanh.pop %v4435
  %v4476 = vxor.u32 %v4437, 2147483648
  %v4477 = vmul.f32 %v4476, 1.442695
  %v4478 = vpow.pop %v4477
  %v4479 = vadd.f32 %v4478, 1.0
  %v4480 = vrcp.pop %v4479
  %v4481 = vmul.f32 1.0, %v4480
  %v4482 = vmul.f32 %v4474, %v4008
  %v4483 = vmul.f32 %v4468, %v4475
  %v4484 = vadd.f32 %v4482, %v4483
  %v4485 = vtanh.pop %v4484
  %v4486 = vmul.f32 %v4481, %v4485
  %s4487 = scalar_lea.vmem [#allocation4], 56
  %4488 = vst [vmem:[%s4487] sm:$0xff] %v4462
  %4489 = vst [vmem:[#allocation5] sm:$0xff] %v4486
  %v4490 = vld [vmem:[#allocation4] sm:$0xff]
  %v4491 = vld [vmem:[#allocation4 + $0x8] sm:$0xff]
  %v4492 = vld [vmem:[#allocation4 + $0x10] sm:$0xff]
  %v4493 = vld [vmem:[#allocation4 + $0x18] sm:$0xff]
  %v4494 = vld [vmem:[#allocation4 + $0x20] sm:$0xff]
  %v4495 = vld [vmem:[#allocation4 + $0x28] sm:$0xff]
  %v4496 = vld [vmem:[#allocation4 + $0x30] sm:$0xff]
  %v4497 = vld [vmem:[#allocation4 + $0x38] sm:$0xff]
  %v4498 = vld [vmem:[%s7] sm:$0xff]
  %v4499 = vld [vmem:[%s7 + $0x8] sm:$0xff]
  %v4500 = vld [vmem:[%s7 + $0x10] sm:$0xff]
  %v4501 = vld [vmem:[%s7 + $0x18] sm:$0xff]
  %v4502 = vld [vmem:[%s7 + $0x20] sm:$0xff]
  %v4503 = vld [vmem:[%s7 + $0x28] sm:$0xff]
  %v4504 = vld [vmem:[%s7 + $0x30] sm:$0xff]
  %v4505 = vld [vmem:[%s7 + $0x38] sm:$0xff]
  %v4506 = vld [vmem:[%s7 + $0x40] sm:$0xff]
  %v4507 = vld [vmem:[%s7 + $0x48] sm:$0xff]
  %v4508 = vld [vmem:[%s7 + $0x50] sm:$0xff]
  %v4509 = vld [vmem:[%s7 + $0x58] sm:$0xff]
  %v4510 = vld [vmem:[%s7 + $0x60] sm:$0xff]
  %v4511 = vld [vmem:[%s7 + $0x68] sm:$0xff]
  %v4512 = vld [vmem:[%s7 + $0x70] sm:$0xff]
  %v4513 = vld [vmem:[%s7 + $0x78] sm:$0xff]
  %v4514 = vld [vmem:[#allocation5] sm:$0xff]
  %v4515 = vld [vmem:[#allocation5 + $0x8] sm:$0xff]
  %v4516 = vld [vmem:[#allocation5 + $0x10] sm:$0xff]
  %v4517 = vld [vmem:[#allocation5 + $0x18] sm:$0xff]
  %v4518 = vld [vmem:[#allocation5 + $0x20] sm:$0xff]
  %v4519 = vld [vmem:[#allocation5 + $0x28] sm:$0xff]
  %v4520 = vld [vmem:[#allocation5 + $0x30] sm:$0xff]
  %v4521 = vld [vmem:[#allocation5 + $0x38] sm:$0xff]
  %v4522 = vld [vmem:[%s8] sm:$0xff]
  %v4523 = vld [vmem:[%s8 + $0x8] sm:$0xff]
  %v4524 = vld [vmem:[%s8 + $0x10] sm:$0xff]
  %v4525 = vld [vmem:[%s8 + $0x18] sm:$0xff]
  %v4526 = vld [vmem:[%s8 + $0x20] sm:$0xff]
  %v4527 = vld [vmem:[%s8 + $0x28] sm:$0xff]
  %v4528 = vld [vmem:[%s8 + $0x30] sm:$0xff]
  %v4529 = vld [vmem:[%s8 + $0x38] sm:$0xff]
  %v4530 = vld [vmem:[%s8 + $0x40] sm:$0xff]
  %v4531 = vld [vmem:[%s8 + $0x48] sm:$0xff]
  %v4532 = vld [vmem:[%s8 + $0x50] sm:$0xff]
  %v4533 = vld [vmem:[%s8 + $0x58] sm:$0xff]
  %v4534 = vld [vmem:[%s8 + $0x60] sm:$0xff]
  %v4535 = vld [vmem:[%s8 + $0x68] sm:$0xff]
  %v4536 = vld [vmem:[%s8 + $0x70] sm:$0xff]
  %v4537 = vld [vmem:[%s8 + $0x78] sm:$0xff]
  %4538 = vmatprep.subr.mxu0 0.0
  %4539 = vmatpush1.msra.mxu0 %v4522
  %4540 = vmatprep.subr.mxu0 0.0
  %4541 = vmatpush1.msra.mxu0 %v4523
  %4542 = vmatprep.subr.mxu0 0.0
  %4543 = vmatpush1.msra.mxu0 %v4524
  %4544 = vmatprep.subr.mxu0 0.0
  %4545 = vmatpush1.msra.mxu0 %v4525
  %4546 = vmatprep.subr.mxu0 0.0
  %4547 = vmatpush1.msra.mxu0 %v4526
  %4548 = vmatprep.subr.mxu0 0.0
  %4549 = vmatpush1.msra.mxu0 %v4527
  %4550 = vmatprep.subr.mxu0 0.0
  %4551 = vmatpush1.msra.mxu0 %v4528
  %4552 = vmatprep.subr.mxu0 0.0
  %4553 = vmatpush1.msra.mxu0 %v4529
  %4554 = vmatprep.subr.mxu0 0.0
  %4555 = vmatpush1.msra.mxu0 %v4530
  %4556 = vmatprep.subr.mxu0 0.0
  %4557 = vmatpush1.msra.mxu0 %v4531
  %4558 = vmatprep.subr.mxu0 0.0
  %4559 = vmatpush1.msra.mxu0 %v4532
  %4560 = vmatprep.subr.mxu0 0.0
  %4561 = vmatpush1.msra.mxu0 %v4533
  %4562 = vmatprep.subr.mxu0 0.0
  %4563 = vmatpush1.msra.mxu0 %v4534
  %4564 = vmatprep.subr.mxu0 0.0
  %4565 = vmatpush1.msra.mxu0 %v4535
  %4566 = vmatprep.subr.mxu0 0.0
  %4567 = vmatpush1.msra.mxu0 %v4536
  %4568 = vmatprep.subr.mxu0 0.0
  %4569 = vmatpush1.msra.mxu0 %v4537
  %4570 = vmatprep.subr.mxu0 0.0
  %4571 = vmatpush1.msra.mxu0 0.0
  %4572 = vmatprep.subr.mxu0 0.0
  %4573 = vmatpush1.msra.mxu0 0.0
  %4574 = vmatprep.subr.mxu0 0.0
  %4575 = vmatpush1.msra.mxu0 0.0
  %4576 = vmatprep.subr.mxu0 0.0
  %4577 = vmatpush1.msra.mxu0 0.0
  %4578 = vmatprep.subr.mxu0 0.0
  %4579 = vmatpush1.msra.mxu0 0.0
  %4580 = vmatprep.subr.mxu0 0.0
  %4581 = vmatpush1.msra.mxu0 0.0
  %4582 = vmatprep.subr.mxu0 0.0
  %4583 = vmatpush1.msra.mxu0 0.0
  %4584 = vmatprep.subr.mxu0 0.0
  %4585 = vmatpush1.msra.mxu0 0.0
  %4586 = vmatprep.subr.mxu0 0.0
  %4587 = vmatpush1.msra.mxu0 0.0
  %4588 = vmatprep.subr.mxu0 0.0
  %4589 = vmatpush1.msra.mxu0 0.0
  %4590 = vmatprep.subr.mxu0 0.0
  %4591 = vmatpush1.msra.mxu0 0.0
  %4592 = vmatprep.subr.mxu0 0.0
  %4593 = vmatpush1.msra.mxu0 0.0
  %4594 = vmatprep.subr.mxu0 0.0
  %4595 = vmatpush1.msra.mxu0 0.0
  %4596 = vmatprep.subr.mxu0 0.0
  %4597 = vmatpush1.msra.mxu0 0.0
  %4598 = vmatprep.subr.mxu0 0.0
  %4599 = vmatpush1.msra.mxu0 0.0
  %4600 = vmatprep.subr.mxu0 0.0
  %4601 = vmatpush1.msra.mxu0 0.0
  %4602 = vmatprep.mubr.f32.mxu0 0.0
  %4603 = vmatmul.mubr.f32.gmra.mrb[0].mxu0 %v4514
  %v4604 = vpop.f32.mrb[0].mxu0
  %v4605 = vadd.f32 0.0, %v4604
  %v4606 = vpop.f32.mrb[0].mxu0
  %4607 = vmatprep.mubr.f32.mxu0 0.0
  %4608 = vmatmul.mubr.f32.gmra.mrb[0].mxu0 %v4515
  %v4609 = vpop.f32.mrb[0].mxu0
  %v4610 = vadd.f32 0.0, %v4609
  %v4611 = vpop.f32.mrb[0].mxu0
  %4612 = vmatprep.mubr.f32.mxu0 0.0
  %4613 = vmatmul.mubr.f32.gmra.mrb[0].mxu0 %v4516
  %v4614 = vpop.f32.mrb[0].mxu0
  %v4615 = vadd.f32 0.0, %v4614
  %v4616 = vpop.f32.mrb[0].mxu0
  %4617 = vmatprep.mubr.f32.mxu0 0.0
  %4618 = vmatmul.mubr.f32.gmra.mrb[0].mxu0 %v4517
  %v4619 = vpop.f32.mrb[0].mxu0
  %v4620 = vadd.f32 0.0, %v4619
  %v4621 = vpop.f32.mrb[0].mxu0
  %4622 = vmatprep.mubr.f32.mxu0 0.0
  %4623 = vmatmul.mubr.f32.gmra.mrb[0].mxu0 %v4518
  %v4624 = vpop.f32.mrb[0].mxu0
  %v4625 = vadd.f32 0.0, %v4624
  %v4626 = vpop.f32.mrb[0].mxu0
  %4627 = vmatprep.mubr.f32.mxu0 0.0
  %4628 = vmatmul.mubr.f32.gmra.mrb[0].mxu0 %v4519
  %v4629 = vpop.f32.mrb[0].mxu0
  %v4630 = vadd.f32 0.0, %v4629
  %v4631 = vpop.f32.mrb[0].mxu0
  %4632 = vmatprep.mubr.f32.mxu0 0.0
  %4633 = vmatmul.mubr.f32.gmra.mrb[0].mxu0 %v4520
  %v4634 = vpop.f32.mrb[0].mxu0
  %v4635 = vadd.f32 0.0, %v4634
  %v4636 = vpop.f32.mrb[0].mxu0
  %4637 = vmatprep.mubr.f32.mxu0 0.0
  %4638 = vmatmul.mubr.f32.gmra.mrb[0].mxu0 %v4521
  %v4639 = vpop.f32.mrb[0].mxu0
  %v4640 = vadd.f32 0.0, %v4639
  %v4641 = vpop.f32.mrb[0].mxu0
  %4642 = vdwg.mxu0
  %4643 = vmatprep.subr.mxu0 0.0
  %4644 = vmatpush1.msra.mxu0 %v4498
  %4645 = vmatprep.subr.mxu0 0.0
  %4646 = vmatpush1.msra.mxu0 %v4499
  %4647 = vmatprep.subr.mxu0 0.0
  %4648 = vmatpush1.msra.mxu0 %v4500
  %4649 = vmatprep.subr.mxu0 0.0
  %4650 = vmatpush1.msra.mxu0 %v4501
  %4651 = vmatprep.subr.mxu0 0.0
  %4652 = vmatpush1.msra.mxu0 %v4502
  %4653 = vmatprep.subr.mxu0 0.0
  %4654 = vmatpush1.msra.mxu0 %v4503
  %4655 = vmatprep.subr.mxu0 0.0
  %4656 = vmatpush1.msra.mxu0 %v4504
  %4657 = vmatprep.subr.mxu0 0.0
  %4658 = vmatpush1.msra.mxu0 %v4505
  %4659 = vmatprep.subr.mxu0 0.0
  %4660 = vmatpush1.msra.mxu0 %v4506
  %4661 = vmatprep.subr.mxu0 0.0
  %4662 = vmatpush1.msra.mxu0 %v4507
  %4663 = vmatprep.subr.mxu0 0.0
  %4664 = vmatpush1.msra.mxu0 %v4508
  %4665 = vmatprep.subr.mxu0 0.0
  %4666 = vmatpush1.msra.mxu0 %v4509
  %4667 = vmatprep.subr.mxu0 0.0
  %4668 = vmatpush1.msra.mxu0 %v4510
  %4669 = vmatprep.subr.mxu0 0.0
  %4670 = vmatpush1.msra.mxu0 %v4511
  %4671 = vmatprep.subr.mxu0 0.0
  %4672 = vmatpush1.msra.mxu0 %v4512
  %4673 = vmatprep.subr.mxu0 0.0
  %4674 = vmatpush1.msra.mxu0 %v4513
  %4675 = vmatprep.subr.mxu0 0.0
  %4676 = vmatpush1.msra.mxu0 0.0
  %4677 = vmatprep.subr.mxu0 0.0
  %4678 = vmatpush1.msra.mxu0 0.0
  %4679 = vmatprep.subr.mxu0 0.0
  %4680 = vmatpush1.msra.mxu0 0.0
  %4681 = vmatprep.subr.mxu0 0.0
  %4682 = vmatpush1.msra.mxu0 0.0
  %4683 = vmatprep.subr.mxu0 0.0
  %4684 = vmatpush1.msra.mxu0 0.0
  %4685 = vmatprep.subr.mxu0 0.0
  %4686 = vmatpush1.msra.mxu0 0.0
  %4687 = vmatprep.subr.mxu0 0.0
  %4688 = vmatpush1.msra.mxu0 0.0
  %4689 = vmatprep.subr.mxu0 0.0
  %4690 = vmatpush1.msra.mxu0 0.0
  %4691 = vmatprep.subr.mxu0 0.0
  %4692 = vmatpush1.msra.mxu0 0.0
  %4693 = vmatprep.subr.mxu0 0.0
  %4694 = vmatpush1.msra.mxu0 0.0
  %4695 = vmatprep.subr.mxu0 0.0
  %4696 = vmatpush1.msra.mxu0 0.0
  %4697 = vmatprep.subr.mxu0 0.0
  %4698 = vmatpush1.msra.mxu0 0.0
  %4699 = vmatprep.subr.mxu0 0.0
  %4700 = vmatpush1.msra.mxu0 0.0
  %4701 = vmatprep.subr.mxu0 0.0
  %4702 = vmatpush1.msra.mxu0 0.0
  %4703 = vmatprep.subr.mxu0 0.0
  %4704 = vmatpush1.msra.mxu0 0.0
  %4705 = vmatprep.subr.mxu0 0.0
  %4706 = vmatpush1.msra.mxu0 0.0
  %4707 = vmatprep.mubr.f32.mxu0 0.0
  %4708 = vmatmul.mubr.f32.gmra.mrb[0].mxu0 %v4490
  %v4709 = vpop.f32.mrb[0].mxu0
  %v4710 = vadd.f32 %v4605, %v4709
  %v4711 = vpop.f32.mrb[0].mxu0
  %4712 = vmatprep.mubr.f32.mxu0 0.0
  %4713 = vmatmul.mubr.f32.gmra.mrb[0].mxu0 %v4491
  %v4714 = vpop.f32.mrb[0].mxu0
  %v4715 = vadd.f32 %v4610, %v4714
  %v4716 = vpop.f32.mrb[0].mxu0
  %4717 = vmatprep.mubr.f32.mxu0 0.0
  %4718 = vmatmul.mubr.f32.gmra.mrb[0].mxu0 %v4492
  %v4719 = vpop.f32.mrb[0].mxu0
  %v4720 = vadd.f32 %v4615, %v4719
  %v4721 = vpop.f32.mrb[0].mxu0
  %4722 = vmatprep.mubr.f32.mxu0 0.0
  %4723 = vmatmul.mubr.f32.gmra.mrb[0].mxu0 %v4493
  %v4724 = vpop.f32.mrb[0].mxu0
  %v4725 = vadd.f32 %v4620, %v4724
  %v4726 = vpop.f32.mrb[0].mxu0
  %4727 = vmatprep.mubr.f32.mxu0 0.0
  %4728 = vmatmul.mubr.f32.gmra.mrb[0].mxu0 %v4494
  %v4729 = vpop.f32.mrb[0].mxu0
  %v4730 = vadd.f32 %v4625, %v4729
  %v4731 = vpop.f32.mrb[0].mxu0
  %4732 = vmatprep.mubr.f32.mxu0 0.0
  %4733 = vmatmul.mubr.f32.gmra.mrb[0].mxu0 %v4495
  %v4734 = vpop.f32.mrb[0].mxu0
  %v4735 = vadd.f32 %v4630, %v4734
  %v4736 = vpop.f32.mrb[0].mxu0
  %4737 = vmatprep.mubr.f32.mxu0 0.0
  %4738 = vmatmul.mubr.f32.gmra.mrb[0].mxu0 %v4496
  %v4739 = vpop.f32.mrb[0].mxu0
  %v4740 = vadd.f32 %v4635, %v4739
  %v4741 = vpop.f32.mrb[0].mxu0
  %4742 = vmatprep.mubr.f32.mxu0 0.0
  %4743 = vmatmul.mubr.f32.gmra.mrb[0].mxu0 %v4497
  %v4744 = vpop.f32.mrb[0].mxu0
  %v4745 = vadd.f32 %v4640, %v4744
  %v4746 = vpop.f32.mrb[0].mxu0
  %4747 = vdwg.mxu0
  %v4748 = vld [vmem:[%s9] sm:$0x1]
  %v4750 = vlaneseq
  %v4751 = vshrl.u32 %v4750, 7
  %v4752 = vsub.s32 0, %v4751
  %v4753 = vrot.slane %v4748, %v4752
  %v4755 = vadd.f32 %v4710, %v4753
  %v4756 = vadd.f32 %v4715, %v4753
  %v4757 = vadd.f32 %v4720, %v4753
  %v4758 = vadd.f32 %v4725, %v4753
  %v4759 = vadd.f32 %v4730, %v4753
  %v4760 = vadd.f32 %v4735, %v4753
  %v4761 = vadd.f32 %v4740, %v4753
  %v4762 = vadd.f32 %v4745, %v4753
  %4763 = vst [vmem:[%s10] sm:$0xff] %v4755
  %4764 = vst [vmem:[%s10 + $0x8] sm:$0xff] %v4756
  %4765 = vst [vmem:[%s10 + $0x10] sm:$0xff] %v4757
  %4766 = vst [vmem:[%s10 + $0x18] sm:$0xff] %v4758
  %4767 = vst [vmem:[%s10 + $0x20] sm:$0xff] %v4759
  %4768 = vst [vmem:[%s10 + $0x28] sm:$0xff] %v4760
  %4769 = vst [vmem:[%s10 + $0x30] sm:$0xff] %v4761
  %4770 = vst [vmem:[%s10 + $0x38] sm:$0xff] %v4762
  // Predicated region
  $region42: #{bidirectional_lstm_forward.1} parent=0 // pred_check
    _
  $region43: #{bidirectional_lstm_forward.1} parent=0 // pred_check_branch
    %4772 = sbr.rel (0) target = $region45
  $region44: #{bidirectional_lstm_forward.1} parent=0 // pred_region
    _
  $region45: #{bidirectional_lstm_forward.1} parent=0 // pred_fallthru
    _
  // Predicated region
  $region46: #{bidirectional_lstm_forward.1} parent=0 // pred_check
    _
  $region47: #{bidirectional_lstm_forward.1} parent=0 // pred_check_branch
    %4774 = sbr.rel (0) target = $region49
  $region48: #{bidirectional_lstm_forward.1} parent=0 // pred_region
    _
  $region49: #{bidirectional_lstm_forward.1} parent=0 // pred_fallthru
    _

</llo_original>
